<compile_context>
chip_gen: v7x
topology: tpu7x:2x2x1
jax: 0.10.0
libtpu: 0.0.40
codegen_flags: <defaults>
</compile_context>

<pallas_src>
import jax
import jax.numpy as jnp
from jax.experimental import pallas as pl
from jax.experimental.pallas import tpu as pltpu

_VMEM_LIMIT_BYTES = 32 * 1024 * 1024  # explicit scoped-VMEM limit, safe on v5e/v6e/v7x


def _largest_divisor_leq(n, cap):
    for d in range(min(n, cap), 0, -1):
        if n % d == 0:
            return d
    return 1


# ----------------------------------------------------------------------------
# Tiled matmul + bias kernel (bf16 operands on MXU, f32 accumulation).
# Used for: per-layer input projection (x @ W_ih + b) and the decoder Linear.
# ----------------------------------------------------------------------------
def _matmul_bias_kernel(x_ref, w_ref, b_ref, o_ref, acc_ref):
    k = pl.program_id(2)

    @pl.when(k == 0)
    def _init():
        acc_ref[...] = jnp.zeros_like(acc_ref)

    acc_ref[...] += jnp.dot(x_ref[...], w_ref[...],
                            preferred_element_type=jnp.float32)

    @pl.when(k == pl.num_programs(2) - 1)
    def _finalize():
        o_ref[...] = (acc_ref[...] + b_ref[...]).astype(o_ref.dtype)


def matmul_bias(x, w, b, out_dtype=jnp.float32, tm=256, tn=512, tk=512):
    """(M, K) @ (K, N) + (1, N) with bf16 MXU operands and f32 accumulation."""
    M, K = x.shape
    Kw, N = w.shape
    assert K == Kw and b.shape == (1, N)
    # Fall back to full-extent blocks when the requested tile does not divide the dim
    # (keeps the (8,128) BlockSpec rule satisfied at small/demo sizes).
    tm = tm if M % tm == 0 else M
    tn = tn if N % tn == 0 else N
    tk = tk if K % tk == 0 else K
    grid = (M // tm, N // tn, K // tk)
    return pl.pallas_call(
        _matmul_bias_kernel,
        out_shape=jax.ShapeDtypeStruct((M, N), out_dtype),
        grid_spec=pltpu.PrefetchScalarGridSpec(
            num_scalar_prefetch=0,
            grid=grid,
            in_specs=[
                pl.BlockSpec((tm, tk), lambda i, j, k: (i, k)),   # x tile
                pl.BlockSpec((tk, tn), lambda i, j, k: (k, j)),   # W tile
                pl.BlockSpec((1, tn), lambda i, j, k: (0, j)),    # bias tile
            ],
            out_specs=pl.BlockSpec((tm, tn), lambda i, j, k: (i, j)),
            scratch_shapes=[pltpu.VMEM((tm, tn), jnp.float32)],
        ),
        compiler_params=pltpu.CompilerParams(
            dimension_semantics=("parallel", "parallel", "arbitrary"),
            vmem_limit_bytes=_VMEM_LIMIT_BYTES),
    )(x.astype(jnp.bfloat16), w.astype(jnp.bfloat16), b)


# ----------------------------------------------------------------------------
# LSTM recurrence kernel: input-gate slab is precomputed; only h @ W_hh remains
# on the per-step critical path. Grid = (batch tiles ["parallel"], time chunks
# ["arbitrary"]); h/c carried in the resident hT/cT output blocks.
# ----------------------------------------------------------------------------
def _lstm_rec_kernel(gx_ref, whh_ref, h0_ref, c0_ref, out_ref, hT_ref, cT_ref):
    Tc = gx_ref.shape[0]
    H = h0_ref.shape[-1]

    @pl.when(pl.program_id(1) == 0)
    def _init():
        hT_ref[...] = h0_ref[...]
        cT_ref[...] = c0_ref[...]

    whh = whh_ref[...]                       # (H, 4H) bf16, hoisted out of the loop

    def step(t, carry):
        h = hT_ref[...]                      # (tb, H) f32
        c = cT_ref[...]
        gates = gx_ref[t] + jnp.dot(h.astype(whh.dtype), whh,
                                    preferred_element_type=jnp.float32)
        # PyTorch LSTM gate order: i, f, g, o (lane-aligned slices when H % 128 == 0).
        i_g = jax.nn.sigmoid(gates[:, 0 * H:1 * H])
        f_g = jax.nn.sigmoid(gates[:, 1 * H:2 * H])
        g_g = jnp.tanh(gates[:, 2 * H:3 * H])
        o_g = jax.nn.sigmoid(gates[:, 3 * H:4 * H])
        c_new = f_g * c + i_g * g_g
        h_new = o_g * jnp.tanh(c_new)
        hT_ref[...] = h_new
        cT_ref[...] = c_new
        out_ref[t] = h_new.astype(out_ref.dtype)
        return carry

    jax.lax.fori_loop(0, Tc, step, 0, unroll=True)


def lstm_layer(gx, whh, h0, c0, *, max_time_chunk=8, batch_tile=None):
    """Recurrence over precomputed gates. gx: (T, B, 4H) f32 -> (out (T,B,H), hT, cT)."""
    T, B, G = gx.shape
    H = whh.shape[0]
    assert G == 4 * H
    Tc = _largest_divisor_leq(T, max_time_chunk)
    tb = batch_tile if batch_tile is not None else B     # production: B // n_cores
    assert B % tb == 0
    grid = (B // tb, T // Tc)
    # TODO(synk): on v7x, single-buffer the grid-invariant W_hh/h0/c0 blocks
    # (pipeline_mode=pl.Buffered(1)) to free VMEM for larger time/batch tiles.
    return pl.pallas_call(
        _lstm_rec_kernel,
        out_shape=(jax.ShapeDtypeStruct((T, B, H), jnp.float32),
                   jax.ShapeDtypeStruct((B, H), jnp.float32),
                   jax.ShapeDtypeStruct((B, H), jnp.float32)),
        grid_spec=pltpu.PrefetchScalarGridSpec(
            num_scalar_prefetch=0,
            grid=grid,
            in_specs=[
                pl.BlockSpec((Tc, tb, 4 * H), lambda b, t: (t, b, 0)),  # gate slab
                pl.BlockSpec((H, 4 * H), lambda b, t: (0, 0)),          # W_hh (invariant)
                pl.BlockSpec((tb, H), lambda b, t: (b, 0)),             # h0
                pl.BlockSpec((tb, H), lambda b, t: (b, 0)),             # c0
            ],
            out_specs=(
                pl.BlockSpec((Tc, tb, H), lambda b, t: (t, b, 0)),      # output sequence
                pl.BlockSpec((tb, H), lambda b, t: (b, 0)),             # h_T (also carry)
                pl.BlockSpec((tb, H), lambda b, t: (b, 0)),             # c_T (also carry)
            ),
        ),
        compiler_params=pltpu.CompilerParams(
            dimension_semantics=("parallel", "arbitrary"),
            vmem_limit_bytes=_VMEM_LIMIT_BYTES),
    )(gx, whh.astype(jnp.bfloat16), h0, c0)


# ----------------------------------------------------------------------------
# Full RNNModel forward (LSTM, attention=False, dropout=identity / eval mode)
# ----------------------------------------------------------------------------
def rnn_model_forward(params, tokens, hidden):
    """tokens: (T, B) int32; hidden: (h0, c0) each (nlayers, B, nhid)."""
    h0_all, c0_all = hidden
    nlayers = h0_all.shape[0]
    T, B = tokens.shape

    # Embedding lookup (gather) — glue, stays in plain JAX. drop(emb): identity in eval mode.
    x = jnp.take(params["encoder_w"], tokens, axis=0)          # (T, B, ninp) f32

    hs, cs = [], []
    for l in range(nlayers):
        wih, whh, b = params["lstm_wih"][l], params["lstm_whh"][l], params["lstm_b"][l]
        I = x.shape[-1]
        H = whh.shape[0]
        # Hoisted input projection: one big MXU-efficient matmul over all T*B rows.
        gx = matmul_bias(x.reshape(T * B, I), wih, b).reshape(T, B, 4 * H)
        x, hT, cT = lstm_layer(gx, whh, h0_all[l], c0_all[l])
        hs.append(hT)
        cs.append(cT)
        # inter-layer dropout of nn.LSTM: identity in eval mode.
    # TODO(synk): fuse the last layer's output chunks directly into the decoder matmul to
    # save one (T,B,H) HBM round-trip per layer boundary.

    H = x.shape[-1]
    decoded = matmul_bias(x.reshape(T * B, H), params["decoder_w"],
                          params["decoder_b"].reshape(1, -1))
    decoded = decoded.reshape(T, B, -1)
    return decoded, (jnp.stack(hs, 0), jnp.stack(cs, 0))


# ----------------------------------------------------------------------------
# Deterministic parameter init (shapes from RNNModel.__init__); matmul weights in bf16.
# ----------------------------------------------------------------------------
def init_params(key, ntoken, ninp, nhid, nlayers):
    keys = jax.random.split(key, 4 + 4 * nlayers)
    initrange = 0.1
    p = {}
    p["encoder_w"] = jax.random.uniform(keys[0], (ntoken, ninp),
                                        minval=-initrange, maxval=initrange,
                                        dtype=jnp.float32)
    p["decoder_w"] = jax.random.uniform(keys[1], (nhid, ntoken),
                                        minval=-initrange, maxval=initrange,
                                        dtype=jnp.float32).astype(jnp.bfloat16)
    p["decoder_b"] = jnp.zeros((ntoken,), jnp.float32)

    stdv = 1.0 / (nhid ** 0.5)
    wih, whh, bias = [], [], []
    for l in range(nlayers):
        in_sz = ninp if l == 0 else nhid
        k0, k1, k2, k3 = keys[4 + 4 * l: 8 + 4 * l]
        wih.append(jax.random.uniform(k0, (in_sz, 4 * nhid), minval=-stdv, maxval=stdv,
                                      dtype=jnp.float32).astype(jnp.bfloat16))
        whh.append(jax.random.uniform(k1, (nhid, 4 * nhid), minval=-stdv, maxval=stdv,
                                      dtype=jnp.float32).astype(jnp.bfloat16))
        b_ih = jax.random.uniform(k2, (4 * nhid,), minval=-stdv, maxval=stdv,
                                  dtype=jnp.float32)
        b_hh = jax.random.uniform(k3, (4 * nhid,), minval=-stdv, maxval=stdv,
                                  dtype=jnp.float32)
        bias.append((b_ih + b_hh).reshape(1, 4 * nhid))
    p["lstm_wih"] = wih
    p["lstm_whh"] = whh
    p["lstm_b"] = bias
    return p


# ----------------------------------------------------------------------------
# Pure-JAX reference (mirrors the same bf16-weight / f32-accumulate policy)
# ----------------------------------------------------------------------------
def _ref_forward(params, tokens, hidden):
    h0_all, c0_all = hidden
    T, B = tokens.shape
    x = jnp.take(params["encoder_w"], tokens, axis=0)
    hs, cs = [], []
    for l in range(h0_all.shape[0]):
        wih = params["lstm_wih"][l].astype(jnp.bfloat16)
        whh = params["lstm_whh"][l].astype(jnp.bfloat16)
        bias = params["lstm_b"][l]
        I = x.shape[-1]
        H = whh.shape[0]
        gx = (jnp.dot(x.reshape(T * B, I).astype(jnp.bfloat16), wih,
                      preferred_element_type=jnp.float32) + bias).reshape(T, B, 4 * H)

        def step(carry, g_t):
            h, c = carry
            g = g_t + jnp.dot(h.astype(jnp.bfloat16), whh,
                              preferred_element_type=jnp.float32)
            i = jax.nn.sigmoid(g[:, 0 * H:1 * H])
            f = jax.nn.sigmoid(g[:, 1 * H:2 * H])
            gg = jnp.tanh(g[:, 2 * H:3 * H])
            o = jax.nn.sigmoid(g[:, 3 * H:4 * H])
            c_new = f * c + i * gg
            h_new = o * jnp.tanh(c_new)
            return (h_new, c_new), h_new

        (hT, cT), x = jax.lax.scan(step, (h0_all[l], c0_all[l]), gx)
        hs.append(hT)
        cs.append(cT)
    H = x.shape[-1]
    dec = (jnp.dot(x.reshape(T * B, H).astype(jnp.bfloat16),
                   params["decoder_w"].astype(jnp.bfloat16),
                   preferred_element_type=jnp.float32) + params["decoder_b"])
    return dec.reshape(T, B, -1), (jnp.stack(hs, 0), jnp.stack(cs, 0))


if __name__ == "__main__":
    key = jax.random.PRNGKey(0)
    # Small but lane-aligned shapes: B a multiple of 8, nhid a multiple of 128.
    T, B = 16, 8
    ntoken, ninp, nhid, nlayers = 256, 64, 128, 2

    k_param, k_tok = jax.random.split(key)
    params = init_params(k_param, ntoken, ninp, nhid, nlayers)
    tokens = jax.random.randint(k_tok, (T, B), 0, ntoken, dtype=jnp.int32)

    # init_hidden(bsz): zeros of shape (nlayers, B, nhid) for both h and c.
    h0 = jnp.zeros((nlayers, B, nhid), jnp.float32)
    c0 = jnp.zeros((nlayers, B, nhid), jnp.float32)

    fwd = jax.jit(rnn_model_forward)
    decoded, (hT, cT) = fwd(params, tokens, (h0, c0))
    decoded = jax.block_until_ready(decoded)
    hT = jax.block_until_ready(hT)
    cT = jax.block_until_ready(cT)

    ref_decoded, (ref_hT, ref_cT) = _ref_forward(params, tokens, (h0, c0))

    assert decoded.shape == (T, B, ntoken)
    assert hT.shape == (nlayers, B, nhid) and cT.shape == (nlayers, B, nhid)
    assert jnp.allclose(decoded, ref_decoded, atol=2e-3, rtol=2e-3), \
        float(jnp.max(jnp.abs(decoded - ref_decoded)))
    assert jnp.allclose(hT, ref_hT, atol=2e-3, rtol=2e-3)
    assert jnp.allclose(cT, ref_cT, atol=2e-3, rtol=2e-3)

    print("KERNEL_OK")
</pallas_src>

<mosaic_0001>
module attributes {stable_mosaic.version = 11 : i64} {
  func.func @_matmul_bias_kernel(%arg0: i32, %arg1: i32, %arg2: i32, %arg3: memref<128x64xbf16, #tpu.memory_space<vmem>>, %arg4: memref<64x512xbf16, #tpu.memory_space<vmem>>, %arg5: memref<1x512xf32, #tpu.memory_space<vmem>>, %arg6: memref<128x512xf32, #tpu.memory_space<vmem>>, %arg7: memref<128x512xf32, #tpu.memory_space<vmem>>) attributes {dimension_semantics = [#tpu.dimension_semantics<parallel>, #tpu.dimension_semantics<parallel>, #tpu.dimension_semantics<arbitrary>], iteration_bounds = array<i64: 1, 1, 1>, scalar_prefetch = 0 : i64, scratch_operands = 1 : i64, tpu.core_type = #tpu.core_type<tc>, window_params = [{transform_indices = @transform_0, window_bounds = array<i64: 128, 64>}, {transform_indices = @transform_1, window_bounds = array<i64: 64, 512>}, {transform_indices = @transform_2, window_bounds = array<i64: 1, 512>}, {transform_indices = @transform_3, window_bounds = array<i64: 128, 512>}]} {
    %c0_i32 = arith.constant 0 : i32
    %0 = arith.cmpi eq, %arg2, %c0_i32 : i32
    %1 = arith.extui %0 : i1 to i32
    %c0_i32_0 = arith.constant 0 : i32
    %2 = arith.cmpi ne, %1, %c0_i32_0 : i32
    scf.if %2 {
      %cst_10 = arith.constant 0.000000e+00 : f32
      %12 = vector.broadcast %cst_10 : f32 to vector<128x512xf32>
      %c0_11 = arith.constant 0 : index
      %c0_12 = arith.constant 0 : index
      %13 = vector.load %arg7[%c0_11, %c0_12] : memref<128x512xf32, #tpu.memory_space<vmem>>, vector<128x512xf32>
      tpu.vector_store %arg7[%c0_11, %c0_12], %12 {strides = array<i32>} : memref<128x512xf32, #tpu.memory_space<vmem>>, vector<128x512xf32>,
    } else {
    }
    %c0 = arith.constant 0 : index
    %c0_1 = arith.constant 0 : index
    %3 = vector.load %arg7[%c0, %c0_1] : memref<128x512xf32, #tpu.memory_space<vmem>>, vector<128x512xf32>
    %c0_2 = arith.constant 0 : index
    %c0_3 = arith.constant 0 : index
    %4 = vector.load %arg3[%c0_2, %c0_3] : memref<128x64xbf16, #tpu.memory_space<vmem>>, vector<128x64xbf16>
    %c0_4 = arith.constant 0 : index
    %c0_5 = arith.constant 0 : index
    %5 = vector.load %arg4[%c0_4, %c0_5] : memref<64x512xbf16, #tpu.memory_space<vmem>>, vector<64x512xbf16>
    %cst = arith.constant dense<0.000000e+00> : vector<128x512xf32>
    %6 = tpu.matmul %4, %5, %cst {dimension_numbers = #tpu.dot_dimension_numbers<[1], [0], [0], [1], [0, 0, 1, 1], [], []>} : vector<128x64xbf16>, vector<64x512xbf16>, vector<128x512xf32> -> vector<128x512xf32>
    %7 = arith.addf %3, %6 : vector<128x512xf32>
    %c0_6 = arith.constant 0 : index
    %c0_7 = arith.constant 0 : index
    %8 = vector.load %arg7[%c0_6, %c0_7] : memref<128x512xf32, #tpu.memory_space<vmem>>, vector<128x512xf32>
    tpu.vector_store %arg7[%c0_6, %c0_7], %7 {strides = array<i32>} : memref<128x512xf32, #tpu.memory_space<vmem>>, vector<128x512xf32>,
    %c0_i32_8 = arith.constant 0 : i32
    %9 = arith.cmpi eq, %arg2, %c0_i32_8 : i32
    %10 = arith.extui %9 : i1 to i32
    %c0_i32_9 = arith.constant 0 : i32
    %11 = arith.cmpi ne, %10, %c0_i32_9 : i32
    scf.if %11 {
      %c0_10 = arith.constant 0 : index
      %c0_11 = arith.constant 0 : index
      %12 = vector.load %arg7[%c0_10, %c0_11] : memref<128x512xf32, #tpu.memory_space<vmem>>, vector<128x512xf32>
      %c0_12 = arith.constant 0 : index
      %c0_13 = arith.constant 0 : index
      %13 = vector.load %arg5[%c0_12, %c0_13] : memref<1x512xf32, #tpu.memory_space<vmem>>, vector<1x512xf32>
      %14 = vector.broadcast %13 : vector<1x512xf32> to vector<128x512xf32>
      %15 = arith.addf %12, %14 : vector<128x512xf32>
      %c0_14 = arith.constant 0 : index
      %c0_15 = arith.constant 0 : index
      %16 = vector.load %arg6[%c0_14, %c0_15] : memref<128x512xf32, #tpu.memory_space<vmem>>, vector<128x512xf32>
      tpu.vector_store %arg6[%c0_14, %c0_15], %15 {strides = array<i32>} : memref<128x512xf32, #tpu.memory_space<vmem>>, vector<128x512xf32>,
    } else {
    }
    return
  }
  func.func @transform_0(%arg0: i32, %arg1: i32, %arg2: i32) -> (i32, i32) {
    %c0_i32 = arith.constant 0 : i32
    return %arg0, %arg2 : i32, i32
  }
  func.func @transform_1(%arg0: i32, %arg1: i32, %arg2: i32) -> (i32, i32) {
    %c0_i32 = arith.constant 0 : i32
    return %arg2, %arg1 : i32, i32
  }
  func.func @transform_2(%arg0: i32, %arg1: i32, %arg2: i32) -> (i32, i32) {
    %c0_i32 = arith.constant 0 : i32
    %c0_i32_0 = arith.constant 0 : i32
    return %c0_i32, %arg1 : i32, i32
  }
  func.func @transform_3(%arg0: i32, %arg1: i32, %arg2: i32) -> (i32, i32) {
    %c0_i32 = arith.constant 0 : i32
    return %arg0, %arg1 : i32, i32
  }
}

module attributes {stable_mosaic.version = 11 : i64} {
  func.func @_lstm_rec_kernel(%arg0: i32, %arg1: i32, %arg2: memref<8x8x512xf32, #tpu.memory_space<vmem>>, %arg3: memref<128x512xbf16, #tpu.memory_space<vmem>>, %arg4: memref<8x128xf32, #tpu.memory_space<vmem>>, %arg5: memref<8x128xf32, #tpu.memory_space<vmem>>, %arg6: memref<8x8x128xf32, #tpu.memory_space<vmem>>, %arg7: memref<8x128xf32, #tpu.memory_space<vmem>>, %arg8: memref<8x128xf32, #tpu.memory_space<vmem>>) attributes {dimension_semantics = [#tpu.dimension_semantics<parallel>, #tpu.dimension_semantics<arbitrary>], iteration_bounds = array<i64: 1, 2>, scalar_prefetch = 0 : i64, scratch_operands = 0 : i64, tpu.core_type = #tpu.core_type<tc>, window_params = [{transform_indices = @transform_0, window_bounds = array<i64: 8, 8, 512>}, {pipeline_mode = #tpu.pipeline_mode<synchronous>, transform_indices = @transform_1, window_bounds = array<i64: 128, 512>}, {transform_indices = @transform_2, window_bounds = array<i64: 8, 128>}, {transform_indices = @transform_3, window_bounds = array<i64: 8, 128>}, {transform_indices = @transform_4, window_bounds = array<i64: 8, 8, 128>}, {transform_indices = @transform_5, window_bounds = array<i64: 8, 128>}, {transform_indices = @transform_6, window_bounds = array<i64: 8, 128>}]} {
    %c0_i32 = arith.constant 0 : i32
    %0 = arith.cmpi eq, %arg1, %c0_i32 : i32
    %1 = arith.extui %0 : i1 to i32
    %c0_i32_0 = arith.constant 0 : i32
    %2 = arith.cmpi ne, %1, %c0_i32_0 : i32
    scf.if %2 {
      %c0_130 = arith.constant 0 : index
      %c0_131 = arith.constant 0 : index
      %316 = vector.load %arg4[%c0_130, %c0_131] : memref<8x128xf32, #tpu.memory_space<vmem>>, vector<8x128xf32>
      %c0_132 = arith.constant 0 : index
      %c0_133 = arith.constant 0 : index
      %317 = vector.load %arg7[%c0_132, %c0_133] : memref<8x128xf32, #tpu.memory_space<vmem>>, vector<8x128xf32>
      tpu.vector_store %arg7[%c0_132, %c0_133], %316 {strides = array<i32>} : memref<8x128xf32, #tpu.memory_space<vmem>>, vector<8x128xf32>,
      %c0_134 = arith.constant 0 : index
      %c0_135 = arith.constant 0 : index
      %318 = vector.load %arg5[%c0_134, %c0_135] : memref<8x128xf32, #tpu.memory_space<vmem>>, vector<8x128xf32>
      %c0_136 = arith.constant 0 : index
      %c0_137 = arith.constant 0 : index
      %319 = vector.load %arg8[%c0_136, %c0_137] : memref<8x128xf32, #tpu.memory_space<vmem>>, vector<8x128xf32>
      tpu.vector_store %arg8[%c0_136, %c0_137], %318 {strides = array<i32>} : memref<8x128xf32, #tpu.memory_space<vmem>>, vector<8x128xf32>,
    } else {
    }
    %c0 = arith.constant 0 : index
    %c0_1 = arith.constant 0 : index
    %3 = vector.load %arg3[%c0, %c0_1] : memref<128x512xbf16, #tpu.memory_space<vmem>>, vector<128x512xbf16>
    %c0_i32_2 = arith.constant 0 : i32
    %c0_3 = arith.constant 0 : index
    %c0_4 = arith.constant 0 : index
    %4 = vector.load %arg7[%c0_3, %c0_4] : memref<8x128xf32, #tpu.memory_space<vmem>>, vector<8x128xf32>
    %c0_5 = arith.constant 0 : index
    %c0_6 = arith.constant 0 : index
    %5 = vector.load %arg8[%c0_5, %c0_6] : memref<8x128xf32, #tpu.memory_space<vmem>>, vector<8x128xf32>
    %6 = arith.index_cast %c0_i32_2 : i32 to index
    %c0_7 = arith.constant 0 : index
    %c0_8 = arith.constant 0 : index
    %7 = vector.load %arg2[%6, %c0_7, %c0_8] : memref<8x8x512xf32, #tpu.memory_space<vmem>>, vector<1x8x512xf32>
    %8 = vector.shape_cast %7 : vector<1x8x512xf32> to vector<8x512xf32>
    %9 = arith.truncf %4 : vector<8x128xf32> to vector<8x128xbf16>
    %cst = arith.constant dense<0.000000e+00> : vector<8x512xf32>
    %10 = tpu.matmul %9, %3, %cst {dimension_numbers = #tpu.dot_dimension_numbers<[1], [0], [0], [1], [0, 0, 1, 1], [], []>} : vector<8x128xbf16>, vector<128x512xbf16>, vector<8x512xf32> -> vector<8x512xf32>
    %11 = arith.addf %8, %10 : vector<8x512xf32>
    %12 = vector.extract_strided_slice %11 {offsets = [0, 0], sizes = [8, 128], strides = [1, 1]} : vector<8x512xf32> to vector<8x128xf32>
    %13 = arith.negf %12 : vector<8x128xf32>
    %14 = math.exp %13 : vector<8x128xf32>
    %cst_9 = arith.constant 1.000000e+00 : f32
    %15 = vector.broadcast %cst_9 : f32 to vector<8x128xf32>
    %16 = arith.addf %15, %14 : vector<8x128xf32>
    %17 = arith.divf %15, %16 : vector<8x128xf32>
    %18 = vector.extract_strided_slice %11 {offsets = [0, 128], sizes = [8, 128], strides = [1, 1]} : vector<8x512xf32> to vector<8x128xf32>
    %19 = arith.negf %18 : vector<8x128xf32>
    %20 = math.exp %19 : vector<8x128xf32>
    %cst_10 = arith.constant 1.000000e+00 : f32
    %21 = vector.broadcast %cst_10 : f32 to vector<8x128xf32>
    %22 = arith.addf %21, %20 : vector<8x128xf32>
    %23 = arith.divf %21, %22 : vector<8x128xf32>
    %24 = vector.extract_strided_slice %11 {offsets = [0, 256], sizes = [8, 128], strides = [1, 1]} : vector<8x512xf32> to vector<8x128xf32>
    %25 = math.tanh %24 : vector<8x128xf32>
    %26 = vector.extract_strided_slice %11 {offsets = [0, 384], sizes = [8, 128], strides = [1, 1]} : vector<8x512xf32> to vector<8x128xf32>
    %27 = arith.negf %26 : vector<8x128xf32>
    %28 = math.exp %27 : vector<8x128xf32>
    %cst_11 = arith.constant 1.000000e+00 : f32
    %29 = vector.broadcast %cst_11 : f32 to vector<8x128xf32>
    %30 = arith.addf %29, %28 : vector<8x128xf32>
    %31 = arith.divf %29, %30 : vector<8x128xf32>
    %32 = arith.mulf %23, %5 : vector<8x128xf32>
    %33 = arith.mulf %17, %25 : vector<8x128xf32>
    %34 = arith.addf %32, %33 : vector<8x128xf32>
    %35 = math.tanh %34 : vector<8x128xf32>
    %36 = arith.mulf %31, %35 : vector<8x128xf32>
    %c0_12 = arith.constant 0 : index
    %c0_13 = arith.constant 0 : index
    %37 = vector.load %arg7[%c0_12, %c0_13] : memref<8x128xf32, #tpu.memory_space<vmem>>, vector<8x128xf32>
    tpu.vector_store %arg7[%c0_12, %c0_13], %36 {strides = array<i32>} : memref<8x128xf32, #tpu.memory_space<vmem>>, vector<8x128xf32>,
    %c0_14 = arith.constant 0 : index
    %c0_15 = arith.constant 0 : index
    %38 = vector.load %arg8[%c0_14, %c0_15] : memref<8x128xf32, #tpu.memory_space<vmem>>, vector<8x128xf32>
    tpu.vector_store %arg8[%c0_14, %c0_15], %34 {strides = array<i32>} : memref<8x128xf32, #tpu.memory_space<vmem>>, vector<8x128xf32>,
    %39 = arith.index_cast %c0_i32_2 : i32 to index
    %c0_16 = arith.constant 0 : index
    %c0_17 = arith.constant 0 : index
    %40 = vector.load %arg6[%39, %c0_16, %c0_17] : memref<8x8x128xf32, #tpu.memory_space<vmem>>, vector<1x8x128xf32>
    %41 = vector.shape_cast %40 : vector<1x8x128xf32> to vector<8x128xf32>
    %42 = vector.shape_cast %36 : vector<8x128xf32> to vector<1x8x128xf32>
    tpu.vector_store %arg6[%39, %c0_16, %c0_17], %42 {strides = array<i32>} : memref<8x8x128xf32, #tpu.memory_space<vmem>>, vector<1x8x128xf32>,
    %c1_i32 = arith.constant 1 : i32
    %c0_18 = arith.constant 0 : index
    %c0_19 = arith.constant 0 : index
    %43 = vector.load %arg7[%c0_18, %c0_19] : memref<8x128xf32, #tpu.memory_space<vmem>>, vector<8x128xf32>
    %c0_20 = arith.constant 0 : index
    %c0_21 = arith.constant 0 : index
    %44 = vector.load %arg8[%c0_20, %c0_21] : memref<8x128xf32, #tpu.memory_space<vmem>>, vector<8x128xf32>
    %45 = arith.index_cast %c1_i32 : i32 to index
    %c0_22 = arith.constant 0 : index
    %c0_23 = arith.constant 0 : index
    %46 = vector.load %arg2[%45, %c0_22, %c0_23] : memref<8x8x512xf32, #tpu.memory_space<vmem>>, vector<1x8x512xf32>
    %47 = vector.shape_cast %46 : vector<1x8x512xf32> to vector<8x512xf32>
    %48 = arith.truncf %43 : vector<8x128xf32> to vector<8x128xbf16>
    %cst_24 = arith.constant dense<0.000000e+00> : vector<8x512xf32>
    %49 = tpu.matmul %48, %3, %cst_24 {dimension_numbers = #tpu.dot_dimension_numbers<[1], [0], [0], [1], [0, 0, 1, 1], [], []>} : vector<8x128xbf16>, vector<128x512xbf16>, vector<8x512xf32> -> vector<8x512xf32>
    %50 = arith.addf %47, %49 : vector<8x512xf32>
    %51 = vector.extract_strided_slice %50 {offsets = [0, 0], sizes = [8, 128], strides = [1, 1]} : vector<8x512xf32> to vector<8x128xf32>
    %52 = arith.negf %51 : vector<8x128xf32>
    %53 = math.exp %52 : vector<8x128xf32>
    %cst_25 = arith.constant 1.000000e+00 : f32
    %54 = vector.broadcast %cst_25 : f32 to vector<8x128xf32>
    %55 = arith.addf %54, %53 : vector<8x128xf32>
    %56 = arith.divf %54, %55 : vector<8x128xf32>
    %57 = vector.extract_strided_slice %50 {offsets = [0, 128], sizes = [8, 128], strides = [1, 1]} : vector<8x512xf32> to vector<8x128xf32>
    %58 = arith.negf %57 : vector<8x128xf32>
    %59 = math.exp %58 : vector<8x128xf32>
    %cst_26 = arith.constant 1.000000e+00 : f32
    %60 = vector.broadcast %cst_26 : f32 to vector<8x128xf32>
    %61 = arith.addf %60, %59 : vector<8x128xf32>
    %62 = arith.divf %60, %61 : vector<8x128xf32>
    %63 = vector.extract_strided_slice %50 {offsets = [0, 256], sizes = [8, 128], strides = [1, 1]} : vector<8x512xf32> to vector<8x128xf32>
    %64 = math.tanh %63 : vector<8x128xf32>
    %65 = vector.extract_strided_slice %50 {offsets = [0, 384], sizes = [8, 128], strides = [1, 1]} : vector<8x512xf32> to vector<8x128xf32>
    %66 = arith.negf %65 : vector<8x128xf32>
    %67 = math.exp %66 : vector<8x128xf32>
    %cst_27 = arith.constant 1.000000e+00 : f32
    %68 = vector.broadcast %cst_27 : f32 to vector<8x128xf32>
    %69 = arith.addf %68, %67 : vector<8x128xf32>
    %70 = arith.divf %68, %69 : vector<8x128xf32>
    %71 = arith.mulf %62, %44 : vector<8x128xf32>
    %72 = arith.mulf %56, %64 : vector<8x128xf32>
    %73 = arith.addf %71, %72 : vector<8x128xf32>
    %74 = math.tanh %73 : vector<8x128xf32>
    %75 = arith.mulf %70, %74 : vector<8x128xf32>
    %c0_28 = arith.constant 0 : index
    %c0_29 = arith.constant 0 : index
    %76 = vector.load %arg7[%c0_28, %c0_29] : memref<8x128xf32, #tpu.memory_space<vmem>>, vector<8x128xf32>
    tpu.vector_store %arg7[%c0_28, %c0_29], %75 {strides = array<i32>} : memref<8x128xf32, #tpu.memory_space<vmem>>, vector<8x128xf32>,
    %c0_30 = arith.constant 0 : index
    %c0_31 = arith.constant 0 : index
    %77 = vector.load %arg8[%c0_30, %c0_31] : memref<8x128xf32, #tpu.memory_space<vmem>>, vector<8x128xf32>
    tpu.vector_store %arg8[%c0_30, %c0_31], %73 {strides = array<i32>} : memref<8x128xf32, #tpu.memory_space<vmem>>, vector<8x128xf32>,
    %78 = arith.index_cast %c1_i32 : i32 to index
    %c0_32 = arith.constant 0 : index
    %c0_33 = arith.constant 0 : index
    %79 = vector.load %arg6[%78, %c0_32, %c0_33] : memref<8x8x128xf32, #tpu.memory_space<vmem>>, vector<1x8x128xf32>
    %80 = vector.shape_cast %79 : vector<1x8x128xf32> to vector<8x128xf32>
    %81 = vector.shape_cast %75 : vector<8x128xf32> to vector<1x8x128xf32>
    tpu.vector_store %arg6[%78, %c0_32, %c0_33], %81 {strides = array<i32>} : memref<8x8x128xf32, #tpu.memory_space<vmem>>, vector<1x8x128xf32>,
    %c2_i32 = arith.constant 2 : i32
    %c0_34 = arith.constant 0 : index
    %c0_35 = arith.constant 0 : index
    %82 = vector.load %arg7[%c0_34, %c0_35] : memref<8x128xf32, #tpu.memory_space<vmem>>, vector<8x128xf32>
    %c0_36 = arith.constant 0 : index
    %c0_37 = arith.constant 0 : index
    %83 = vector.load %arg8[%c0_36, %c0_37] : memref<8x128xf32, #tpu.memory_space<vmem>>, vector<8x128xf32>
    %84 = arith.index_cast %c2_i32 : i32 to index
    %c0_38 = arith.constant 0 : index
    %c0_39 = arith.constant 0 : index
    %85 = vector.load %arg2[%84, %c0_38, %c0_39] : memref<8x8x512xf32, #tpu.memory_space<vmem>>, vector<1x8x512xf32>
    %86 = vector.shape_cast %85 : vector<1x8x512xf32> to vector<8x512xf32>
    %87 = arith.truncf %82 : vector<8x128xf32> to vector<8x128xbf16>
    %cst_40 = arith.constant dense<0.000000e+00> : vector<8x512xf32>
    %88 = tpu.matmul %87, %3, %cst_40 {dimension_numbers = #tpu.dot_dimension_numbers<[1], [0], [0], [1], [0, 0, 1, 1], [], []>} : vector<8x128xbf16>, vector<128x512xbf16>, vector<8x512xf32> -> vector<8x512xf32>
    %89 = arith.addf %86, %88 : vector<8x512xf32>
    %90 = vector.extract_strided_slice %89 {offsets = [0, 0], sizes = [8, 128], strides = [1, 1]} : vector<8x512xf32> to vector<8x128xf32>
    %91 = arith.negf %90 : vector<8x128xf32>
    %92 = math.exp %91 : vector<8x128xf32>
    %cst_41 = arith.constant 1.000000e+00 : f32
    %93 = vector.broadcast %cst_41 : f32 to vector<8x128xf32>
    %94 = arith.addf %93, %92 : vector<8x128xf32>
    %95 = arith.divf %93, %94 : vector<8x128xf32>
    %96 = vector.extract_strided_slice %89 {offsets = [0, 128], sizes = [8, 128], strides = [1, 1]} : vector<8x512xf32> to vector<8x128xf32>
    %97 = arith.negf %96 : vector<8x128xf32>
    %98 = math.exp %97 : vector<8x128xf32>
    %cst_42 = arith.constant 1.000000e+00 : f32
    %99 = vector.broadcast %cst_42 : f32 to vector<8x128xf32>
    %100 = arith.addf %99, %98 : vector<8x128xf32>
    %101 = arith.divf %99, %100 : vector<8x128xf32>
    %102 = vector.extract_strided_slice %89 {offsets = [0, 256], sizes = [8, 128], strides = [1, 1]} : vector<8x512xf32> to vector<8x128xf32>
    %103 = math.tanh %102 : vector<8x128xf32>
    %104 = vector.extract_strided_slice %89 {offsets = [0, 384], sizes = [8, 128], strides = [1, 1]} : vector<8x512xf32> to vector<8x128xf32>
    %105 = arith.negf %104 : vector<8x128xf32>
    %106 = math.exp %105 : vector<8x128xf32>
    %cst_43 = arith.constant 1.000000e+00 : f32
    %107 = vector.broadcast %cst_43 : f32 to vector<8x128xf32>
    %108 = arith.addf %107, %106 : vector<8x128xf32>
    %109 = arith.divf %107, %108 : vector<8x128xf32>
    %110 = arith.mulf %101, %83 : vector<8x128xf32>
    %111 = arith.mulf %95, %103 : vector<8x128xf32>
    %112 = arith.addf %110, %111 : vector<8x128xf32>
    %113 = math.tanh %112 : vector<8x128xf32>
    %114 = arith.mulf %109, %113 : vector<8x128xf32>
    %c0_44 = arith.constant 0 : index
    %c0_45 = arith.constant 0 : index
    %115 = vector.load %arg7[%c0_44, %c0_45] : memref<8x128xf32, #tpu.memory_space<vmem>>, vector<8x128xf32>
    tpu.vector_store %arg7[%c0_44, %c0_45], %114 {strides = array<i32>} : memref<8x128xf32, #tpu.memory_space<vmem>>, vector<8x128xf32>,
    %c0_46 = arith.constant 0 : index
    %c0_47 = arith.constant 0 : index
    %116 = vector.load %arg8[%c0_46, %c0_47] : memref<8x128xf32, #tpu.memory_space<vmem>>, vector<8x128xf32>
    tpu.vector_store %arg8[%c0_46, %c0_47], %112 {strides = array<i32>} : memref<8x128xf32, #tpu.memory_space<vmem>>, vector<8x128xf32>,
    %117 = arith.index_cast %c2_i32 : i32 to index
    %c0_48 = arith.constant 0 : index
    %c0_49 = arith.constant 0 : index
    %118 = vector.load %arg6[%117, %c0_48, %c0_49] : memref<8x8x128xf32, #tpu.memory_space<vmem>>, vector<1x8x128xf32>
    %119 = vector.shape_cast %118 : vector<1x8x128xf32> to vector<8x128xf32>
    %120 = vector.shape_cast %114 : vector<8x128xf32> to vector<1x8x128xf32>
    tpu.vector_store %arg6[%117, %c0_48, %c0_49], %120 {strides = array<i32>} : memref<8x8x128xf32, #tpu.memory_space<vmem>>, vector<1x8x128xf32>,
    %c3_i32 = arith.constant 3 : i32
    %c0_50 = arith.constant 0 : index
    %c0_51 = arith.constant 0 : index
    %121 = vector.load %arg7[%c0_50, %c0_51] : memref<8x128xf32, #tpu.memory_space<vmem>>, vector<8x128xf32>
    %c0_52 = arith.constant 0 : index
    %c0_53 = arith.constant 0 : index
    %122 = vector.load %arg8[%c0_52, %c0_53] : memref<8x128xf32, #tpu.memory_space<vmem>>, vector<8x128xf32>
    %123 = arith.index_cast %c3_i32 : i32 to index
    %c0_54 = arith.constant 0 : index
    %c0_55 = arith.constant 0 : index
    %124 = vector.load %arg2[%123, %c0_54, %c0_55] : memref<8x8x512xf32, #tpu.memory_space<vmem>>, vector<1x8x512xf32>
    %125 = vector.shape_cast %124 : vector<1x8x512xf32> to vector<8x512xf32>
    %126 = arith.truncf %121 : vector<8x128xf32> to vector<8x128xbf16>
    %cst_56 = arith.constant dense<0.000000e+00> : vector<8x512xf32>
    %127 = tpu.matmul %126, %3, %cst_56 {dimension_numbers = #tpu.dot_dimension_numbers<[1], [0], [0], [1], [0, 0, 1, 1], [], []>} : vector<8x128xbf16>, vector<128x512xbf16>, vector<8x512xf32> -> vector<8x512xf32>
    %128 = arith.addf %125, %127 : vector<8x512xf32>
    %129 = vector.extract_strided_slice %128 {offsets = [0, 0], sizes = [8, 128], strides = [1, 1]} : vector<8x512xf32> to vector<8x128xf32>
    %130 = arith.negf %129 : vector<8x128xf32>
    %131 = math.exp %130 : vector<8x128xf32>
    %cst_57 = arith.constant 1.000000e+00 : f32
    %132 = vector.broadcast %cst_57 : f32 to vector<8x128xf32>
    %133 = arith.addf %132, %131 : vector<8x128xf32>
    %134 = arith.divf %132, %133 : vector<8x128xf32>
    %135 = vector.extract_strided_slice %128 {offsets = [0, 128], sizes = [8, 128], strides = [1, 1]} : vector<8x512xf32> to vector<8x128xf32>
    %136 = arith.negf %135 : vector<8x128xf32>
    %137 = math.exp %136 : vector<8x128xf32>
    %cst_58 = arith.constant 1.000000e+00 : f32
    %138 = vector.broadcast %cst_58 : f32 to vector<8x128xf32>
    %139 = arith.addf %138, %137 : vector<8x128xf32>
    %140 = arith.divf %138, %139 : vector<8x128xf32>
    %141 = vector.extract_strided_slice %128 {offsets = [0, 256], sizes = [8, 128], strides = [1, 1]} : vector<8x512xf32> to vector<8x128xf32>
    %142 = math.tanh %141 : vector<8x128xf32>
    %143 = vector.extract_strided_slice %128 {offsets = [0, 384], sizes = [8, 128], strides = [1, 1]} : vector<8x512xf32> to vector<8x128xf32>
    %144 = arith.negf %143 : vector<8x128xf32>
    %145 = math.exp %144 : vector<8x128xf32>
    %cst_59 = arith.constant 1.000000e+00 : f32
    %146 = vector.broadcast %cst_59 : f32 to vector<8x128xf32>
    %147 = arith.addf %146, %145 : vector<8x128xf32>
    %148 = arith.divf %146, %147 : vector<8x128xf32>
    %149 = arith.mulf %140, %122 : vector<8x128xf32>
    %150 = arith.mulf %134, %142 : vector<8x128xf32>
    %151 = arith.addf %149, %150 : vector<8x128xf32>
    %152 = math.tanh %151 : vector<8x128xf32>
    %153 = arith.mulf %148, %152 : vector<8x128xf32>
    %c0_60 = arith.constant 0 : index
    %c0_61 = arith.constant 0 : index
    %154 = vector.load %arg7[%c0_60, %c0_61] : memref<8x128xf32, #tpu.memory_space<vmem>>, vector<8x128xf32>
    tpu.vector_store %arg7[%c0_60, %c0_61], %153 {strides = array<i32>} : memref<8x128xf32, #tpu.memory_space<vmem>>, vector<8x128xf32>,
    %c0_62 = arith.constant 0 : index
    %c0_63 = arith.constant 0 : index
    %155 = vector.load %arg8[%c0_62, %c0_63] : memref<8x128xf32, #tpu.memory_space<vmem>>, vector<8x128xf32>
    tpu.vector_store %arg8[%c0_62, %c0_63], %151 {strides = array<i32>} : memref<8x128xf32, #tpu.memory_space<vmem>>, vector<8x128xf32>,
    %156 = arith.index_cast %c3_i32 : i32 to index
    %c0_64 = arith.constant 0 : index
    %c0_65 = arith.constant 0 : index
    %157 = vector.load %arg6[%156, %c0_64, %c0_65] : memref<8x8x128xf32, #tpu.memory_space<vmem>>, vector<1x8x128xf32>
    %158 = vector.shape_cast %157 : vector<1x8x128xf32> to vector<8x128xf32>
    %159 = vector.shape_cast %153 : vector<8x128xf32> to vector<1x8x128xf32>
    tpu.vector_store %arg6[%156, %c0_64, %c0_65], %159 {strides = array<i32>} : memref<8x8x128xf32, #tpu.memory_space<vmem>>, vector<1x8x128xf32>,
    %c4_i32 = arith.constant 4 : i32
    %c0_66 = arith.constant 0 : index
    %c0_67 = arith.constant 0 : index
    %160 = vector.load %arg7[%c0_66, %c0_67] : memref<8x128xf32, #tpu.memory_space<vmem>>, vector<8x128xf32>
    %c0_68 = arith.constant 0 : index
    %c0_69 = arith.constant 0 : index
    %161 = vector.load %arg8[%c0_68, %c0_69] : memref<8x128xf32, #tpu.memory_space<vmem>>, vector<8x128xf32>
    %162 = arith.index_cast %c4_i32 : i32 to index
    %c0_70 = arith.constant 0 : index
    %c0_71 = arith.constant 0 : index
    %163 = vector.load %arg2[%162, %c0_70, %c0_71] : memref<8x8x512xf32, #tpu.memory_space<vmem>>, vector<1x8x512xf32>
    %164 = vector.shape_cast %163 : vector<1x8x512xf32> to vector<8x512xf32>
    %165 = arith.truncf %160 : vector<8x128xf32> to vector<8x128xbf16>
    %cst_72 = arith.constant dense<0.000000e+00> : vector<8x512xf32>
    %166 = tpu.matmul %165, %3, %cst_72 {dimension_numbers = #tpu.dot_dimension_numbers<[1], [0], [0], [1], [0, 0, 1, 1], [], []>} : vector<8x128xbf16>, vector<128x512xbf16>, vector<8x512xf32> -> vector<8x512xf32>
    %167 = arith.addf %164, %166 : vector<8x512xf32>
    %168 = vector.extract_strided_slice %167 {offsets = [0, 0], sizes = [8, 128], strides = [1, 1]} : vector<8x512xf32> to vector<8x128xf32>
    %169 = arith.negf %168 : vector<8x128xf32>
    %170 = math.exp %169 : vector<8x128xf32>
    %cst_73 = arith.constant 1.000000e+00 : f32
    %171 = vector.broadcast %cst_73 : f32 to vector<8x128xf32>
    %172 = arith.addf %171, %170 : vector<8x128xf32>
    %173 = arith.divf %171, %172 : vector<8x128xf32>
    %174 = vector.extract_strided_slice %167 {offsets = [0, 128], sizes = [8, 128], strides = [1, 1]} : vector<8x512xf32> to vector<8x128xf32>
    %175 = arith.negf %174 : vector<8x128xf32>
    %176 = math.exp %175 : vector<8x128xf32>
    %cst_74 = arith.constant 1.000000e+00 : f32
    %177 = vector.broadcast %cst_74 : f32 to vector<8x128xf32>
    %178 = arith.addf %177, %176 : vector<8x128xf32>
    %179 = arith.divf %177, %178 : vector<8x128xf32>
    %180 = vector.extract_strided_slice %167 {offsets = [0, 256], sizes = [8, 128], strides = [1, 1]} : vector<8x512xf32> to vector<8x128xf32>
    %181 = math.tanh %180 : vector<8x128xf32>
    %182 = vector.extract_strided_slice %167 {offsets = [0, 384], sizes = [8, 128], strides = [1, 1]} : vector<8x512xf32> to vector<8x128xf32>
    %183 = arith.negf %182 : vector<8x128xf32>
    %184 = math.exp %183 : vector<8x128xf32>
    %cst_75 = arith.constant 1.000000e+00 : f32
    %185 = vector.broadcast %cst_75 : f32 to vector<8x128xf32>
    %186 = arith.addf %185, %184 : vector<8x128xf32>
    %187 = arith.divf %185, %186 : vector<8x128xf32>
    %188 = arith.mulf %179, %161 : vector<8x128xf32>
    %189 = arith.mulf %173, %181 : vector<8x128xf32>
    %190 = arith.addf %188, %189 : vector<8x128xf32>
    %191 = math.tanh %190 : vector<8x128xf32>
    %192 = arith.mulf %187, %191 : vector<8x128xf32>
    %c0_76 = arith.constant 0 : index
    %c0_77 = arith.constant 0 : index
    %193 = vector.load %arg7[%c0_76, %c0_77] : memref<8x128xf32, #tpu.memory_space<vmem>>, vector<8x128xf32>
    tpu.vector_store %arg7[%c0_76, %c0_77], %192 {strides = array<i32>} : memref<8x128xf32, #tpu.memory_space<vmem>>, vector<8x128xf32>,
    %c0_78 = arith.constant 0 : index
    %c0_79 = arith.constant 0 : index
    %194 = vector.load %arg8[%c0_78, %c0_79] : memref<8x128xf32, #tpu.memory_space<vmem>>, vector<8x128xf32>
    tpu.vector_store %arg8[%c0_78, %c0_79], %190 {strides = array<i32>} : memref<8x128xf32, #tpu.memory_space<vmem>>, vector<8x128xf32>,
    %195 = arith.index_cast %c4_i32 : i32 to index
    %c0_80 = arith.constant 0 : index
    %c0_81 = arith.constant 0 : index
    %196 = vector.load %arg6[%195, %c0_80, %c0_81] : memref<8x8x128xf32, #tpu.memory_space<vmem>>, vector<1x8x128xf32>
    %197 = vector.shape_cast %196 : vector<1x8x128xf32> to vector<8x128xf32>
    %198 = vector.shape_cast %192 : vector<8x128xf32> to vector<1x8x128xf32>
    tpu.vector_store %arg6[%195, %c0_80, %c0_81], %198 {strides = array<i32>} : memref<8x8x128xf32, #tpu.memory_space<vmem>>, vector<1x8x128xf32>,
    %c5_i32 = arith.constant 5 : i32
    %c0_82 = arith.constant 0 : index
    %c0_83 = arith.constant 0 : index
    %199 = vector.load %arg7[%c0_82, %c0_83] : memref<8x128xf32, #tpu.memory_space<vmem>>, vector<8x128xf32>
    %c0_84 = arith.constant 0 : index
    %c0_85 = arith.constant 0 : index
    %200 = vector.load %arg8[%c0_84, %c0_85] : memref<8x128xf32, #tpu.memory_space<vmem>>, vector<8x128xf32>
    %201 = arith.index_cast %c5_i32 : i32 to index
    %c0_86 = arith.constant 0 : index
    %c0_87 = arith.constant 0 : index
    %202 = vector.load %arg2[%201, %c0_86, %c0_87] : memref<8x8x512xf32, #tpu.memory_space<vmem>>, vector<1x8x512xf32>
    %203 = vector.shape_cast %202 : vector<1x8x512xf32> to vector<8x512xf32>
    %204 = arith.truncf %199 : vector<8x128xf32> to vector<8x128xbf16>
    %cst_88 = arith.constant dense<0.000000e+00> : vector<8x512xf32>
    %205 = tpu.matmul %204, %3, %cst_88 {dimension_numbers = #tpu.dot_dimension_numbers<[1], [0], [0], [1], [0, 0, 1, 1], [], []>} : vector<8x128xbf16>, vector<128x512xbf16>, vector<8x512xf32> -> vector<8x512xf32>
    %206 = arith.addf %203, %205 : vector<8x512xf32>
    %207 = vector.extract_strided_slice %206 {offsets = [0, 0], sizes = [8, 128], strides = [1, 1]} : vector<8x512xf32> to vector<8x128xf32>
    %208 = arith.negf %207 : vector<8x128xf32>
    %209 = math.exp %208 : vector<8x128xf32>
    %cst_89 = arith.constant 1.000000e+00 : f32
    %210 = vector.broadcast %cst_89 : f32 to vector<8x128xf32>
    %211 = arith.addf %210, %209 : vector<8x128xf32>
    %212 = arith.divf %210, %211 : vector<8x128xf32>
    %213 = vector.extract_strided_slice %206 {offsets = [0, 128], sizes = [8, 128], strides = [1, 1]} : vector<8x512xf32> to vector<8x128xf32>
    %214 = arith.negf %213 : vector<8x128xf32>
    %215 = math.exp %214 : vector<8x128xf32>
    %cst_90 = arith.constant 1.000000e+00 : f32
    %216 = vector.broadcast %cst_90 : f32 to vector<8x128xf32>
    %217 = arith.addf %216, %215 : vector<8x128xf32>
    %218 = arith.divf %216, %217 : vector<8x128xf32>
    %219 = vector.extract_strided_slice %206 {offsets = [0, 256], sizes = [8, 128], strides = [1, 1]} : vector<8x512xf32> to vector<8x128xf32>
    %220 = math.tanh %219 : vector<8x128xf32>
    %221 = vector.extract_strided_slice %206 {offsets = [0, 384], sizes = [8, 128], strides = [1, 1]} : vector<8x512xf32> to vector<8x128xf32>
    %222 = arith.negf %221 : vector<8x128xf32>
    %223 = math.exp %222 : vector<8x128xf32>
    %cst_91 = arith.constant 1.000000e+00 : f32
    %224 = vector.broadcast %cst_91 : f32 to vector<8x128xf32>
    %225 = arith.addf %224, %223 : vector<8x128xf32>
    %226 = arith.divf %224, %225 : vector<8x128xf32>
    %227 = arith.mulf %218, %200 : vector<8x128xf32>
    %228 = arith.mulf %212, %220 : vector<8x128xf32>
    %229 = arith.addf %227, %228 : vector<8x128xf32>
    %230 = math.tanh %229 : vector<8x128xf32>
    %231 = arith.mulf %226, %230 : vector<8x128xf32>
    %c0_92 = arith.constant 0 : index
    %c0_93 = arith.constant 0 : index
    %232 = vector.load %arg7[%c0_92, %c0_93] : memref<8x128xf32, #tpu.memory_space<vmem>>, vector<8x128xf32>
    tpu.vector_store %arg7[%c0_92, %c0_93], %231 {strides = array<i32>} : memref<8x128xf32, #tpu.memory_space<vmem>>, vector<8x128xf32>,
    %c0_94 = arith.constant 0 : index
    %c0_95 = arith.constant 0 : index
    %233 = vector.load %arg8[%c0_94, %c0_95] : memref<8x128xf32, #tpu.memory_space<vmem>>, vector<8x128xf32>
    tpu.vector_store %arg8[%c0_94, %c0_95], %229 {strides = array<i32>} : memref<8x128xf32, #tpu.memory_space<vmem>>, vector<8x128xf32>,
    %234 = arith.index_cast %c5_i32 : i32 to index
    %c0_96 = arith.constant 0 : index
    %c0_97 = arith.constant 0 : index
    %235 = vector.load %arg6[%234, %c0_96, %c0_97] : memref<8x8x128xf32, #tpu.memory_space<vmem>>, vector<1x8x128xf32>
    %236 = vector.shape_cast %235 : vector<1x8x128xf32> to vector<8x128xf32>
    %237 = vector.shape_cast %231 : vector<8x128xf32> to vector<1x8x128xf32>
    tpu.vector_store %arg6[%234, %c0_96, %c0_97], %237 {strides = array<i32>} : memref<8x8x128xf32, #tpu.memory_space<vmem>>, vector<1x8x128xf32>,
    %c6_i32 = arith.constant 6 : i32
    %c0_98 = arith.constant 0 : index
    %c0_99 = arith.constant 0 : index
    %238 = vector.load %arg7[%c0_98, %c0_99] : memref<8x128xf32, #tpu.memory_space<vmem>>, vector<8x128xf32>
    %c0_100 = arith.constant 0 : index
    %c0_101 = arith.constant 0 : index
    %239 = vector.load %arg8[%c0_100, %c0_101] : memref<8x128xf32, #tpu.memory_space<vmem>>, vector<8x128xf32>
    %240 = arith.index_cast %c6_i32 : i32 to index
    %c0_102 = arith.constant 0 : index
    %c0_103 = arith.constant 0 : index
    %241 = vector.load %arg2[%240, %c0_102, %c0_103] : memref<8x8x512xf32, #tpu.memory_space<vmem>>, vector<1x8x512xf32>
    %242 = vector.shape_cast %241 : vector<1x8x512xf32> to vector<8x512xf32>
    %243 = arith.truncf %238 : vector<8x128xf32> to vector<8x128xbf16>
    %cst_104 = arith.constant dense<0.000000e+00> : vector<8x512xf32>
    %244 = tpu.matmul %243, %3, %cst_104 {dimension_numbers = #tpu.dot_dimension_numbers<[1], [0], [0], [1], [0, 0, 1, 1], [], []>} : vector<8x128xbf16>, vector<128x512xbf16>, vector<8x512xf32> -> vector<8x512xf32>
    %245 = arith.addf %242, %244 : vector<8x512xf32>
    %246 = vector.extract_strided_slice %245 {offsets = [0, 0], sizes = [8, 128], strides = [1, 1]} : vector<8x512xf32> to vector<8x128xf32>
    %247 = arith.negf %246 : vector<8x128xf32>
    %248 = math.exp %247 : vector<8x128xf32>
    %cst_105 = arith.constant 1.000000e+00 : f32
    %249 = vector.broadcast %cst_105 : f32 to vector<8x128xf32>
    %250 = arith.addf %249, %248 : vector<8x128xf32>
    %251 = arith.divf %249, %250 : vector<8x128xf32>
    %252 = vector.extract_strided_slice %245 {offsets = [0, 128], sizes = [8, 128], strides = [1, 1]} : vector<8x512xf32> to vector<8x128xf32>
    %253 = arith.negf %252 : vector<8x128xf32>
    %254 = math.exp %253 : vector<8x128xf32>
    %cst_106 = arith.constant 1.000000e+00 : f32
    %255 = vector.broadcast %cst_106 : f32 to vector<8x128xf32>
    %256 = arith.addf %255, %254 : vector<8x128xf32>
    %257 = arith.divf %255, %256 : vector<8x128xf32>
    %258 = vector.extract_strided_slice %245 {offsets = [0, 256], sizes = [8, 128], strides = [1, 1]} : vector<8x512xf32> to vector<8x128xf32>
    %259 = math.tanh %258 : vector<8x128xf32>
    %260 = vector.extract_strided_slice %245 {offsets = [0, 384], sizes = [8, 128], strides = [1, 1]} : vector<8x512xf32> to vector<8x128xf32>
    %261 = arith.negf %260 : vector<8x128xf32>
    %262 = math.exp %261 : vector<8x128xf32>
    %cst_107 = arith.constant 1.000000e+00 : f32
    %263 = vector.broadcast %cst_107 : f32 to vector<8x128xf32>
    %264 = arith.addf %263, %262 : vector<8x128xf32>
    %265 = arith.divf %263, %264 : vector<8x128xf32>
    %266 = arith.mulf %257, %239 : vector<8x128xf32>
    %267 = arith.mulf %251, %259 : vector<8x128xf32>
    %268 = arith.addf %266, %267 : vector<8x128xf32>
    %269 = math.tanh %268 : vector<8x128xf32>
    %270 = arith.mulf %265, %269 : vector<8x128xf32>
    %c0_108 = arith.constant 0 : index
    %c0_109 = arith.constant 0 : index
    %271 = vector.load %arg7[%c0_108, %c0_109] : memref<8x128xf32, #tpu.memory_space<vmem>>, vector<8x128xf32>
    tpu.vector_store %arg7[%c0_108, %c0_109], %270 {strides = array<i32>} : memref<8x128xf32, #tpu.memory_space<vmem>>, vector<8x128xf32>,
    %c0_110 = arith.constant 0 : index
    %c0_111 = arith.constant 0 : index
    %272 = vector.load %arg8[%c0_110, %c0_111] : memref<8x128xf32, #tpu.memory_space<vmem>>, vector<8x128xf32>
    tpu.vector_store %arg8[%c0_110, %c0_111], %268 {strides = array<i32>} : memref<8x128xf32, #tpu.memory_space<vmem>>, vector<8x128xf32>,
    %273 = arith.index_cast %c6_i32 : i32 to index
    %c0_112 = arith.constant 0 : index
    %c0_113 = arith.constant 0 : index
    %274 = vector.load %arg6[%273, %c0_112, %c0_113] : memref<8x8x128xf32, #tpu.memory_space<vmem>>, vector<1x8x128xf32>
    %275 = vector.shape_cast %274 : vector<1x8x128xf32> to vector<8x128xf32>
    %276 = vector.shape_cast %270 : vector<8x128xf32> to vector<1x8x128xf32>
    tpu.vector_store %arg6[%273, %c0_112, %c0_113], %276 {strides = array<i32>} : memref<8x8x128xf32, #tpu.memory_space<vmem>>, vector<1x8x128xf32>,
    %c7_i32 = arith.constant 7 : i32
    %c0_114 = arith.constant 0 : index
    %c0_115 = arith.constant 0 : index
    %277 = vector.load %arg7[%c0_114, %c0_115] : memref<8x128xf32, #tpu.memory_space<vmem>>, vector<8x128xf32>
    %c0_116 = arith.constant 0 : index
    %c0_117 = arith.constant 0 : index
    %278 = vector.load %arg8[%c0_116, %c0_117] : memref<8x128xf32, #tpu.memory_space<vmem>>, vector<8x128xf32>
    %279 = arith.index_cast %c7_i32 : i32 to index
    %c0_118 = arith.constant 0 : index
    %c0_119 = arith.constant 0 : index
    %280 = vector.load %arg2[%279, %c0_118, %c0_119] : memref<8x8x512xf32, #tpu.memory_space<vmem>>, vector<1x8x512xf32>
    %281 = vector.shape_cast %280 : vector<1x8x512xf32> to vector<8x512xf32>
    %282 = arith.truncf %277 : vector<8x128xf32> to vector<8x128xbf16>
    %cst_120 = arith.constant dense<0.000000e+00> : vector<8x512xf32>
    %283 = tpu.matmul %282, %3, %cst_120 {dimension_numbers = #tpu.dot_dimension_numbers<[1], [0], [0], [1], [0, 0, 1, 1], [], []>} : vector<8x128xbf16>, vector<128x512xbf16>, vector<8x512xf32> -> vector<8x512xf32>
    %284 = arith.addf %281, %283 : vector<8x512xf32>
    %285 = vector.extract_strided_slice %284 {offsets = [0, 0], sizes = [8, 128], strides = [1, 1]} : vector<8x512xf32> to vector<8x128xf32>
    %286 = arith.negf %285 : vector<8x128xf32>
    %287 = math.exp %286 : vector<8x128xf32>
    %cst_121 = arith.constant 1.000000e+00 : f32
    %288 = vector.broadcast %cst_121 : f32 to vector<8x128xf32>
    %289 = arith.addf %288, %287 : vector<8x128xf32>
    %290 = arith.divf %288, %289 : vector<8x128xf32>
    %291 = vector.extract_strided_slice %284 {offsets = [0, 128], sizes = [8, 128], strides = [1, 1]} : vector<8x512xf32> to vector<8x128xf32>
    %292 = arith.negf %291 : vector<8x128xf32>
    %293 = math.exp %292 : vector<8x128xf32>
    %cst_122 = arith.constant 1.000000e+00 : f32
    %294 = vector.broadcast %cst_122 : f32 to vector<8x128xf32>
    %295 = arith.addf %294, %293 : vector<8x128xf32>
    %296 = arith.divf %294, %295 : vector<8x128xf32>
    %297 = vector.extract_strided_slice %284 {offsets = [0, 256], sizes = [8, 128], strides = [1, 1]} : vector<8x512xf32> to vector<8x128xf32>
    %298 = math.tanh %297 : vector<8x128xf32>
    %299 = vector.extract_strided_slice %284 {offsets = [0, 384], sizes = [8, 128], strides = [1, 1]} : vector<8x512xf32> to vector<8x128xf32>
    %300 = arith.negf %299 : vector<8x128xf32>
    %301 = math.exp %300 : vector<8x128xf32>
    %cst_123 = arith.constant 1.000000e+00 : f32
    %302 = vector.broadcast %cst_123 : f32 to vector<8x128xf32>
    %303 = arith.addf %302, %301 : vector<8x128xf32>
    %304 = arith.divf %302, %303 : vector<8x128xf32>
    %305 = arith.mulf %296, %278 : vector<8x128xf32>
    %306 = arith.mulf %290, %298 : vector<8x128xf32>
    %307 = arith.addf %305, %306 : vector<8x128xf32>
    %308 = math.tanh %307 : vector<8x128xf32>
    %309 = arith.mulf %304, %308 : vector<8x128xf32>
    %c0_124 = arith.constant 0 : index
    %c0_125 = arith.constant 0 : index
    %310 = vector.load %arg7[%c0_124, %c0_125] : memref<8x128xf32, #tpu.memory_space<vmem>>, vector<8x128xf32>
    tpu.vector_store %arg7[%c0_124, %c0_125], %309 {strides = array<i32>} : memref<8x128xf32, #tpu.memory_space<vmem>>, vector<8x128xf32>,
    %c0_126 = arith.constant 0 : index
    %c0_127 = arith.constant 0 : index
    %311 = vector.load %arg8[%c0_126, %c0_127] : memref<8x128xf32, #tpu.memory_space<vmem>>, vector<8x128xf32>
    tpu.vector_store %arg8[%c0_126, %c0_127], %307 {strides = array<i32>} : memref<8x128xf32, #tpu.memory_space<vmem>>, vector<8x128xf32>,
    %312 = arith.index_cast %c7_i32 : i32 to index
    %c0_128 = arith.constant 0 : index
    %c0_129 = arith.constant 0 : index
    %313 = vector.load %arg6[%312, %c0_128, %c0_129] : memref<8x8x128xf32, #tpu.memory_space<vmem>>, vector<1x8x128xf32>
    %314 = vector.shape_cast %313 : vector<1x8x128xf32> to vector<8x128xf32>
    %315 = vector.shape_cast %309 : vector<8x128xf32> to vector<1x8x128xf32>
    tpu.vector_store %arg6[%312, %c0_128, %c0_129], %315 {strides = array<i32>} : memref<8x8x128xf32, #tpu.memory_space<vmem>>, vector<1x8x128xf32>,
    %c8_i32 = arith.constant 8 : i32
    return
  }
  func.func @transform_0(%arg0: i32, %arg1: i32) -> (i32, i32, i32) {
    %c0_i32 = arith.constant 0 : i32
    %c0_i32_0 = arith.constant 0 : i32
    return %arg1, %arg0, %c0_i32 : i32, i32, i32
  }
  func.func @transform_1(%arg0: i32, %arg1: i32) -> (i32, i32) {
    %c0_i32 = arith.constant 0 : i32
    %c0_i32_0 = arith.constant 0 : i32
    %c0_i32_1 = arith.constant 0 : i32
    return %c0_i32, %c0_i32_0 : i32, i32
  }
  func.func @transform_2(%arg0: i32, %arg1: i32) -> (i32, i32) {
    %c0_i32 = arith.constant 0 : i32
    %c0_i32_0 = arith.constant 0 : i32
    return %arg0, %c0_i32 : i32, i32
  }
  func.func @transform_3(%arg0: i32, %arg1: i32) -> (i32, i32) {
    %c0_i32 = arith.constant 0 : i32
    %c0_i32_0 = arith.constant 0 : i32
    return %arg0, %c0_i32 : i32, i32
  }
  func.func @transform_4(%arg0: i32, %arg1: i32) -> (i32, i32, i32) {
    %c0_i32 = arith.constant 0 : i32
    %c0_i32_0 = arith.constant 0 : i32
    return %arg1, %arg0, %c0_i32 : i32, i32, i32
  }
  func.func @transform_5(%arg0: i32, %arg1: i32) -> (i32, i32) {
    %c0_i32 = arith.constant 0 : i32
    %c0_i32_0 = arith.constant 0 : i32
    return %arg0, %c0_i32 : i32, i32
  }
  func.func @transform_6(%arg0: i32, %arg1: i32) -> (i32, i32) {
    %c0_i32 = arith.constant 0 : i32
    %c0_i32_0 = arith.constant 0 : i32
    return %arg0, %c0_i32 : i32, i32
  }
}

module attributes {stable_mosaic.version = 11 : i64} {
  func.func @_matmul_bias_kernel(%arg0: i32, %arg1: i32, %arg2: i32, %arg3: memref<128x128xbf16, #tpu.memory_space<vmem>>, %arg4: memref<128x512xbf16, #tpu.memory_space<vmem>>, %arg5: memref<1x512xf32, #tpu.memory_space<vmem>>, %arg6: memref<128x512xf32, #tpu.memory_space<vmem>>, %arg7: memref<128x512xf32, #tpu.memory_space<vmem>>) attributes {dimension_semantics = [#tpu.dimension_semantics<parallel>, #tpu.dimension_semantics<parallel>, #tpu.dimension_semantics<arbitrary>], iteration_bounds = array<i64: 1, 1, 1>, scalar_prefetch = 0 : i64, scratch_operands = 1 : i64, tpu.core_type = #tpu.core_type<tc>, window_params = [{transform_indices = @transform_0, window_bounds = array<i64: 128, 128>}, {transform_indices = @transform_1, window_bounds = array<i64: 128, 512>}, {transform_indices = @transform_2, window_bounds = array<i64: 1, 512>}, {transform_indices = @transform_3, window_bounds = array<i64: 128, 512>}]} {
    %c0_i32 = arith.constant 0 : i32
    %0 = arith.cmpi eq, %arg2, %c0_i32 : i32
    %1 = arith.extui %0 : i1 to i32
    %c0_i32_0 = arith.constant 0 : i32
    %2 = arith.cmpi ne, %1, %c0_i32_0 : i32
    scf.if %2 {
      %cst_10 = arith.constant 0.000000e+00 : f32
      %12 = vector.broadcast %cst_10 : f32 to vector<128x512xf32>
      %c0_11 = arith.constant 0 : index
      %c0_12 = arith.constant 0 : index
      %13 = vector.load %arg7[%c0_11, %c0_12] : memref<128x512xf32, #tpu.memory_space<vmem>>, vector<128x512xf32>
      tpu.vector_store %arg7[%c0_11, %c0_12], %12 {strides = array<i32>} : memref<128x512xf32, #tpu.memory_space<vmem>>, vector<128x512xf32>,
    } else {
    }
    %c0 = arith.constant 0 : index
    %c0_1 = arith.constant 0 : index
    %3 = vector.load %arg7[%c0, %c0_1] : memref<128x512xf32, #tpu.memory_space<vmem>>, vector<128x512xf32>
    %c0_2 = arith.constant 0 : index
    %c0_3 = arith.constant 0 : index
    %4 = vector.load %arg3[%c0_2, %c0_3] : memref<128x128xbf16, #tpu.memory_space<vmem>>, vector<128x128xbf16>
    %c0_4 = arith.constant 0 : index
    %c0_5 = arith.constant 0 : index
    %5 = vector.load %arg4[%c0_4, %c0_5] : memref<128x512xbf16, #tpu.memory_space<vmem>>, vector<128x512xbf16>
    %cst = arith.constant dense<0.000000e+00> : vector<128x512xf32>
    %6 = tpu.matmul %4, %5, %cst {dimension_numbers = #tpu.dot_dimension_numbers<[1], [0], [0], [1], [0, 0, 1, 1], [], []>} : vector<128x128xbf16>, vector<128x512xbf16>, vector<128x512xf32> -> vector<128x512xf32>
    %7 = arith.addf %3, %6 : vector<128x512xf32>
    %c0_6 = arith.constant 0 : index
    %c0_7 = arith.constant 0 : index
    %8 = vector.load %arg7[%c0_6, %c0_7] : memref<128x512xf32, #tpu.memory_space<vmem>>, vector<128x512xf32>
    tpu.vector_store %arg7[%c0_6, %c0_7], %7 {strides = array<i32>} : memref<128x512xf32, #tpu.memory_space<vmem>>, vector<128x512xf32>,
    %c0_i32_8 = arith.constant 0 : i32
    %9 = arith.cmpi eq, %arg2, %c0_i32_8 : i32
    %10 = arith.extui %9 : i1 to i32
    %c0_i32_9 = arith.constant 0 : i32
    %11 = arith.cmpi ne, %10, %c0_i32_9 : i32
    scf.if %11 {
      %c0_10 = arith.constant 0 : index
      %c0_11 = arith.constant 0 : index
      %12 = vector.load %arg7[%c0_10, %c0_11] : memref<128x512xf32, #tpu.memory_space<vmem>>, vector<128x512xf32>
      %c0_12 = arith.constant 0 : index
      %c0_13 = arith.constant 0 : index
      %13 = vector.load %arg5[%c0_12, %c0_13] : memref<1x512xf32, #tpu.memory_space<vmem>>, vector<1x512xf32>
      %14 = vector.broadcast %13 : vector<1x512xf32> to vector<128x512xf32>
      %15 = arith.addf %12, %14 : vector<128x512xf32>
      %c0_14 = arith.constant 0 : index
      %c0_15 = arith.constant 0 : index
      %16 = vector.load %arg6[%c0_14, %c0_15] : memref<128x512xf32, #tpu.memory_space<vmem>>, vector<128x512xf32>
      tpu.vector_store %arg6[%c0_14, %c0_15], %15 {strides = array<i32>} : memref<128x512xf32, #tpu.memory_space<vmem>>, vector<128x512xf32>,
    } else {
    }
    return
  }
  func.func @transform_0(%arg0: i32, %arg1: i32, %arg2: i32) -> (i32, i32) {
    %c0_i32 = arith.constant 0 : i32
    return %arg0, %arg2 : i32, i32
  }
  func.func @transform_1(%arg0: i32, %arg1: i32, %arg2: i32) -> (i32, i32) {
    %c0_i32 = arith.constant 0 : i32
    return %arg2, %arg1 : i32, i32
  }
  func.func @transform_2(%arg0: i32, %arg1: i32, %arg2: i32) -> (i32, i32) {
    %c0_i32 = arith.constant 0 : i32
    %c0_i32_0 = arith.constant 0 : i32
    return %c0_i32, %arg1 : i32, i32
  }
  func.func @transform_3(%arg0: i32, %arg1: i32, %arg2: i32) -> (i32, i32) {
    %c0_i32 = arith.constant 0 : i32
    return %arg0, %arg1 : i32, i32
  }
}

module attributes {stable_mosaic.version = 11 : i64} {
  func.func @_matmul_bias_kernel(%arg0: i32, %arg1: i32, %arg2: i32, %arg3: memref<128x128xbf16, #tpu.memory_space<vmem>>, %arg4: memref<128x256xbf16, #tpu.memory_space<vmem>>, %arg5: memref<1x256xf32, #tpu.memory_space<vmem>>, %arg6: memref<128x256xf32, #tpu.memory_space<vmem>>, %arg7: memref<128x256xf32, #tpu.memory_space<vmem>>) attributes {dimension_semantics = [#tpu.dimension_semantics<parallel>, #tpu.dimension_semantics<parallel>, #tpu.dimension_semantics<arbitrary>], iteration_bounds = array<i64: 1, 1, 1>, scalar_prefetch = 0 : i64, scratch_operands = 1 : i64, tpu.core_type = #tpu.core_type<tc>, window_params = [{transform_indices = @transform_0, window_bounds = array<i64: 128, 128>}, {transform_indices = @transform_1, window_bounds = array<i64: 128, 256>}, {transform_indices = @transform_2, window_bounds = array<i64: 1, 256>}, {transform_indices = @transform_3, window_bounds = array<i64: 128, 256>}]} {
    %c0_i32 = arith.constant 0 : i32
    %0 = arith.cmpi eq, %arg2, %c0_i32 : i32
    %1 = arith.extui %0 : i1 to i32
    %c0_i32_0 = arith.constant 0 : i32
    %2 = arith.cmpi ne, %1, %c0_i32_0 : i32
    scf.if %2 {
      %cst_10 = arith.constant 0.000000e+00 : f32
      %12 = vector.broadcast %cst_10 : f32 to vector<128x256xf32>
      %c0_11 = arith.constant 0 : index
      %c0_12 = arith.constant 0 : index
      %13 = vector.load %arg7[%c0_11, %c0_12] : memref<128x256xf32, #tpu.memory_space<vmem>>, vector<128x256xf32>
      tpu.vector_store %arg7[%c0_11, %c0_12], %12 {strides = array<i32>} : memref<128x256xf32, #tpu.memory_space<vmem>>, vector<128x256xf32>,
    } else {
    }
    %c0 = arith.constant 0 : index
    %c0_1 = arith.constant 0 : index
    %3 = vector.load %arg7[%c0, %c0_1] : memref<128x256xf32, #tpu.memory_space<vmem>>, vector<128x256xf32>
    %c0_2 = arith.constant 0 : index
    %c0_3 = arith.constant 0 : index
    %4 = vector.load %arg3[%c0_2, %c0_3] : memref<128x128xbf16, #tpu.memory_space<vmem>>, vector<128x128xbf16>
    %c0_4 = arith.constant 0 : index
    %c0_5 = arith.constant 0 : index
    %5 = vector.load %arg4[%c0_4, %c0_5] : memref<128x256xbf16, #tpu.memory_space<vmem>>, vector<128x256xbf16>
    %cst = arith.constant dense<0.000000e+00> : vector<128x256xf32>
    %6 = tpu.matmul %4, %5, %cst {dimension_numbers = #tpu.dot_dimension_numbers<[1], [0], [0], [1], [0, 0, 1, 1], [], []>} : vector<128x128xbf16>, vector<128x256xbf16>, vector<128x256xf32> -> vector<128x256xf32>
    %7 = arith.addf %3, %6 : vector<128x256xf32>
    %c0_6 = arith.constant 0 : index
    %c0_7 = arith.constant 0 : index
    %8 = vector.load %arg7[%c0_6, %c0_7] : memref<128x256xf32, #tpu.memory_space<vmem>>, vector<128x256xf32>
    tpu.vector_store %arg7[%c0_6, %c0_7], %7 {strides = array<i32>} : memref<128x256xf32, #tpu.memory_space<vmem>>, vector<128x256xf32>,
    %c0_i32_8 = arith.constant 0 : i32
    %9 = arith.cmpi eq, %arg2, %c0_i32_8 : i32
    %10 = arith.extui %9 : i1 to i32
    %c0_i32_9 = arith.constant 0 : i32
    %11 = arith.cmpi ne, %10, %c0_i32_9 : i32
    scf.if %11 {
      %c0_10 = arith.constant 0 : index
      %c0_11 = arith.constant 0 : index
      %12 = vector.load %arg7[%c0_10, %c0_11] : memref<128x256xf32, #tpu.memory_space<vmem>>, vector<128x256xf32>
      %c0_12 = arith.constant 0 : index
      %c0_13 = arith.constant 0 : index
      %13 = vector.load %arg5[%c0_12, %c0_13] : memref<1x256xf32, #tpu.memory_space<vmem>>, vector<1x256xf32>
      %14 = vector.broadcast %13 : vector<1x256xf32> to vector<128x256xf32>
      %15 = arith.addf %12, %14 : vector<128x256xf32>
      %c0_14 = arith.constant 0 : index
      %c0_15 = arith.constant 0 : index
      %16 = vector.load %arg6[%c0_14, %c0_15] : memref<128x256xf32, #tpu.memory_space<vmem>>, vector<128x256xf32>
      tpu.vector_store %arg6[%c0_14, %c0_15], %15 {strides = array<i32>} : memref<128x256xf32, #tpu.memory_space<vmem>>, vector<128x256xf32>,
    } else {
    }
    return
  }
  func.func @transform_0(%arg0: i32, %arg1: i32, %arg2: i32) -> (i32, i32) {
    %c0_i32 = arith.constant 0 : i32
    return %arg0, %arg2 : i32, i32
  }
  func.func @transform_1(%arg0: i32, %arg1: i32, %arg2: i32) -> (i32, i32) {
    %c0_i32 = arith.constant 0 : i32
    return %arg2, %arg1 : i32, i32
  }
  func.func @transform_2(%arg0: i32, %arg1: i32, %arg2: i32) -> (i32, i32) {
    %c0_i32 = arith.constant 0 : i32
    %c0_i32_0 = arith.constant 0 : i32
    return %c0_i32, %arg1 : i32, i32
  }
  func.func @transform_3(%arg0: i32, %arg1: i32, %arg2: i32) -> (i32, i32) {
    %c0_i32 = arith.constant 0 : i32
    return %arg0, %arg1 : i32, i32
  }
}

</mosaic_0001>

<llo_original>
// kernel: rnn_model_forward.6
$region0: #{rnn_model_forward.6}
  #allocation0 [shape = 'u32[]', space=smem, size = 0x4, offset = 0x4, fixed_abs, tag = 'smem constant byte address 0x4 - core index']
  #allocation1 [shape = 'u32[144,128]{1,0:T(1,128)}', space=vmem, size = 0x12000, scoped, tag = 'internal scratch']
  %s0 = inlined_call_operand.vmem [shape: f32[16,8,512], index: 0, kind: input, shape index: {}]
  %s1 = inlined_call_operand.vmem [shape: bf16[128,512], index: 1, kind: input, shape index: {}]
  %s2 = inlined_call_operand.vmem [shape: f32[8,128], index: 2, kind: input, shape index: {}]
  %s3 = inlined_call_operand.vmem [shape: f32[8,128], index: 3, kind: input, shape index: {}]
  %s4 = inlined_call_operand.vmem [shape: f32[16,8,128], index: 4, kind: output, shape index: {0}]
  %s5 = inlined_call_operand.vmem [shape: f32[8,128], index: 5, kind: output, shape index: {1}]
  %s6 = inlined_call_operand.vmem [shape: f32[8,128], index: 6, kind: output, shape index: {2}]
  %7 = xla_tuple %s4, %s5, %s6
  %s8 = sld [smem:[#allocation0]]
  $region69: #{rnn_model_forward.6} parent=0
    _
  %s10 = ssub.s32 1, %s8
  %s11 = scalar_select 0, %s10, %s8
  loop: start=0, step=1, limit=4
  $region2: #{rnn_model_forward.6} parent=0 // loop_pre_header
    _
  $region3: #{rnn_model_forward.6} parent=0 // loop_header
    %s13 = sphi 0, %s17
    %p14 = scmp.ge.s32.totalorder %s13, 4
    %s20 = sphi 0, %s32
    %s21 = sphi 0, %s28
    %s22 = sphi 0, %s20
    %s23 = sphi 0, %s21
    %s24 = sphi 0, %s22
    %s25 = sphi 0, %s23
    %s37 = sphi 0, %s39
    %s40 = sphi 0, %s37
    %s41 = sphi 0, %s40
    %s57 = sphi 0, %s41
    %s61 = sphi 0, %s61
    %s63 = sphi 0, %s61
    %s64 = sphi 0, %s63
    %s78 = sphi 0, %s64
    %s84 = sphi 0, %s86
    %s87 = sphi 0, %s84
    %s88 = sphi 0, %s87
    %s104 = sphi 0, %s88
    %s110 = sphi 0, %s112
    %s113 = sphi 0, %s110
    %s114 = sphi 0, %s113
    %s130 = sphi 0, %s114
    %s138 = sphi 0, %s140
    %s141 = sphi 0, %s138
    %s142 = sphi 0, %s141
    %s158 = sphi 0, %s142
    %s164 = sphi 0, %s166
    %s167 = sphi 0, %s164
    %s168 = sphi 0, %s167
    %s184 = sphi 0, %s168
    %s190 = sphi 0, %s192
    %s193 = sphi 0, %s190
    %s194 = sphi 0, %s193
    %s210 = sphi 0, %s194
  $region4: #{rnn_model_forward.6} parent=0 // loop_header_branch
    %16 = sbr.rel (%p14) target = $region8
  $region5: #{rnn_model_forward.6} parent=0 // loop_body
    %s18 = ssub.s32 %s13, 1
    %s19 = ssub.s32 %s13, 2
    %s26 = sadd.s32 1, %s21
    %p27 = scmp.ge.s32.totalorder %s26, 2
    %s28 = scalar_select %p27, 0, %s26
    %s29 = sadd.s32 1, %s20
    %s30 = scalar_select %p27, %s29, %s20
    %p31 = scmp.ge.s32.totalorder %s30, 1
    %s32 = scalar_select %p31, 0, %s30
    %s33 = ssub.s32 %s21, %s28
    %s34 = ssub.s32 %s20, %s32
    %s35 = sor.u32 %s33, %s34
    %p36 = scmp.eq.s32.totalorder %s35, 0
    %s38 = sadd.s32 %s37, 1
    %s39 = scalar_select %p36, %s37, %s38
    %p42 = pneg %p36
    %p43 = scmp.eq.s32.totalorder %s13, 1
    %p44 = por %p42, %p43
    %p45 = scmp.ne.s32.totalorder %s37, %s40
    %p46 = scmp.eq.s32.totalorder %s13, 0
    %p47 = por %p45, %p46
    %p48 = scmp.ne.s32.totalorder %s37, %s40
    %p49 = scmp.eq.s32.totalorder %s18, 1
    %p50 = por %p48, %p49
    %p51 = scmp.ne.s32.totalorder %s40, %s41
    %p52 = scmp.eq.s32.totalorder %s18, 0
    %p53 = por %p51, %p52
    %p54 = scmp.ne.s32.totalorder %s40, %s41
    %p55 = scmp.eq.s32.totalorder %s19, 1
    %p56 = por %p54, %p55
    %p58 = scmp.ne.s32.totalorder %s41, %s57
    %p59 = scmp.eq.s32.totalorder %s19, 0
    %p60 = por %p58, %p59
    %s62 = sadd.s32 %s61, 1
    %p65 = scmp.eq.s32.totalorder %s13, 1
    %p66 = scmp.ne.s32.totalorder %s61, %s63
    %p67 = scmp.eq.s32.totalorder %s13, 0
    %p68 = por %p66, %p67
    %p69 = scmp.ne.s32.totalorder %s61, %s63
    %p70 = scmp.eq.s32.totalorder %s18, 1
    %p71 = por %p69, %p70
    %p72 = scmp.ne.s32.totalorder %s63, %s64
    %p73 = scmp.eq.s32.totalorder %s18, 0
    %p74 = por %p72, %p73
    %p75 = scmp.ne.s32.totalorder %s63, %s64
    %p76 = scmp.eq.s32.totalorder %s19, 1
    %p77 = por %p75, %p76
    %p79 = scmp.ne.s32.totalorder %s64, %s78
    %p80 = scmp.eq.s32.totalorder %s19, 0
    %p81 = por %p79, %p80
    %s82 = ssub.s32 %s20, %s32
    %p83 = scmp.eq.s32.totalorder %s82, 0
    %s85 = sadd.s32 %s84, 1
    %s86 = scalar_select %p83, %s84, %s85
    %p89 = pneg %p83
    %p90 = scmp.eq.s32.totalorder %s13, 1
    %p91 = por %p89, %p90
    %p92 = scmp.ne.s32.totalorder %s84, %s87
    %p93 = scmp.eq.s32.totalorder %s13, 0
    %p94 = por %p92, %p93
    %p95 = scmp.ne.s32.totalorder %s84, %s87
    %p96 = scmp.eq.s32.totalorder %s18, 1
    %p97 = por %p95, %p96
    %p98 = scmp.ne.s32.totalorder %s87, %s88
    %p99 = scmp.eq.s32.totalorder %s18, 0
    %p100 = por %p98, %p99
    %p101 = scmp.ne.s32.totalorder %s87, %s88
    %p102 = scmp.eq.s32.totalorder %s19, 1
    %p103 = por %p101, %p102
    %p105 = scmp.ne.s32.totalorder %s88, %s104
    %p106 = scmp.eq.s32.totalorder %s19, 0
    %p107 = por %p105, %p106
    %s108 = ssub.s32 %s20, %s32
    %p109 = scmp.eq.s32.totalorder %s108, 0
    %s111 = sadd.s32 %s110, 1
    %s112 = scalar_select %p109, %s110, %s111
    %p115 = pneg %p109
    %p116 = scmp.eq.s32.totalorder %s13, 1
    %p117 = por %p115, %p116
    %p118 = scmp.ne.s32.totalorder %s110, %s113
    %p119 = scmp.eq.s32.totalorder %s13, 0
    %p120 = por %p118, %p119
    %p121 = scmp.ne.s32.totalorder %s110, %s113
    %p122 = scmp.eq.s32.totalorder %s18, 1
    %p123 = por %p121, %p122
    %p124 = scmp.ne.s32.totalorder %s113, %s114
    %p125 = scmp.eq.s32.totalorder %s18, 0
    %p126 = por %p124, %p125
    %p127 = scmp.ne.s32.totalorder %s113, %s114
    %p128 = scmp.eq.s32.totalorder %s19, 1
    %p129 = por %p127, %p128
    %p131 = scmp.ne.s32.totalorder %s114, %s130
    %p132 = scmp.eq.s32.totalorder %s19, 0
    %p133 = por %p131, %p132
    %s134 = ssub.s32 %s21, %s28
    %s135 = ssub.s32 %s20, %s32
    %s136 = sor.u32 %s134, %s135
    %p137 = scmp.eq.s32.totalorder %s136, 0
    %s139 = sadd.s32 %s138, 1
    %s140 = scalar_select %p137, %s138, %s139
    %p143 = pneg %p137
    %p144 = scmp.eq.s32.totalorder %s13, 1
    %p145 = por %p143, %p144
    %p146 = scmp.ne.s32.totalorder %s138, %s141
    %p147 = scmp.eq.s32.totalorder %s13, 0
    %p148 = por %p146, %p147
    %p149 = scmp.ne.s32.totalorder %s138, %s141
    %p150 = scmp.eq.s32.totalorder %s18, 1
    %p151 = por %p149, %p150
    %p152 = scmp.ne.s32.totalorder %s141, %s142
    %p153 = scmp.eq.s32.totalorder %s18, 0
    %p154 = por %p152, %p153
    %p155 = scmp.ne.s32.totalorder %s141, %s142
    %p156 = scmp.eq.s32.totalorder %s19, 1
    %p157 = por %p155, %p156
    %p159 = scmp.ne.s32.totalorder %s142, %s158
    %p160 = scmp.eq.s32.totalorder %s19, 0
    %p161 = por %p159, %p160
    %s162 = ssub.s32 %s20, %s32
    %p163 = scmp.eq.s32.totalorder %s162, 0
    %s165 = sadd.s32 %s164, 1
    %s166 = scalar_select %p163, %s164, %s165
    %p169 = pneg %p163
    %p170 = scmp.eq.s32.totalorder %s13, 1
    %p171 = por %p169, %p170
    %p172 = scmp.ne.s32.totalorder %s164, %s167
    %p173 = scmp.eq.s32.totalorder %s13, 0
    %p174 = por %p172, %p173
    %p175 = scmp.ne.s32.totalorder %s164, %s167
    %p176 = scmp.eq.s32.totalorder %s18, 1
    %p177 = por %p175, %p176
    %p178 = scmp.ne.s32.totalorder %s167, %s168
    %p179 = scmp.eq.s32.totalorder %s18, 0
    %p180 = por %p178, %p179
    %p181 = scmp.ne.s32.totalorder %s167, %s168
    %p182 = scmp.eq.s32.totalorder %s19, 1
    %p183 = por %p181, %p182
    %p185 = scmp.ne.s32.totalorder %s168, %s184
    %p186 = scmp.eq.s32.totalorder %s19, 0
    %p187 = por %p185, %p186
    %s188 = ssub.s32 %s20, %s32
    %p189 = scmp.eq.s32.totalorder %s188, 0
    %s191 = sadd.s32 %s190, 1
    %s192 = scalar_select %p189, %s190, %s191
    %p195 = pneg %p189
    %p196 = scmp.eq.s32.totalorder %s13, 1
    %p197 = por %p195, %p196
    %p198 = scmp.ne.s32.totalorder %s190, %s193
    %p199 = scmp.eq.s32.totalorder %s13, 0
    %p200 = por %p198, %p199
    %p201 = scmp.ne.s32.totalorder %s190, %s193
    %p202 = scmp.eq.s32.totalorder %s18, 1
    %p203 = por %p201, %p202
    %p204 = scmp.ne.s32.totalorder %s193, %s194
    %p205 = scmp.eq.s32.totalorder %s18, 0
    %p206 = por %p204, %p205
    %p207 = scmp.ne.s32.totalorder %s193, %s194
    %p208 = scmp.eq.s32.totalorder %s19, 1
    %p209 = por %p207, %p208
    %p211 = scmp.ne.s32.totalorder %s194, %s210
    %p212 = scmp.eq.s32.totalorder %s19, 0
    %p213 = por %p211, %p212
    %p214 = scmp.le.s32.totalorder 1, %s13
    %p215 = scmp.lt.s32.totalorder %s13, 3
    %p216 = pnand %p214, %p215
    %p217 = pneg %p216
    // Predicated region
    $region9: #{rnn_model_forward.6} parent=5 // pred_check
      _
    $region10: #{rnn_model_forward.6} parent=5 // pred_check_branch
      %219 = sbr.rel (%p216) target = $region12
    $region11: #{rnn_model_forward.6} parent=5 // pred_region
      %s220 = ssub.s32 %s13, 1
      // Predicated region
      $region13: #{rnn_model_forward.6} parent=11 // pred_check
        %p221 = pneg %p74
      $region14: #{rnn_model_forward.6} parent=11 // pred_check_branch
        %223 = sbr.rel (%p221) target = $region16
      $region15: #{rnn_model_forward.6} parent=11 // pred_region
        _
      $region16: #{rnn_model_forward.6} parent=11 // pred_fallthru
        _
      // Predicated region
      $region17: #{rnn_model_forward.6} parent=11 // pred_check
        %p224 = pneg %p100
      $region18: #{rnn_model_forward.6} parent=11 // pred_check_branch
        %226 = sbr.rel (%p224) target = $region20
      $region19: #{rnn_model_forward.6} parent=11 // pred_region
        %p227 = scmp.lt.s32.totalorder %s22, 0
        %s228 = scalar_select %p227, %s22, 0
        %s229 = smul.addr %s228, 8
        %s230 = scalar_lea.vmem %s2, %s229
      $region20: #{rnn_model_forward.6} parent=11 // pred_fallthru
        _
      // Predicated region
      $region21: #{rnn_model_forward.6} parent=11 // pred_check
        %p231 = pneg %p126
      $region22: #{rnn_model_forward.6} parent=11 // pred_check_branch
        %233 = sbr.rel (%p231) target = $region24
      $region23: #{rnn_model_forward.6} parent=11 // pred_region
        %p234 = scmp.lt.s32.totalorder %s22, 0
        %s235 = scalar_select %p234, %s22, 0
        %s236 = smul.addr %s235, 8
        %s237 = scalar_lea.vmem %s3, %s236
      $region24: #{rnn_model_forward.6} parent=11 // pred_fallthru
        _
    $region12: #{rnn_model_forward.6} parent=5 // pred_fallthru
      _
    %p238 = scmp.lt.s32.totalorder %s13, 2
    // Predicated region
    $region25: #{rnn_model_forward.6} parent=5 // pred_check
      %p239 = pneg %p238
    $region26: #{rnn_model_forward.6} parent=5 // pred_check_branch
      %241 = sbr.rel (%p239) target = $region28
    $region27: #{rnn_model_forward.6} parent=5 // pred_region
      // Predicated region
      $region29: #{rnn_model_forward.6} parent=27 // pred_check
        %p242 = pneg %p47
      $region30: #{rnn_model_forward.6} parent=27 // pred_check_branch
        %244 = sbr.rel (%p242) target = $region32
      $region31: #{rnn_model_forward.6} parent=27 // pred_region
        %s245 = smul.u32 8, %s21
        %p246 = scmp.lt.s32.totalorder %s245, 15
        %s247 = scalar_select %p246, %s245, 15
        %p248 = scmp.lt.s32.totalorder %s20, 0
        %s249 = scalar_select %p248, %s20, 0
        %s250 = smul.addr %s249, 4
        %s251 = smul.addr %s247, 4
        %s252 = sadd.s32 %s250, %s251
        %s253 = smul.addr %s252, 8
        %s254 = scalar_lea.vmem %s0, %s253
        %s255 = smul.u32 8, %s21
      $region32: #{rnn_model_forward.6} parent=27 // pred_fallthru
        _
    $region28: #{rnn_model_forward.6} parent=5 // pred_fallthru
      _
    %p256 = scmp.le.s32.totalorder 1, %s13
    %p257 = scmp.lt.s32.totalorder %s13, 3
    %p258 = pnand %p256, %p257
    %p259 = pneg %p258
    // Predicated region
    $region33: #{rnn_model_forward.6} parent=5 // pred_check
      _
    $region34: #{rnn_model_forward.6} parent=5 // pred_check_branch
      %261 = sbr.rel (%p258) target = $region36
    $region35: #{rnn_model_forward.6} parent=5 // pred_region
      %s262 = ssub.s32 %s13, 1
      %s263 = smul.u32 8, %s23
      %p264 = scmp.lt.s32.totalorder %s263, 15
      %s265 = scalar_select %p264, %s263, 15
      %p266 = scmp.lt.s32.totalorder %s22, 0
      %s267 = scalar_select %p266, %s22, 0
      %s268 = smul.addr %s267, 4
      %s269 = smul.addr %s265, 4
      %s270 = sadd.s32 %s268, %s269
      %s271 = smul.addr %s270, 8
      %s272 = scalar_lea.vmem %s0, %s271
      %p273 = pneg %p53
      %p274 = pneg %p50
      %p275 = pneg %p74
      %p276 = pneg %p71
      %p277 = scmp.lt.s32.totalorder %s22, 0
      %s278 = scalar_select %p277, %s22, 0
      %s279 = smul.addr %s278, 8
      %s280 = scalar_lea.vmem %s2, %s279
      %p281 = pneg %p100
      %p282 = pneg %p97
      %p283 = scmp.lt.s32.totalorder %s22, 0
      %s284 = scalar_select %p283, %s22, 0
      %s285 = smul.addr %s284, 8
      %s286 = scalar_lea.vmem %s3, %s285
      %p287 = pneg %p126
      %p288 = pneg %p123
      %p289 = pneg %p154
      %p290 = pneg %p151
      %s291 = smul.u32 8, %s23
      %p292 = scmp.lt.s32.totalorder %s291, 15
      %s293 = scalar_select %p292, %s291, 15
      %p294 = scmp.lt.s32.totalorder %s22, 0
      %s295 = scalar_select %p294, %s22, 0
      %s296 = sadd.s32 %s295, %s293
      %s297 = smul.addr %s296, 8
      %s298 = scalar_lea.vmem %s4, %s297
      %p299 = pneg %p180
      %p300 = pneg %p177
      %p301 = scmp.lt.s32.totalorder %s22, 0
      %s302 = scalar_select %p301, %s22, 0
      %s303 = smul.addr %s302, 8
      %s304 = scalar_lea.vmem %s5, %s303
      %p305 = pneg %p206
      %p306 = pneg %p203
      %p307 = scmp.lt.s32.totalorder %s22, 0
      %s308 = scalar_select %p307, %s22, 0
      %s309 = smul.addr %s308, 8
      %s310 = scalar_lea.vmem %s6, %s309
      %s311 = smul.u32 8, %s23
      %p312 = scmp.lt.s32.totalorder %s311, 15
      %s313 = scalar_select %p312, %s311, 15
      %p314 = scmp.lt.s32.totalorder %s22, 0
      %s315 = scalar_select %p314, %s22, 0
      %s316 = smul.addr %s315, 4
      %s317 = smul.addr %s313, 4
      %s318 = sadd.s32 %s316, %s317
      %s319 = smul.addr %s318, 8
      %s320 = scalar_lea.vmem %s0, %s319
      %s321 = smul.u32 8, %s23
      %p322 = scmp.lt.s32.totalorder %s22, 0
      %s323 = scalar_select %p322, %s22, 0
      %s324 = smul.addr %s323, 8
      %s325 = scalar_lea.vmem %s2, %s324
      %p326 = scmp.lt.s32.totalorder %s22, 0
      %s327 = scalar_select %p326, %s22, 0
      %s328 = smul.addr %s327, 8
      %s329 = scalar_lea.vmem %s3, %s328
      %s330 = smul.u32 8, %s23
      %p331 = scmp.lt.s32.totalorder %s330, 15
      %s332 = scalar_select %p331, %s330, 15
      %p333 = scmp.lt.s32.totalorder %s22, 0
      %s334 = scalar_select %p333, %s22, 0
      %s335 = sadd.s32 %s334, %s332
      %s336 = smul.addr %s335, 8
      %s337 = scalar_lea.vmem %s4, %s336
      %s338 = smul.u32 8, %s23
      %p339 = scmp.lt.s32.totalorder %s22, 0
      %s340 = scalar_select %p339, %s22, 0
      %s341 = smul.addr %s340, 8
      %s342 = scalar_lea.vmem %s5, %s341
      %p343 = scmp.lt.s32.totalorder %s22, 0
      %s344 = scalar_select %p343, %s22, 0
      %s345 = smul.addr %s344, 8
      %s346 = scalar_lea.vmem %s6, %s345
      %p348 = scmp.eq.s32.totalorder %s23, 0
      // Predicated region
      $region37: #{rnn_model_forward.6} parent=35 // pred_check
        %p349 = pneg %p348
      $region38: #{rnn_model_forward.6} parent=35 // pred_check_branch
        %351 = sbr.rel (%p349) target = $region40
      $region39: #{rnn_model_forward.6} parent=35 // pred_region
        %v352 = vld [vmem:[%s325] sm:$0xff]
        %353 = vst [vmem:[%s342] sm:$0xff] %v352
        %v354 = vld [vmem:[%s329] sm:$0xff]
        %355 = vst [vmem:[%s346] sm:$0xff] %v354
      $region40: #{rnn_model_forward.6} parent=35 // pred_fallthru
        _
      %v356 = vld [vmem:[%s1] sm:$0xff]
      %v357 = vld [vmem:[%s1 + $0x8] sm:$0xff]
      %v358 = vld [vmem:[%s1 + $0x10] sm:$0xff]
      %v359 = vld [vmem:[%s1 + $0x18] sm:$0xff]
      %v360 = vld [vmem:[%s1 + $0x20] sm:$0xff]
      %v361 = vld [vmem:[%s1 + $0x28] sm:$0xff]
      %v362 = vld [vmem:[%s1 + $0x30] sm:$0xff]
      %v363 = vld [vmem:[%s1 + $0x38] sm:$0xff]
      %v364 = vld [vmem:[%s1 + $0x40] sm:$0xff]
      %v365 = vld [vmem:[%s1 + $0x48] sm:$0xff]
      %v366 = vld [vmem:[%s1 + $0x50] sm:$0xff]
      %v367 = vld [vmem:[%s1 + $0x58] sm:$0xff]
      %v368 = vld [vmem:[%s1 + $0x60] sm:$0xff]
      %v369 = vld [vmem:[%s1 + $0x68] sm:$0xff]
      %v370 = vld [vmem:[%s1 + $0x70] sm:$0xff]
      %v371 = vld [vmem:[%s1 + $0x78] sm:$0xff]
      %v372 = vld [vmem:[%s1 + $0x80] sm:$0xff]
      %v373 = vld [vmem:[%s1 + $0x88] sm:$0xff]
      %v374 = vld [vmem:[%s1 + $0x90] sm:$0xff]
      %v375 = vld [vmem:[%s1 + $0x98] sm:$0xff]
      %v376 = vld [vmem:[%s1 + $0xa0] sm:$0xff]
      %v377 = vld [vmem:[%s1 + $0xa8] sm:$0xff]
      %v378 = vld [vmem:[%s1 + $0xb0] sm:$0xff]
      %v379 = vld [vmem:[%s1 + $0xb8] sm:$0xff]
      %v380 = vld [vmem:[%s1 + $0xc0] sm:$0xff]
      %v381 = vld [vmem:[%s1 + $0xc8] sm:$0xff]
      %v382 = vld [vmem:[%s1 + $0xd0] sm:$0xff]
      %v383 = vld [vmem:[%s1 + $0xd8] sm:$0xff]
      %v384 = vld [vmem:[%s1 + $0xe0] sm:$0xff]
      %v385 = vld [vmem:[%s1 + $0xe8] sm:$0xff]
      %v386 = vld [vmem:[%s1 + $0xf0] sm:$0xff]
      %v387 = vld [vmem:[%s1 + $0xf8] sm:$0xff]
      %v388 = vld [vmem:[%s342] sm:$0xff]
      %v389 = vld [vmem:[%s346] sm:$0xff]
      %v390 = vld [vmem:[%s320] sm:$0xff]
      %v391 = vld [vmem:[%s320 + $0x8] sm:$0xff]
      %v392 = vld [vmem:[%s320 + $0x10] sm:$0xff]
      %v393 = vld [vmem:[%s320 + $0x18] sm:$0xff]
      %v394 = vpack.c.bf16 %v388, %v388
      %v427 = vunpack.c.l.b16 %v356
      %v428 = vunpack.c.h.b16 %v356
      %v429 = vunpack.c.l.b16 %v357
      %v430 = vunpack.c.h.b16 %v357
      %v431 = vunpack.c.l.b16 %v358
      %v432 = vunpack.c.h.b16 %v358
      %v433 = vunpack.c.l.b16 %v359
      %v434 = vunpack.c.h.b16 %v359
      %v435 = vunpack.c.l.b16 %v360
      %v436 = vunpack.c.h.b16 %v360
      %v437 = vunpack.c.l.b16 %v361
      %v438 = vunpack.c.h.b16 %v361
      %v439 = vunpack.c.l.b16 %v362
      %v440 = vunpack.c.h.b16 %v362
      %v441 = vunpack.c.l.b16 %v363
      %v442 = vunpack.c.h.b16 %v363
      %v443 = vunpack.c.l.b16 %v364
      %v444 = vunpack.c.h.b16 %v364
      %v445 = vunpack.c.l.b16 %v365
      %v446 = vunpack.c.h.b16 %v365
      %v447 = vunpack.c.l.b16 %v366
      %v448 = vunpack.c.h.b16 %v366
      %v449 = vunpack.c.l.b16 %v367
      %v450 = vunpack.c.h.b16 %v367
      %v451 = vunpack.c.l.b16 %v368
      %v452 = vunpack.c.h.b16 %v368
      %v453 = vunpack.c.l.b16 %v369
      %v454 = vunpack.c.h.b16 %v369
      %v455 = vunpack.c.l.b16 %v370
      %v456 = vunpack.c.h.b16 %v370
      %v457 = vunpack.c.l.b16 %v371
      %v458 = vunpack.c.h.b16 %v371
      %v459 = vunpack.c.l.b16 %v372
      %v460 = vunpack.c.h.b16 %v372
      %v461 = vunpack.c.l.b16 %v373
      %v462 = vunpack.c.h.b16 %v373
      %v463 = vunpack.c.l.b16 %v374
      %v464 = vunpack.c.h.b16 %v374
      %v465 = vunpack.c.l.b16 %v375
      %v466 = vunpack.c.h.b16 %v375
      %v467 = vunpack.c.l.b16 %v376
      %v468 = vunpack.c.h.b16 %v376
      %v469 = vunpack.c.l.b16 %v377
      %v470 = vunpack.c.h.b16 %v377
      %v471 = vunpack.c.l.b16 %v378
      %v472 = vunpack.c.h.b16 %v378
      %v473 = vunpack.c.l.b16 %v379
      %v474 = vunpack.c.h.b16 %v379
      %v475 = vunpack.c.l.b16 %v380
      %v476 = vunpack.c.h.b16 %v380
      %v477 = vunpack.c.l.b16 %v381
      %v478 = vunpack.c.h.b16 %v381
      %v479 = vunpack.c.l.b16 %v382
      %v480 = vunpack.c.h.b16 %v382
      %v481 = vunpack.c.l.b16 %v383
      %v482 = vunpack.c.h.b16 %v383
      %v483 = vunpack.c.l.b16 %v384
      %v484 = vunpack.c.h.b16 %v384
      %v485 = vunpack.c.l.b16 %v385
      %v486 = vunpack.c.h.b16 %v385
      %v487 = vunpack.c.l.b16 %v386
      %v488 = vunpack.c.h.b16 %v386
      %v489 = vunpack.c.l.b16 %v387
      %v490 = vunpack.c.h.b16 %v387
      %v491 = vpack.c.b16 %v431, %v427
      %v492 = vpack.c.b16 %v432, %v428
      %v493 = vpack.c.b16 %v433, %v429
      %v494 = vpack.c.b16 %v434, %v430
      %v495 = vpack.c.b16 %v439, %v435
      %v496 = vpack.c.b16 %v440, %v436
      %v497 = vpack.c.b16 %v441, %v437
      %v498 = vpack.c.b16 %v442, %v438
      %v499 = vpack.c.b16 %v447, %v443
      %v500 = vpack.c.b16 %v448, %v444
      %v501 = vpack.c.b16 %v449, %v445
      %v502 = vpack.c.b16 %v450, %v446
      %v503 = vpack.c.b16 %v455, %v451
      %v504 = vpack.c.b16 %v456, %v452
      %v505 = vpack.c.b16 %v457, %v453
      %v506 = vpack.c.b16 %v458, %v454
      %v507 = vpack.c.b16 %v463, %v459
      %v508 = vpack.c.b16 %v464, %v460
      %v509 = vpack.c.b16 %v465, %v461
      %v510 = vpack.c.b16 %v466, %v462
      %v511 = vpack.c.b16 %v471, %v467
      %v512 = vpack.c.b16 %v472, %v468
      %v513 = vpack.c.b16 %v473, %v469
      %v514 = vpack.c.b16 %v474, %v470
      %v515 = vpack.c.b16 %v479, %v475
      %v516 = vpack.c.b16 %v480, %v476
      %v517 = vpack.c.b16 %v481, %v477
      %v518 = vpack.c.b16 %v482, %v478
      %v519 = vpack.c.b16 %v487, %v483
      %v520 = vpack.c.b16 %v488, %v484
      %v521 = vpack.c.b16 %v489, %v485
      %v522 = vpack.c.b16 %v490, %v486
      %555 = vmatprep.subr.bf16.mxu0 %v492
      %556 = vmatpush1.bf16.msra.mxu0 %v491
      %557 = vmatprep.subr.bf16.mxu0 %v496
      %558 = vmatpush1.bf16.msra.mxu0 %v495
      %559 = vmatprep.subr.bf16.mxu0 %v500
      %560 = vmatpush1.bf16.msra.mxu0 %v499
      %561 = vmatprep.subr.bf16.mxu0 %v504
      %562 = vmatpush1.bf16.msra.mxu0 %v503
      %563 = vmatprep.subr.bf16.mxu0 %v508
      %564 = vmatpush1.bf16.msra.mxu0 %v507
      %565 = vmatprep.subr.bf16.mxu0 %v512
      %566 = vmatpush1.bf16.msra.mxu0 %v511
      %567 = vmatprep.subr.bf16.mxu0 %v516
      %568 = vmatpush1.bf16.msra.mxu0 %v515
      %569 = vmatprep.subr.bf16.mxu0 %v520
      %570 = vmatpush1.bf16.msra.mxu0 %v519
      %571 = vmatprep.subr.bf16.mxu0 0
      %572 = vmatpush1.bf16.msra.mxu0 0
      %573 = vmatprep.subr.bf16.mxu0 0
      %574 = vmatpush1.bf16.msra.mxu0 0
      %575 = vmatprep.subr.bf16.mxu0 0
      %576 = vmatpush1.bf16.msra.mxu0 0
      %577 = vmatprep.subr.bf16.mxu0 0
      %578 = vmatpush1.bf16.msra.mxu0 0
      %579 = vmatprep.subr.bf16.mxu0 0
      %580 = vmatpush1.bf16.msra.mxu0 0
      %581 = vmatprep.subr.bf16.mxu0 0
      %582 = vmatpush1.bf16.msra.mxu0 0
      %583 = vmatprep.subr.bf16.mxu0 0
      %584 = vmatpush1.bf16.msra.mxu0 0
      %585 = vmatprep.subr.bf16.mxu0 0
      %586 = vmatpush1.bf16.msra.mxu0 0
      %587 = vmatprep.mubr.bf16.mxu0 0
      %588 = vmatmul.mubr.bf16.gmra.mrb[0].mxu0 %v394
      %v589 = vpop.f32.mrb[0].mxu0
      %v590 = vadd.f32 0.0, %v589
      %v591 = vpop.f32.mrb[0].mxu0
      %v592 = vadd.f32 0.0, %v591
      %v593 = vpop.f32.mrb[0].mxu0
      %v594 = vpop.f32.mrb[0].mxu0
      %595 = vdwg.mxu0
      %596 = vmatprep.subr.bf16.mxu0 %v494
      %597 = vmatpush1.bf16.msra.mxu0 %v493
      %598 = vmatprep.subr.bf16.mxu0 %v498
      %599 = vmatpush1.bf16.msra.mxu0 %v497
      %600 = vmatprep.subr.bf16.mxu0 %v502
      %601 = vmatpush1.bf16.msra.mxu0 %v501
      %602 = vmatprep.subr.bf16.mxu0 %v506
      %603 = vmatpush1.bf16.msra.mxu0 %v505
      %604 = vmatprep.subr.bf16.mxu0 %v510
      %605 = vmatpush1.bf16.msra.mxu0 %v509
      %606 = vmatprep.subr.bf16.mxu0 %v514
      %607 = vmatpush1.bf16.msra.mxu0 %v513
      %608 = vmatprep.subr.bf16.mxu0 %v518
      %609 = vmatpush1.bf16.msra.mxu0 %v517
      %610 = vmatprep.subr.bf16.mxu0 %v522
      %611 = vmatpush1.bf16.msra.mxu0 %v521
      %612 = vmatprep.subr.bf16.mxu0 0
      %613 = vmatpush1.bf16.msra.mxu0 0
      %614 = vmatprep.subr.bf16.mxu0 0
      %615 = vmatpush1.bf16.msra.mxu0 0
      %616 = vmatprep.subr.bf16.mxu0 0
      %617 = vmatpush1.bf16.msra.mxu0 0
      %618 = vmatprep.subr.bf16.mxu0 0
      %619 = vmatpush1.bf16.msra.mxu0 0
      %620 = vmatprep.subr.bf16.mxu0 0
      %621 = vmatpush1.bf16.msra.mxu0 0
      %622 = vmatprep.subr.bf16.mxu0 0
      %623 = vmatpush1.bf16.msra.mxu0 0
      %624 = vmatprep.subr.bf16.mxu0 0
      %625 = vmatpush1.bf16.msra.mxu0 0
      %626 = vmatprep.subr.bf16.mxu0 0
      %627 = vmatpush1.bf16.msra.mxu0 0
      %628 = vmatprep.mubr.bf16.mxu0 0
      %629 = vmatmul.mubr.bf16.gmra.mrb[0].mxu0 %v394
      %v630 = vpop.f32.mrb[0].mxu0
      %v631 = vadd.f32 0.0, %v630
      %v632 = vpop.f32.mrb[0].mxu0
      %v633 = vadd.f32 0.0, %v632
      %v634 = vpop.f32.mrb[0].mxu0
      %v635 = vpop.f32.mrb[0].mxu0
      %636 = vdwg.mxu0
      %v637 = vadd.f32 %v390, %v590
      %v638 = vadd.f32 %v391, %v592
      %v639 = vadd.f32 %v392, %v631
      %v640 = vadd.f32 %v393, %v633
      %v641 = vxor.u32 %v637, 2147483648
      %v642 = vmul.f32 %v641, 1.442695
      %v643 = vpow.pop %v642
      %v644 = vadd.f32 %v643, 1.0
      %v645 = vrcp.pop %v644
      %v646 = vmul.f32 1.0, %v645
      %v647 = vxor.u32 %v638, 2147483648
      %v648 = vmul.f32 %v647, 1.442695
      %v649 = vpow.pop %v648
      %v650 = vadd.f32 %v649, 1.0
      %v651 = vrcp.pop %v650
      %v652 = vmul.f32 1.0, %v651
      %v653 = vtanh.pop %v639
      %v654 = vxor.u32 %v640, 2147483648
      %v655 = vmul.f32 %v654, 1.442695
      %v656 = vpow.pop %v655
      %v657 = vadd.f32 %v656, 1.0
      %v658 = vrcp.pop %v657
      %v659 = vmul.f32 1.0, %v658
      %v660 = vmul.f32 %v652, %v389
      %v661 = vmul.f32 %v646, %v653
      %v662 = vadd.f32 %v660, %v661
      %v663 = vtanh.pop %v662
      %v664 = vmul.f32 %v659, %v663
      %665 = vst [vmem:[%s342] sm:$0xff] %v664
      %666 = vst [vmem:[%s346] sm:$0xff] %v662
      %667 = vst [vmem:[%s337] sm:$0xff] %v664
      %v668 = vld [vmem:[%s342] sm:$0xff]
      %v669 = vld [vmem:[%s346] sm:$0xff]
      %s670 = scalar_lea.vmem %s320, 32
      %v671 = vld [vmem:[%s670] sm:$0xff]
      %v672 = vld [vmem:[%s670 + $0x8] sm:$0xff]
      %v673 = vld [vmem:[%s670 + $0x10] sm:$0xff]
      %v674 = vld [vmem:[%s670 + $0x18] sm:$0xff]
      %v675 = vpack.c.bf16 %v668, %v668
      %676 = vmatprep.subr.bf16.mxu0 %v492
      %677 = vmatpush1.bf16.msra.mxu0 %v491
      %678 = vmatprep.subr.bf16.mxu0 %v496
      %679 = vmatpush1.bf16.msra.mxu0 %v495
      %680 = vmatprep.subr.bf16.mxu0 %v500
      %681 = vmatpush1.bf16.msra.mxu0 %v499
      %682 = vmatprep.subr.bf16.mxu0 %v504
      %683 = vmatpush1.bf16.msra.mxu0 %v503
      %684 = vmatprep.subr.bf16.mxu0 %v508
      %685 = vmatpush1.bf16.msra.mxu0 %v507
      %686 = vmatprep.subr.bf16.mxu0 %v512
      %687 = vmatpush1.bf16.msra.mxu0 %v511
      %688 = vmatprep.subr.bf16.mxu0 %v516
      %689 = vmatpush1.bf16.msra.mxu0 %v515
      %690 = vmatprep.subr.bf16.mxu0 %v520
      %691 = vmatpush1.bf16.msra.mxu0 %v519
      %692 = vmatprep.subr.bf16.mxu0 0
      %693 = vmatpush1.bf16.msra.mxu0 0
      %694 = vmatprep.subr.bf16.mxu0 0
      %695 = vmatpush1.bf16.msra.mxu0 0
      %696 = vmatprep.subr.bf16.mxu0 0
      %697 = vmatpush1.bf16.msra.mxu0 0
      %698 = vmatprep.subr.bf16.mxu0 0
      %699 = vmatpush1.bf16.msra.mxu0 0
      %700 = vmatprep.subr.bf16.mxu0 0
      %701 = vmatpush1.bf16.msra.mxu0 0
      %702 = vmatprep.subr.bf16.mxu0 0
      %703 = vmatpush1.bf16.msra.mxu0 0
      %704 = vmatprep.subr.bf16.mxu0 0
      %705 = vmatpush1.bf16.msra.mxu0 0
      %706 = vmatprep.subr.bf16.mxu0 0
      %707 = vmatpush1.bf16.msra.mxu0 0
      %708 = vmatprep.mubr.bf16.mxu0 0
      %709 = vmatmul.mubr.bf16.gmra.mrb[0].mxu0 %v675
      %v710 = vpop.f32.mrb[0].mxu0
      %v711 = vadd.f32 0.0, %v710
      %v712 = vpop.f32.mrb[0].mxu0
      %v713 = vadd.f32 0.0, %v712
      %v714 = vpop.f32.mrb[0].mxu0
      %v715 = vpop.f32.mrb[0].mxu0
      %716 = vdwg.mxu0
      %717 = vmatprep.subr.bf16.mxu0 %v494
      %718 = vmatpush1.bf16.msra.mxu0 %v493
      %719 = vmatprep.subr.bf16.mxu0 %v498
      %720 = vmatpush1.bf16.msra.mxu0 %v497
      %721 = vmatprep.subr.bf16.mxu0 %v502
      %722 = vmatpush1.bf16.msra.mxu0 %v501
      %723 = vmatprep.subr.bf16.mxu0 %v506
      %724 = vmatpush1.bf16.msra.mxu0 %v505
      %725 = vmatprep.subr.bf16.mxu0 %v510
      %726 = vmatpush1.bf16.msra.mxu0 %v509
      %727 = vmatprep.subr.bf16.mxu0 %v514
      %728 = vmatpush1.bf16.msra.mxu0 %v513
      %729 = vmatprep.subr.bf16.mxu0 %v518
      %730 = vmatpush1.bf16.msra.mxu0 %v517
      %731 = vmatprep.subr.bf16.mxu0 %v522
      %732 = vmatpush1.bf16.msra.mxu0 %v521
      %733 = vmatprep.subr.bf16.mxu0 0
      %734 = vmatpush1.bf16.msra.mxu0 0
      %735 = vmatprep.subr.bf16.mxu0 0
      %736 = vmatpush1.bf16.msra.mxu0 0
      %737 = vmatprep.subr.bf16.mxu0 0
      %738 = vmatpush1.bf16.msra.mxu0 0
      %739 = vmatprep.subr.bf16.mxu0 0
      %740 = vmatpush1.bf16.msra.mxu0 0
      %741 = vmatprep.subr.bf16.mxu0 0
      %742 = vmatpush1.bf16.msra.mxu0 0
      %743 = vmatprep.subr.bf16.mxu0 0
      %744 = vmatpush1.bf16.msra.mxu0 0
      %745 = vmatprep.subr.bf16.mxu0 0
      %746 = vmatpush1.bf16.msra.mxu0 0
      %747 = vmatprep.subr.bf16.mxu0 0
      %748 = vmatpush1.bf16.msra.mxu0 0
      %749 = vmatprep.mubr.bf16.mxu0 0
      %750 = vmatmul.mubr.bf16.gmra.mrb[0].mxu0 %v675
      %v751 = vpop.f32.mrb[0].mxu0
      %v752 = vadd.f32 0.0, %v751
      %v753 = vpop.f32.mrb[0].mxu0
      %v754 = vadd.f32 0.0, %v753
      %v755 = vpop.f32.mrb[0].mxu0
      %v756 = vpop.f32.mrb[0].mxu0
      %757 = vdwg.mxu0
      %v758 = vadd.f32 %v671, %v711
      %v759 = vadd.f32 %v672, %v713
      %v760 = vadd.f32 %v673, %v752
      %v761 = vadd.f32 %v674, %v754
      %v762 = vxor.u32 %v758, 2147483648
      %v763 = vmul.f32 %v762, 1.442695
      %v764 = vpow.pop %v763
      %v765 = vadd.f32 %v764, 1.0
      %v766 = vrcp.pop %v765
      %v767 = vmul.f32 1.0, %v766
      %v768 = vxor.u32 %v759, 2147483648
      %v769 = vmul.f32 %v768, 1.442695
      %v770 = vpow.pop %v769
      %v771 = vadd.f32 %v770, 1.0
      %v772 = vrcp.pop %v771
      %v773 = vmul.f32 1.0, %v772
      %v774 = vtanh.pop %v760
      %v775 = vxor.u32 %v761, 2147483648
      %v776 = vmul.f32 %v775, 1.442695
      %v777 = vpow.pop %v776
      %v778 = vadd.f32 %v777, 1.0
      %v779 = vrcp.pop %v778
      %v780 = vmul.f32 1.0, %v779
      %v781 = vmul.f32 %v773, %v669
      %v782 = vmul.f32 %v767, %v774
      %v783 = vadd.f32 %v781, %v782
      %v784 = vtanh.pop %v783
      %v785 = vmul.f32 %v780, %v784
      %786 = vst [vmem:[%s342] sm:$0xff] %v785
      %787 = vst [vmem:[%s346] sm:$0xff] %v783
      %s788 = scalar_lea.vmem %s337, 8
      %789 = vst [vmem:[%s788] sm:$0xff] %v785
      %v790 = vld [vmem:[%s342] sm:$0xff]
      %v791 = vld [vmem:[%s346] sm:$0xff]
      %s792 = scalar_lea.vmem %s320, 64
      %v793 = vld [vmem:[%s792] sm:$0xff]
      %v794 = vld [vmem:[%s792 + $0x8] sm:$0xff]
      %v795 = vld [vmem:[%s792 + $0x10] sm:$0xff]
      %v796 = vld [vmem:[%s792 + $0x18] sm:$0xff]
      %v797 = vpack.c.bf16 %v790, %v790
      %798 = vmatprep.subr.bf16.mxu0 %v492
      %799 = vmatpush1.bf16.msra.mxu0 %v491
      %800 = vmatprep.subr.bf16.mxu0 %v496
      %801 = vmatpush1.bf16.msra.mxu0 %v495
      %802 = vmatprep.subr.bf16.mxu0 %v500
      %803 = vmatpush1.bf16.msra.mxu0 %v499
      %804 = vmatprep.subr.bf16.mxu0 %v504
      %805 = vmatpush1.bf16.msra.mxu0 %v503
      %806 = vmatprep.subr.bf16.mxu0 %v508
      %807 = vmatpush1.bf16.msra.mxu0 %v507
      %808 = vmatprep.subr.bf16.mxu0 %v512
      %809 = vmatpush1.bf16.msra.mxu0 %v511
      %810 = vmatprep.subr.bf16.mxu0 %v516
      %811 = vmatpush1.bf16.msra.mxu0 %v515
      %812 = vmatprep.subr.bf16.mxu0 %v520
      %813 = vmatpush1.bf16.msra.mxu0 %v519
      %814 = vmatprep.subr.bf16.mxu0 0
      %815 = vmatpush1.bf16.msra.mxu0 0
      %816 = vmatprep.subr.bf16.mxu0 0
      %817 = vmatpush1.bf16.msra.mxu0 0
      %818 = vmatprep.subr.bf16.mxu0 0
      %819 = vmatpush1.bf16.msra.mxu0 0
      %820 = vmatprep.subr.bf16.mxu0 0
      %821 = vmatpush1.bf16.msra.mxu0 0
      %822 = vmatprep.subr.bf16.mxu0 0
      %823 = vmatpush1.bf16.msra.mxu0 0
      %824 = vmatprep.subr.bf16.mxu0 0
      %825 = vmatpush1.bf16.msra.mxu0 0
      %826 = vmatprep.subr.bf16.mxu0 0
      %827 = vmatpush1.bf16.msra.mxu0 0
      %828 = vmatprep.subr.bf16.mxu0 0
      %829 = vmatpush1.bf16.msra.mxu0 0
      %830 = vmatprep.mubr.bf16.mxu0 0
      %831 = vmatmul.mubr.bf16.gmra.mrb[0].mxu0 %v797
      %v832 = vpop.f32.mrb[0].mxu0
      %v833 = vadd.f32 0.0, %v832
      %v834 = vpop.f32.mrb[0].mxu0
      %v835 = vadd.f32 0.0, %v834
      %v836 = vpop.f32.mrb[0].mxu0
      %v837 = vpop.f32.mrb[0].mxu0
      %838 = vdwg.mxu0
      %839 = vmatprep.subr.bf16.mxu0 %v494
      %840 = vmatpush1.bf16.msra.mxu0 %v493
      %841 = vmatprep.subr.bf16.mxu0 %v498
      %842 = vmatpush1.bf16.msra.mxu0 %v497
      %843 = vmatprep.subr.bf16.mxu0 %v502
      %844 = vmatpush1.bf16.msra.mxu0 %v501
      %845 = vmatprep.subr.bf16.mxu0 %v506
      %846 = vmatpush1.bf16.msra.mxu0 %v505
      %847 = vmatprep.subr.bf16.mxu0 %v510
      %848 = vmatpush1.bf16.msra.mxu0 %v509
      %849 = vmatprep.subr.bf16.mxu0 %v514
      %850 = vmatpush1.bf16.msra.mxu0 %v513
      %851 = vmatprep.subr.bf16.mxu0 %v518
      %852 = vmatpush1.bf16.msra.mxu0 %v517
      %853 = vmatprep.subr.bf16.mxu0 %v522
      %854 = vmatpush1.bf16.msra.mxu0 %v521
      %855 = vmatprep.subr.bf16.mxu0 0
      %856 = vmatpush1.bf16.msra.mxu0 0
      %857 = vmatprep.subr.bf16.mxu0 0
      %858 = vmatpush1.bf16.msra.mxu0 0
      %859 = vmatprep.subr.bf16.mxu0 0
      %860 = vmatpush1.bf16.msra.mxu0 0
      %861 = vmatprep.subr.bf16.mxu0 0
      %862 = vmatpush1.bf16.msra.mxu0 0
      %863 = vmatprep.subr.bf16.mxu0 0
      %864 = vmatpush1.bf16.msra.mxu0 0
      %865 = vmatprep.subr.bf16.mxu0 0
      %866 = vmatpush1.bf16.msra.mxu0 0
      %867 = vmatprep.subr.bf16.mxu0 0
      %868 = vmatpush1.bf16.msra.mxu0 0
      %869 = vmatprep.subr.bf16.mxu0 0
      %870 = vmatpush1.bf16.msra.mxu0 0
      %871 = vmatprep.mubr.bf16.mxu0 0
      %872 = vmatmul.mubr.bf16.gmra.mrb[0].mxu0 %v797
      %v873 = vpop.f32.mrb[0].mxu0
      %v874 = vadd.f32 0.0, %v873
      %v875 = vpop.f32.mrb[0].mxu0
      %v876 = vadd.f32 0.0, %v875
      %v877 = vpop.f32.mrb[0].mxu0
      %v878 = vpop.f32.mrb[0].mxu0
      %879 = vdwg.mxu0
      %v880 = vadd.f32 %v793, %v833
      %v881 = vadd.f32 %v794, %v835
      %v882 = vadd.f32 %v795, %v874
      %v883 = vadd.f32 %v796, %v876
      %v884 = vxor.u32 %v880, 2147483648
      %v885 = vmul.f32 %v884, 1.442695
      %v886 = vpow.pop %v885
      %v887 = vadd.f32 %v886, 1.0
      %v888 = vrcp.pop %v887
      %v889 = vmul.f32 1.0, %v888
      %v890 = vxor.u32 %v881, 2147483648
      %v891 = vmul.f32 %v890, 1.442695
      %v892 = vpow.pop %v891
      %v893 = vadd.f32 %v892, 1.0
      %v894 = vrcp.pop %v893
      %v895 = vmul.f32 1.0, %v894
      %v896 = vtanh.pop %v882
      %v897 = vxor.u32 %v883, 2147483648
      %v898 = vmul.f32 %v897, 1.442695
      %v899 = vpow.pop %v898
      %v900 = vadd.f32 %v899, 1.0
      %v901 = vrcp.pop %v900
      %v902 = vmul.f32 1.0, %v901
      %v903 = vmul.f32 %v895, %v791
      %v904 = vmul.f32 %v889, %v896
      %v905 = vadd.f32 %v903, %v904
      %v906 = vtanh.pop %v905
      %v907 = vmul.f32 %v902, %v906
      %908 = vst [vmem:[%s342] sm:$0xff] %v907
      %909 = vst [vmem:[%s346] sm:$0xff] %v905
      %s910 = scalar_lea.vmem %s337, 16
      %911 = vst [vmem:[%s910] sm:$0xff] %v907
      %v912 = vld [vmem:[%s342] sm:$0xff]
      %v913 = vld [vmem:[%s346] sm:$0xff]
      %s914 = scalar_lea.vmem %s320, 96
      %v915 = vld [vmem:[%s914] sm:$0xff]
      %v916 = vld [vmem:[%s914 + $0x8] sm:$0xff]
      %v917 = vld [vmem:[%s914 + $0x10] sm:$0xff]
      %v918 = vld [vmem:[%s914 + $0x18] sm:$0xff]
      %v919 = vpack.c.bf16 %v912, %v912
      %920 = vmatprep.subr.bf16.mxu0 %v492
      %921 = vmatpush1.bf16.msra.mxu0 %v491
      %922 = vmatprep.subr.bf16.mxu0 %v496
      %923 = vmatpush1.bf16.msra.mxu0 %v495
      %924 = vmatprep.subr.bf16.mxu0 %v500
      %925 = vmatpush1.bf16.msra.mxu0 %v499
      %926 = vmatprep.subr.bf16.mxu0 %v504
      %927 = vmatpush1.bf16.msra.mxu0 %v503
      %928 = vmatprep.subr.bf16.mxu0 %v508
      %929 = vmatpush1.bf16.msra.mxu0 %v507
      %930 = vmatprep.subr.bf16.mxu0 %v512
      %931 = vmatpush1.bf16.msra.mxu0 %v511
      %932 = vmatprep.subr.bf16.mxu0 %v516
      %933 = vmatpush1.bf16.msra.mxu0 %v515
      %934 = vmatprep.subr.bf16.mxu0 %v520
      %935 = vmatpush1.bf16.msra.mxu0 %v519
      %936 = vmatprep.subr.bf16.mxu0 0
      %937 = vmatpush1.bf16.msra.mxu0 0
      %938 = vmatprep.subr.bf16.mxu0 0
      %939 = vmatpush1.bf16.msra.mxu0 0
      %940 = vmatprep.subr.bf16.mxu0 0
      %941 = vmatpush1.bf16.msra.mxu0 0
      %942 = vmatprep.subr.bf16.mxu0 0
      %943 = vmatpush1.bf16.msra.mxu0 0
      %944 = vmatprep.subr.bf16.mxu0 0
      %945 = vmatpush1.bf16.msra.mxu0 0
      %946 = vmatprep.subr.bf16.mxu0 0
      %947 = vmatpush1.bf16.msra.mxu0 0
      %948 = vmatprep.subr.bf16.mxu0 0
      %949 = vmatpush1.bf16.msra.mxu0 0
      %950 = vmatprep.subr.bf16.mxu0 0
      %951 = vmatpush1.bf16.msra.mxu0 0
      %952 = vmatprep.mubr.bf16.mxu0 0
      %953 = vmatmul.mubr.bf16.gmra.mrb[0].mxu0 %v919
      %v954 = vpop.f32.mrb[0].mxu0
      %v955 = vadd.f32 0.0, %v954
      %v956 = vpop.f32.mrb[0].mxu0
      %v957 = vadd.f32 0.0, %v956
      %v958 = vpop.f32.mrb[0].mxu0
      %v959 = vpop.f32.mrb[0].mxu0
      %960 = vdwg.mxu0
      %961 = vmatprep.subr.bf16.mxu0 %v494
      %962 = vmatpush1.bf16.msra.mxu0 %v493
      %963 = vmatprep.subr.bf16.mxu0 %v498
      %964 = vmatpush1.bf16.msra.mxu0 %v497
      %965 = vmatprep.subr.bf16.mxu0 %v502
      %966 = vmatpush1.bf16.msra.mxu0 %v501
      %967 = vmatprep.subr.bf16.mxu0 %v506
      %968 = vmatpush1.bf16.msra.mxu0 %v505
      %969 = vmatprep.subr.bf16.mxu0 %v510
      %970 = vmatpush1.bf16.msra.mxu0 %v509
      %971 = vmatprep.subr.bf16.mxu0 %v514
      %972 = vmatpush1.bf16.msra.mxu0 %v513
      %973 = vmatprep.subr.bf16.mxu0 %v518
      %974 = vmatpush1.bf16.msra.mxu0 %v517
      %975 = vmatprep.subr.bf16.mxu0 %v522
      %976 = vmatpush1.bf16.msra.mxu0 %v521
      %977 = vmatprep.subr.bf16.mxu0 0
      %978 = vmatpush1.bf16.msra.mxu0 0
      %979 = vmatprep.subr.bf16.mxu0 0
      %980 = vmatpush1.bf16.msra.mxu0 0
      %981 = vmatprep.subr.bf16.mxu0 0
      %982 = vmatpush1.bf16.msra.mxu0 0
      %983 = vmatprep.subr.bf16.mxu0 0
      %984 = vmatpush1.bf16.msra.mxu0 0
      %985 = vmatprep.subr.bf16.mxu0 0
      %986 = vmatpush1.bf16.msra.mxu0 0
      %987 = vmatprep.subr.bf16.mxu0 0
      %988 = vmatpush1.bf16.msra.mxu0 0
      %989 = vmatprep.subr.bf16.mxu0 0
      %990 = vmatpush1.bf16.msra.mxu0 0
      %991 = vmatprep.subr.bf16.mxu0 0
      %992 = vmatpush1.bf16.msra.mxu0 0
      %993 = vmatprep.mubr.bf16.mxu0 0
      %994 = vmatmul.mubr.bf16.gmra.mrb[0].mxu0 %v919
      %v995 = vpop.f32.mrb[0].mxu0
      %v996 = vadd.f32 0.0, %v995
      %v997 = vpop.f32.mrb[0].mxu0
      %v998 = vadd.f32 0.0, %v997
      %v999 = vpop.f32.mrb[0].mxu0
      %v1000 = vpop.f32.mrb[0].mxu0
      %1001 = vdwg.mxu0
      %v1002 = vadd.f32 %v915, %v955
      %v1003 = vadd.f32 %v916, %v957
      %v1004 = vadd.f32 %v917, %v996
      %v1005 = vadd.f32 %v918, %v998
      %v1006 = vxor.u32 %v1002, 2147483648
      %v1007 = vmul.f32 %v1006, 1.442695
      %v1008 = vpow.pop %v1007
      %v1009 = vadd.f32 %v1008, 1.0
      %v1010 = vrcp.pop %v1009
      %v1011 = vmul.f32 1.0, %v1010
      %v1012 = vxor.u32 %v1003, 2147483648
      %v1013 = vmul.f32 %v1012, 1.442695
      %v1014 = vpow.pop %v1013
      %v1015 = vadd.f32 %v1014, 1.0
      %v1016 = vrcp.pop %v1015
      %v1017 = vmul.f32 1.0, %v1016
      %v1018 = vtanh.pop %v1004
      %v1019 = vxor.u32 %v1005, 2147483648
      %v1020 = vmul.f32 %v1019, 1.442695
      %v1021 = vpow.pop %v1020
      %v1022 = vadd.f32 %v1021, 1.0
      %v1023 = vrcp.pop %v1022
      %v1024 = vmul.f32 1.0, %v1023
      %v1025 = vmul.f32 %v1017, %v913
      %v1026 = vmul.f32 %v1011, %v1018
      %v1027 = vadd.f32 %v1025, %v1026
      %v1028 = vtanh.pop %v1027
      %v1029 = vmul.f32 %v1024, %v1028
      %1030 = vst [vmem:[%s342] sm:$0xff] %v1029
      %1031 = vst [vmem:[%s346] sm:$0xff] %v1027
      %s1032 = scalar_lea.vmem %s337, 24
      %1033 = vst [vmem:[%s1032] sm:$0xff] %v1029
      %v1034 = vld [vmem:[%s342] sm:$0xff]
      %v1035 = vld [vmem:[%s346] sm:$0xff]
      %s1036 = scalar_lea.vmem %s320, 128
      %v1037 = vld [vmem:[%s1036] sm:$0xff]
      %v1038 = vld [vmem:[%s1036 + $0x8] sm:$0xff]
      %v1039 = vld [vmem:[%s1036 + $0x10] sm:$0xff]
      %v1040 = vld [vmem:[%s1036 + $0x18] sm:$0xff]
      %v1041 = vpack.c.bf16 %v1034, %v1034
      %1042 = vmatprep.subr.bf16.mxu0 %v492
      %1043 = vmatpush1.bf16.msra.mxu0 %v491
      %1044 = vmatprep.subr.bf16.mxu0 %v496
      %1045 = vmatpush1.bf16.msra.mxu0 %v495
      %1046 = vmatprep.subr.bf16.mxu0 %v500
      %1047 = vmatpush1.bf16.msra.mxu0 %v499
      %1048 = vmatprep.subr.bf16.mxu0 %v504
      %1049 = vmatpush1.bf16.msra.mxu0 %v503
      %1050 = vmatprep.subr.bf16.mxu0 %v508
      %1051 = vmatpush1.bf16.msra.mxu0 %v507
      %1052 = vmatprep.subr.bf16.mxu0 %v512
      %1053 = vmatpush1.bf16.msra.mxu0 %v511
      %1054 = vmatprep.subr.bf16.mxu0 %v516
      %1055 = vmatpush1.bf16.msra.mxu0 %v515
      %1056 = vmatprep.subr.bf16.mxu0 %v520
      %1057 = vmatpush1.bf16.msra.mxu0 %v519
      %1058 = vmatprep.subr.bf16.mxu0 0
      %1059 = vmatpush1.bf16.msra.mxu0 0
      %1060 = vmatprep.subr.bf16.mxu0 0
      %1061 = vmatpush1.bf16.msra.mxu0 0
      %1062 = vmatprep.subr.bf16.mxu0 0
      %1063 = vmatpush1.bf16.msra.mxu0 0
      %1064 = vmatprep.subr.bf16.mxu0 0
      %1065 = vmatpush1.bf16.msra.mxu0 0
      %1066 = vmatprep.subr.bf16.mxu0 0
      %1067 = vmatpush1.bf16.msra.mxu0 0
      %1068 = vmatprep.subr.bf16.mxu0 0
      %1069 = vmatpush1.bf16.msra.mxu0 0
      %1070 = vmatprep.subr.bf16.mxu0 0
      %1071 = vmatpush1.bf16.msra.mxu0 0
      %1072 = vmatprep.subr.bf16.mxu0 0
      %1073 = vmatpush1.bf16.msra.mxu0 0
      %1074 = vmatprep.mubr.bf16.mxu0 0
      %1075 = vmatmul.mubr.bf16.gmra.mrb[0].mxu0 %v1041
      %v1076 = vpop.f32.mrb[0].mxu0
      %v1077 = vadd.f32 0.0, %v1076
      %v1078 = vpop.f32.mrb[0].mxu0
      %v1079 = vadd.f32 0.0, %v1078
      %v1080 = vpop.f32.mrb[0].mxu0
      %v1081 = vpop.f32.mrb[0].mxu0
      %1082 = vdwg.mxu0
      %1083 = vmatprep.subr.bf16.mxu0 %v494
      %1084 = vmatpush1.bf16.msra.mxu0 %v493
      %1085 = vmatprep.subr.bf16.mxu0 %v498
      %1086 = vmatpush1.bf16.msra.mxu0 %v497
      %1087 = vmatprep.subr.bf16.mxu0 %v502
      %1088 = vmatpush1.bf16.msra.mxu0 %v501
      %1089 = vmatprep.subr.bf16.mxu0 %v506
      %1090 = vmatpush1.bf16.msra.mxu0 %v505
      %1091 = vmatprep.subr.bf16.mxu0 %v510
      %1092 = vmatpush1.bf16.msra.mxu0 %v509
      %1093 = vmatprep.subr.bf16.mxu0 %v514
      %1094 = vmatpush1.bf16.msra.mxu0 %v513
      %1095 = vmatprep.subr.bf16.mxu0 %v518
      %1096 = vmatpush1.bf16.msra.mxu0 %v517
      %1097 = vmatprep.subr.bf16.mxu0 %v522
      %1098 = vmatpush1.bf16.msra.mxu0 %v521
      %1099 = vmatprep.subr.bf16.mxu0 0
      %1100 = vmatpush1.bf16.msra.mxu0 0
      %1101 = vmatprep.subr.bf16.mxu0 0
      %1102 = vmatpush1.bf16.msra.mxu0 0
      %1103 = vmatprep.subr.bf16.mxu0 0
      %1104 = vmatpush1.bf16.msra.mxu0 0
      %1105 = vmatprep.subr.bf16.mxu0 0
      %1106 = vmatpush1.bf16.msra.mxu0 0
      %1107 = vmatprep.subr.bf16.mxu0 0
      %1108 = vmatpush1.bf16.msra.mxu0 0
      %1109 = vmatprep.subr.bf16.mxu0 0
      %1110 = vmatpush1.bf16.msra.mxu0 0
      %1111 = vmatprep.subr.bf16.mxu0 0
      %1112 = vmatpush1.bf16.msra.mxu0 0
      %1113 = vmatprep.subr.bf16.mxu0 0
      %1114 = vmatpush1.bf16.msra.mxu0 0
      %1115 = vmatprep.mubr.bf16.mxu0 0
      %1116 = vmatmul.mubr.bf16.gmra.mrb[0].mxu0 %v1041
      %v1117 = vpop.f32.mrb[0].mxu0
      %v1118 = vadd.f32 0.0, %v1117
      %v1119 = vpop.f32.mrb[0].mxu0
      %v1120 = vadd.f32 0.0, %v1119
      %v1121 = vpop.f32.mrb[0].mxu0
      %v1122 = vpop.f32.mrb[0].mxu0
      %1123 = vdwg.mxu0
      %v1124 = vadd.f32 %v1037, %v1077
      %v1125 = vadd.f32 %v1038, %v1079
      %v1126 = vadd.f32 %v1039, %v1118
      %v1127 = vadd.f32 %v1040, %v1120
      %v1128 = vxor.u32 %v1124, 2147483648
      %v1129 = vmul.f32 %v1128, 1.442695
      %v1130 = vpow.pop %v1129
      %v1131 = vadd.f32 %v1130, 1.0
      %v1132 = vrcp.pop %v1131
      %v1133 = vmul.f32 1.0, %v1132
      %v1134 = vxor.u32 %v1125, 2147483648
      %v1135 = vmul.f32 %v1134, 1.442695
      %v1136 = vpow.pop %v1135
      %v1137 = vadd.f32 %v1136, 1.0
      %v1138 = vrcp.pop %v1137
      %v1139 = vmul.f32 1.0, %v1138
      %v1140 = vtanh.pop %v1126
      %v1141 = vxor.u32 %v1127, 2147483648
      %v1142 = vmul.f32 %v1141, 1.442695
      %v1143 = vpow.pop %v1142
      %v1144 = vadd.f32 %v1143, 1.0
      %v1145 = vrcp.pop %v1144
      %v1146 = vmul.f32 1.0, %v1145
      %v1147 = vmul.f32 %v1139, %v1035
      %v1148 = vmul.f32 %v1133, %v1140
      %v1149 = vadd.f32 %v1147, %v1148
      %v1150 = vtanh.pop %v1149
      %v1151 = vmul.f32 %v1146, %v1150
      %1152 = vst [vmem:[%s342] sm:$0xff] %v1151
      %1153 = vst [vmem:[%s346] sm:$0xff] %v1149
      %s1154 = scalar_lea.vmem %s337, 32
      %1155 = vst [vmem:[%s1154] sm:$0xff] %v1151
      %v1156 = vld [vmem:[%s342] sm:$0xff]
      %v1157 = vld [vmem:[%s346] sm:$0xff]
      %s1158 = scalar_lea.vmem %s320, 160
      %v1159 = vld [vmem:[%s1158] sm:$0xff]
      %v1160 = vld [vmem:[%s1158 + $0x8] sm:$0xff]
      %v1161 = vld [vmem:[%s1158 + $0x10] sm:$0xff]
      %v1162 = vld [vmem:[%s1158 + $0x18] sm:$0xff]
      %v1163 = vpack.c.bf16 %v1156, %v1156
      %1164 = vmatprep.subr.bf16.mxu0 %v492
      %1165 = vmatpush1.bf16.msra.mxu0 %v491
      %1166 = vmatprep.subr.bf16.mxu0 %v496
      %1167 = vmatpush1.bf16.msra.mxu0 %v495
      %1168 = vmatprep.subr.bf16.mxu0 %v500
      %1169 = vmatpush1.bf16.msra.mxu0 %v499
      %1170 = vmatprep.subr.bf16.mxu0 %v504
      %1171 = vmatpush1.bf16.msra.mxu0 %v503
      %1172 = vmatprep.subr.bf16.mxu0 %v508
      %1173 = vmatpush1.bf16.msra.mxu0 %v507
      %1174 = vmatprep.subr.bf16.mxu0 %v512
      %1175 = vmatpush1.bf16.msra.mxu0 %v511
      %1176 = vmatprep.subr.bf16.mxu0 %v516
      %1177 = vmatpush1.bf16.msra.mxu0 %v515
      %1178 = vmatprep.subr.bf16.mxu0 %v520
      %1179 = vmatpush1.bf16.msra.mxu0 %v519
      %1180 = vmatprep.subr.bf16.mxu0 0
      %1181 = vmatpush1.bf16.msra.mxu0 0
      %1182 = vmatprep.subr.bf16.mxu0 0
      %1183 = vmatpush1.bf16.msra.mxu0 0
      %1184 = vmatprep.subr.bf16.mxu0 0
      %1185 = vmatpush1.bf16.msra.mxu0 0
      %1186 = vmatprep.subr.bf16.mxu0 0
      %1187 = vmatpush1.bf16.msra.mxu0 0
      %1188 = vmatprep.subr.bf16.mxu0 0
      %1189 = vmatpush1.bf16.msra.mxu0 0
      %1190 = vmatprep.subr.bf16.mxu0 0
      %1191 = vmatpush1.bf16.msra.mxu0 0
      %1192 = vmatprep.subr.bf16.mxu0 0
      %1193 = vmatpush1.bf16.msra.mxu0 0
      %1194 = vmatprep.subr.bf16.mxu0 0
      %1195 = vmatpush1.bf16.msra.mxu0 0
      %1196 = vmatprep.mubr.bf16.mxu0 0
      %1197 = vmatmul.mubr.bf16.gmra.mrb[0].mxu0 %v1163
      %v1198 = vpop.f32.mrb[0].mxu0
      %v1199 = vadd.f32 0.0, %v1198
      %v1200 = vpop.f32.mrb[0].mxu0
      %v1201 = vadd.f32 0.0, %v1200
      %v1202 = vpop.f32.mrb[0].mxu0
      %v1203 = vpop.f32.mrb[0].mxu0
      %1204 = vdwg.mxu0
      %1205 = vmatprep.subr.bf16.mxu0 %v494
      %1206 = vmatpush1.bf16.msra.mxu0 %v493
      %1207 = vmatprep.subr.bf16.mxu0 %v498
      %1208 = vmatpush1.bf16.msra.mxu0 %v497
      %1209 = vmatprep.subr.bf16.mxu0 %v502
      %1210 = vmatpush1.bf16.msra.mxu0 %v501
      %1211 = vmatprep.subr.bf16.mxu0 %v506
      %1212 = vmatpush1.bf16.msra.mxu0 %v505
      %1213 = vmatprep.subr.bf16.mxu0 %v510
      %1214 = vmatpush1.bf16.msra.mxu0 %v509
      %1215 = vmatprep.subr.bf16.mxu0 %v514
      %1216 = vmatpush1.bf16.msra.mxu0 %v513
      %1217 = vmatprep.subr.bf16.mxu0 %v518
      %1218 = vmatpush1.bf16.msra.mxu0 %v517
      %1219 = vmatprep.subr.bf16.mxu0 %v522
      %1220 = vmatpush1.bf16.msra.mxu0 %v521
      %1221 = vmatprep.subr.bf16.mxu0 0
      %1222 = vmatpush1.bf16.msra.mxu0 0
      %1223 = vmatprep.subr.bf16.mxu0 0
      %1224 = vmatpush1.bf16.msra.mxu0 0
      %1225 = vmatprep.subr.bf16.mxu0 0
      %1226 = vmatpush1.bf16.msra.mxu0 0
      %1227 = vmatprep.subr.bf16.mxu0 0
      %1228 = vmatpush1.bf16.msra.mxu0 0
      %1229 = vmatprep.subr.bf16.mxu0 0
      %1230 = vmatpush1.bf16.msra.mxu0 0
      %1231 = vmatprep.subr.bf16.mxu0 0
      %1232 = vmatpush1.bf16.msra.mxu0 0
      %1233 = vmatprep.subr.bf16.mxu0 0
      %1234 = vmatpush1.bf16.msra.mxu0 0
      %1235 = vmatprep.subr.bf16.mxu0 0
      %1236 = vmatpush1.bf16.msra.mxu0 0
      %1237 = vmatprep.mubr.bf16.mxu0 0
      %1238 = vmatmul.mubr.bf16.gmra.mrb[0].mxu0 %v1163
      %v1239 = vpop.f32.mrb[0].mxu0
      %v1240 = vadd.f32 0.0, %v1239
      %v1241 = vpop.f32.mrb[0].mxu0
      %v1242 = vadd.f32 0.0, %v1241
      %v1243 = vpop.f32.mrb[0].mxu0
      %v1244 = vpop.f32.mrb[0].mxu0
      %1245 = vdwg.mxu0
      %v1246 = vadd.f32 %v1159, %v1199
      %v1247 = vadd.f32 %v1160, %v1201
      %v1248 = vadd.f32 %v1161, %v1240
      %v1249 = vadd.f32 %v1162, %v1242
      %v1250 = vxor.u32 %v1246, 2147483648
      %v1251 = vmul.f32 %v1250, 1.442695
      %v1252 = vpow.pop %v1251
      %v1253 = vadd.f32 %v1252, 1.0
      %v1254 = vrcp.pop %v1253
      %v1255 = vmul.f32 1.0, %v1254
      %v1256 = vxor.u32 %v1247, 2147483648
      %v1257 = vmul.f32 %v1256, 1.442695
      %v1258 = vpow.pop %v1257
      %v1259 = vadd.f32 %v1258, 1.0
      %v1260 = vrcp.pop %v1259
      %v1261 = vmul.f32 1.0, %v1260
      %v1262 = vtanh.pop %v1248
      %v1263 = vxor.u32 %v1249, 2147483648
      %v1264 = vmul.f32 %v1263, 1.442695
      %v1265 = vpow.pop %v1264
      %v1266 = vadd.f32 %v1265, 1.0
      %v1267 = vrcp.pop %v1266
      %v1268 = vmul.f32 1.0, %v1267
      %v1269 = vmul.f32 %v1261, %v1157
      %v1270 = vmul.f32 %v1255, %v1262
      %v1271 = vadd.f32 %v1269, %v1270
      %v1272 = vtanh.pop %v1271
      %v1273 = vmul.f32 %v1268, %v1272
      %1274 = vst [vmem:[%s342] sm:$0xff] %v1273
      %1275 = vst [vmem:[%s346] sm:$0xff] %v1271
      %s1276 = scalar_lea.vmem %s337, 40
      %1277 = vst [vmem:[%s1276] sm:$0xff] %v1273
      %v1278 = vld [vmem:[%s342] sm:$0xff]
      %v1279 = vld [vmem:[%s346] sm:$0xff]
      %s1280 = scalar_lea.vmem %s320, 192
      %v1281 = vld [vmem:[%s1280] sm:$0xff]
      %v1282 = vld [vmem:[%s1280 + $0x8] sm:$0xff]
      %v1283 = vld [vmem:[%s1280 + $0x10] sm:$0xff]
      %v1284 = vld [vmem:[%s1280 + $0x18] sm:$0xff]
      %v1285 = vpack.c.bf16 %v1278, %v1278
      %1286 = vmatprep.subr.bf16.mxu0 %v492
      %1287 = vmatpush1.bf16.msra.mxu0 %v491
      %1288 = vmatprep.subr.bf16.mxu0 %v496
      %1289 = vmatpush1.bf16.msra.mxu0 %v495
      %1290 = vmatprep.subr.bf16.mxu0 %v500
      %1291 = vmatpush1.bf16.msra.mxu0 %v499
      %1292 = vmatprep.subr.bf16.mxu0 %v504
      %1293 = vmatpush1.bf16.msra.mxu0 %v503
      %1294 = vmatprep.subr.bf16.mxu0 %v508
      %1295 = vmatpush1.bf16.msra.mxu0 %v507
      %1296 = vmatprep.subr.bf16.mxu0 %v512
      %1297 = vmatpush1.bf16.msra.mxu0 %v511
      %1298 = vmatprep.subr.bf16.mxu0 %v516
      %1299 = vmatpush1.bf16.msra.mxu0 %v515
      %1300 = vmatprep.subr.bf16.mxu0 %v520
      %1301 = vmatpush1.bf16.msra.mxu0 %v519
      %1302 = vmatprep.subr.bf16.mxu0 0
      %1303 = vmatpush1.bf16.msra.mxu0 0
      %1304 = vmatprep.subr.bf16.mxu0 0
      %1305 = vmatpush1.bf16.msra.mxu0 0
      %1306 = vmatprep.subr.bf16.mxu0 0
      %1307 = vmatpush1.bf16.msra.mxu0 0
      %1308 = vmatprep.subr.bf16.mxu0 0
      %1309 = vmatpush1.bf16.msra.mxu0 0
      %1310 = vmatprep.subr.bf16.mxu0 0
      %1311 = vmatpush1.bf16.msra.mxu0 0
      %1312 = vmatprep.subr.bf16.mxu0 0
      %1313 = vmatpush1.bf16.msra.mxu0 0
      %1314 = vmatprep.subr.bf16.mxu0 0
      %1315 = vmatpush1.bf16.msra.mxu0 0
      %1316 = vmatprep.subr.bf16.mxu0 0
      %1317 = vmatpush1.bf16.msra.mxu0 0
      %1318 = vmatprep.mubr.bf16.mxu0 0
      %1319 = vmatmul.mubr.bf16.gmra.mrb[0].mxu0 %v1285
      %v1320 = vpop.f32.mrb[0].mxu0
      %v1321 = vadd.f32 0.0, %v1320
      %v1322 = vpop.f32.mrb[0].mxu0
      %v1323 = vadd.f32 0.0, %v1322
      %v1324 = vpop.f32.mrb[0].mxu0
      %v1325 = vpop.f32.mrb[0].mxu0
      %1326 = vdwg.mxu0
      %1327 = vmatprep.subr.bf16.mxu0 %v494
      %1328 = vmatpush1.bf16.msra.mxu0 %v493
      %1329 = vmatprep.subr.bf16.mxu0 %v498
      %1330 = vmatpush1.bf16.msra.mxu0 %v497
      %1331 = vmatprep.subr.bf16.mxu0 %v502
      %1332 = vmatpush1.bf16.msra.mxu0 %v501
      %1333 = vmatprep.subr.bf16.mxu0 %v506
      %1334 = vmatpush1.bf16.msra.mxu0 %v505
      %1335 = vmatprep.subr.bf16.mxu0 %v510
      %1336 = vmatpush1.bf16.msra.mxu0 %v509
      %1337 = vmatprep.subr.bf16.mxu0 %v514
      %1338 = vmatpush1.bf16.msra.mxu0 %v513
      %1339 = vmatprep.subr.bf16.mxu0 %v518
      %1340 = vmatpush1.bf16.msra.mxu0 %v517
      %1341 = vmatprep.subr.bf16.mxu0 %v522
      %1342 = vmatpush1.bf16.msra.mxu0 %v521
      %1343 = vmatprep.subr.bf16.mxu0 0
      %1344 = vmatpush1.bf16.msra.mxu0 0
      %1345 = vmatprep.subr.bf16.mxu0 0
      %1346 = vmatpush1.bf16.msra.mxu0 0
      %1347 = vmatprep.subr.bf16.mxu0 0
      %1348 = vmatpush1.bf16.msra.mxu0 0
      %1349 = vmatprep.subr.bf16.mxu0 0
      %1350 = vmatpush1.bf16.msra.mxu0 0
      %1351 = vmatprep.subr.bf16.mxu0 0
      %1352 = vmatpush1.bf16.msra.mxu0 0
      %1353 = vmatprep.subr.bf16.mxu0 0
      %1354 = vmatpush1.bf16.msra.mxu0 0
      %1355 = vmatprep.subr.bf16.mxu0 0
      %1356 = vmatpush1.bf16.msra.mxu0 0
      %1357 = vmatprep.subr.bf16.mxu0 0
      %1358 = vmatpush1.bf16.msra.mxu0 0
      %1359 = vmatprep.mubr.bf16.mxu0 0
      %1360 = vmatmul.mubr.bf16.gmra.mrb[0].mxu0 %v1285
      %v1361 = vpop.f32.mrb[0].mxu0
      %v1362 = vadd.f32 0.0, %v1361
      %v1363 = vpop.f32.mrb[0].mxu0
      %v1364 = vadd.f32 0.0, %v1363
      %v1365 = vpop.f32.mrb[0].mxu0
      %v1366 = vpop.f32.mrb[0].mxu0
      %1367 = vdwg.mxu0
      %v1368 = vadd.f32 %v1281, %v1321
      %v1369 = vadd.f32 %v1282, %v1323
      %v1370 = vadd.f32 %v1283, %v1362
      %v1371 = vadd.f32 %v1284, %v1364
      %v1372 = vxor.u32 %v1368, 2147483648
      %v1373 = vmul.f32 %v1372, 1.442695
      %v1374 = vpow.pop %v1373
      %v1375 = vadd.f32 %v1374, 1.0
      %v1376 = vrcp.pop %v1375
      %v1377 = vmul.f32 1.0, %v1376
      %v1378 = vxor.u32 %v1369, 2147483648
      %v1379 = vmul.f32 %v1378, 1.442695
      %v1380 = vpow.pop %v1379
      %v1381 = vadd.f32 %v1380, 1.0
      %v1382 = vrcp.pop %v1381
      %v1383 = vmul.f32 1.0, %v1382
      %v1384 = vtanh.pop %v1370
      %v1385 = vxor.u32 %v1371, 2147483648
      %v1386 = vmul.f32 %v1385, 1.442695
      %v1387 = vpow.pop %v1386
      %v1388 = vadd.f32 %v1387, 1.0
      %v1389 = vrcp.pop %v1388
      %v1390 = vmul.f32 1.0, %v1389
      %v1391 = vmul.f32 %v1383, %v1279
      %v1392 = vmul.f32 %v1377, %v1384
      %v1393 = vadd.f32 %v1391, %v1392
      %v1394 = vtanh.pop %v1393
      %v1395 = vmul.f32 %v1390, %v1394
      %1396 = vst [vmem:[%s342] sm:$0xff] %v1395
      %1397 = vst [vmem:[%s346] sm:$0xff] %v1393
      %s1398 = scalar_lea.vmem %s337, 48
      %1399 = vst [vmem:[%s1398] sm:$0xff] %v1395
      %v1400 = vld [vmem:[%s342] sm:$0xff]
      %v1401 = vld [vmem:[%s346] sm:$0xff]
      %s1402 = scalar_lea.vmem %s320, 224
      %v1403 = vld [vmem:[%s1402] sm:$0xff]
      %v1404 = vld [vmem:[%s1402 + $0x8] sm:$0xff]
      %v1405 = vld [vmem:[%s1402 + $0x10] sm:$0xff]
      %v1406 = vld [vmem:[%s1402 + $0x18] sm:$0xff]
      %v1407 = vpack.c.bf16 %v1400, %v1400
      %1408 = vmatprep.subr.bf16.mxu0 %v492
      %1409 = vmatpush1.bf16.msra.mxu0 %v491
      %1410 = vmatprep.subr.bf16.mxu0 %v496
      %1411 = vmatpush1.bf16.msra.mxu0 %v495
      %1412 = vmatprep.subr.bf16.mxu0 %v500
      %1413 = vmatpush1.bf16.msra.mxu0 %v499
      %1414 = vmatprep.subr.bf16.mxu0 %v504
      %1415 = vmatpush1.bf16.msra.mxu0 %v503
      %1416 = vmatprep.subr.bf16.mxu0 %v508
      %1417 = vmatpush1.bf16.msra.mxu0 %v507
      %1418 = vmatprep.subr.bf16.mxu0 %v512
      %1419 = vmatpush1.bf16.msra.mxu0 %v511
      %1420 = vmatprep.subr.bf16.mxu0 %v516
      %1421 = vmatpush1.bf16.msra.mxu0 %v515
      %1422 = vmatprep.subr.bf16.mxu0 %v520
      %1423 = vmatpush1.bf16.msra.mxu0 %v519
      %1424 = vmatprep.subr.bf16.mxu0 0
      %1425 = vmatpush1.bf16.msra.mxu0 0
      %1426 = vmatprep.subr.bf16.mxu0 0
      %1427 = vmatpush1.bf16.msra.mxu0 0
      %1428 = vmatprep.subr.bf16.mxu0 0
      %1429 = vmatpush1.bf16.msra.mxu0 0
      %1430 = vmatprep.subr.bf16.mxu0 0
      %1431 = vmatpush1.bf16.msra.mxu0 0
      %1432 = vmatprep.subr.bf16.mxu0 0
      %1433 = vmatpush1.bf16.msra.mxu0 0
      %1434 = vmatprep.subr.bf16.mxu0 0
      %1435 = vmatpush1.bf16.msra.mxu0 0
      %1436 = vmatprep.subr.bf16.mxu0 0
      %1437 = vmatpush1.bf16.msra.mxu0 0
      %1438 = vmatprep.subr.bf16.mxu0 0
      %1439 = vmatpush1.bf16.msra.mxu0 0
      %1440 = vmatprep.mubr.bf16.mxu0 0
      %1441 = vmatmul.mubr.bf16.gmra.mrb[0].mxu0 %v1407
      %v1442 = vpop.f32.mrb[0].mxu0
      %v1443 = vadd.f32 0.0, %v1442
      %v1444 = vpop.f32.mrb[0].mxu0
      %v1445 = vadd.f32 0.0, %v1444
      %v1446 = vpop.f32.mrb[0].mxu0
      %v1447 = vpop.f32.mrb[0].mxu0
      %1448 = vdwg.mxu0
      %1449 = vmatprep.subr.bf16.mxu0 %v494
      %1450 = vmatpush1.bf16.msra.mxu0 %v493
      %1451 = vmatprep.subr.bf16.mxu0 %v498
      %1452 = vmatpush1.bf16.msra.mxu0 %v497
      %1453 = vmatprep.subr.bf16.mxu0 %v502
      %1454 = vmatpush1.bf16.msra.mxu0 %v501
      %1455 = vmatprep.subr.bf16.mxu0 %v506
      %1456 = vmatpush1.bf16.msra.mxu0 %v505
      %1457 = vmatprep.subr.bf16.mxu0 %v510
      %1458 = vmatpush1.bf16.msra.mxu0 %v509
      %1459 = vmatprep.subr.bf16.mxu0 %v514
      %1460 = vmatpush1.bf16.msra.mxu0 %v513
      %1461 = vmatprep.subr.bf16.mxu0 %v518
      %1462 = vmatpush1.bf16.msra.mxu0 %v517
      %1463 = vmatprep.subr.bf16.mxu0 %v522
      %1464 = vmatpush1.bf16.msra.mxu0 %v521
      %1465 = vmatprep.subr.bf16.mxu0 0
      %1466 = vmatpush1.bf16.msra.mxu0 0
      %1467 = vmatprep.subr.bf16.mxu0 0
      %1468 = vmatpush1.bf16.msra.mxu0 0
      %1469 = vmatprep.subr.bf16.mxu0 0
      %1470 = vmatpush1.bf16.msra.mxu0 0
      %1471 = vmatprep.subr.bf16.mxu0 0
      %1472 = vmatpush1.bf16.msra.mxu0 0
      %1473 = vmatprep.subr.bf16.mxu0 0
      %1474 = vmatpush1.bf16.msra.mxu0 0
      %1475 = vmatprep.subr.bf16.mxu0 0
      %1476 = vmatpush1.bf16.msra.mxu0 0
      %1477 = vmatprep.subr.bf16.mxu0 0
      %1478 = vmatpush1.bf16.msra.mxu0 0
      %1479 = vmatprep.subr.bf16.mxu0 0
      %1480 = vmatpush1.bf16.msra.mxu0 0
      %1481 = vmatprep.mubr.bf16.mxu0 0
      %1482 = vmatmul.mubr.bf16.gmra.mrb[0].mxu0 %v1407
      %v1483 = vpop.f32.mrb[0].mxu0
      %v1484 = vadd.f32 0.0, %v1483
      %v1485 = vpop.f32.mrb[0].mxu0
      %v1486 = vadd.f32 0.0, %v1485
      %v1487 = vpop.f32.mrb[0].mxu0
      %v1488 = vpop.f32.mrb[0].mxu0
      %1489 = vdwg.mxu0
      %v1490 = vadd.f32 %v1403, %v1443
      %v1491 = vadd.f32 %v1404, %v1445
      %v1492 = vadd.f32 %v1405, %v1484
      %v1493 = vadd.f32 %v1406, %v1486
      %v1494 = vxor.u32 %v1490, 2147483648
      %v1495 = vmul.f32 %v1494, 1.442695
      %v1496 = vpow.pop %v1495
      %v1497 = vadd.f32 %v1496, 1.0
      %v1498 = vrcp.pop %v1497
      %v1499 = vmul.f32 1.0, %v1498
      %v1500 = vxor.u32 %v1491, 2147483648
      %v1501 = vmul.f32 %v1500, 1.442695
      %v1502 = vpow.pop %v1501
      %v1503 = vadd.f32 %v1502, 1.0
      %v1504 = vrcp.pop %v1503
      %v1505 = vmul.f32 1.0, %v1504
      %v1506 = vtanh.pop %v1492
      %v1507 = vxor.u32 %v1493, 2147483648
      %v1508 = vmul.f32 %v1507, 1.442695
      %v1509 = vpow.pop %v1508
      %v1510 = vadd.f32 %v1509, 1.0
      %v1511 = vrcp.pop %v1510
      %v1512 = vmul.f32 1.0, %v1511
      %v1513 = vmul.f32 %v1505, %v1401
      %v1514 = vmul.f32 %v1499, %v1506
      %v1515 = vadd.f32 %v1513, %v1514
      %v1516 = vtanh.pop %v1515
      %v1517 = vmul.f32 %v1512, %v1516
      %1518 = vst [vmem:[%s342] sm:$0xff] %v1517
      %1519 = vst [vmem:[%s346] sm:$0xff] %v1515
      %s1520 = scalar_lea.vmem %s337, 56
      %1521 = vst [vmem:[%s1520] sm:$0xff] %v1517
      %s1522 = smul.u32 8, %s23
      %p1523 = scmp.lt.s32.totalorder %s1522, 15
      %s1524 = scalar_select %p1523, %s1522, 15
      %p1525 = scmp.lt.s32.totalorder %s22, 0
      %s1526 = scalar_select %p1525, %s22, 0
      %s1527 = sadd.s32 %s1526, %s1524
      %s1528 = smul.addr %s1527, 8
      %s1529 = scalar_lea.vmem %s4, %s1528
      %p1530 = scmp.lt.s32.totalorder %s22, 0
      %s1531 = scalar_select %p1530, %s22, 0
      %s1532 = smul.addr %s1531, 8
      %s1533 = scalar_lea.vmem %s5, %s1532
      %p1534 = scmp.lt.s32.totalorder %s22, 0
      %s1535 = scalar_select %p1534, %s22, 0
      %s1536 = smul.addr %s1535, 8
      %s1537 = scalar_lea.vmem %s6, %s1536
      // Predicated region
      $region41: #{rnn_model_forward.6} parent=35 // pred_check
        %p1538 = pneg %p151
      $region42: #{rnn_model_forward.6} parent=35 // pred_check_branch
        %1540 = sbr.rel (%p1538) target = $region44
      $region43: #{rnn_model_forward.6} parent=35 // pred_region
        %s1541 = smul.u32 8, %s23
      $region44: #{rnn_model_forward.6} parent=35 // pred_fallthru
        _
      // Predicated region
      $region45: #{rnn_model_forward.6} parent=35 // pred_check
        %p1542 = pneg %p177
      $region46: #{rnn_model_forward.6} parent=35 // pred_check_branch
        %1544 = sbr.rel (%p1542) target = $region48
      $region47: #{rnn_model_forward.6} parent=35 // pred_region
        _
      $region48: #{rnn_model_forward.6} parent=35 // pred_fallthru
        _
      // Predicated region
      $region49: #{rnn_model_forward.6} parent=35 // pred_check
        %p1545 = pneg %p203
      $region50: #{rnn_model_forward.6} parent=35 // pred_check_branch
        %1547 = sbr.rel (%p1545) target = $region52
      $region51: #{rnn_model_forward.6} parent=35 // pred_region
        _
      $region52: #{rnn_model_forward.6} parent=35 // pred_fallthru
        _
      // Predicated region
      $region53: #{rnn_model_forward.6} parent=35 // pred_check
        %p1548 = pneg %p177
      $region54: #{rnn_model_forward.6} parent=35 // pred_check_branch
        %1550 = sbr.rel (%p1548) target = $region56
      $region55: #{rnn_model_forward.6} parent=35 // pred_region
        %p1551 = scmp.lt.s32.totalorder %s22, 0
        %s1552 = scalar_select %p1551, %s22, 0
        %s1553 = smul.addr %s1552, 8
        %s1554 = scalar_lea.vmem %s5, %s1553
      $region56: #{rnn_model_forward.6} parent=35 // pred_fallthru
        _
      // Predicated region
      $region57: #{rnn_model_forward.6} parent=35 // pred_check
        %p1555 = pneg %p203
      $region58: #{rnn_model_forward.6} parent=35 // pred_check_branch
        %1557 = sbr.rel (%p1555) target = $region60
      $region59: #{rnn_model_forward.6} parent=35 // pred_region
        %p1558 = scmp.lt.s32.totalorder %s22, 0
        %s1559 = scalar_select %p1558, %s22, 0
        %s1560 = smul.addr %s1559, 8
        %s1561 = scalar_lea.vmem %s6, %s1560
      $region60: #{rnn_model_forward.6} parent=35 // pred_fallthru
        _
    $region36: #{rnn_model_forward.6} parent=5 // pred_fallthru
      _
    %p1562 = scmp.le.s32.totalorder 2, %s13
    // Predicated region
    $region61: #{rnn_model_forward.6} parent=5 // pred_check
      %p1563 = pneg %p1562
    $region62: #{rnn_model_forward.6} parent=5 // pred_check_branch
      %1565 = sbr.rel (%p1563) target = $region64
    $region63: #{rnn_model_forward.6} parent=5 // pred_region
      %s1566 = ssub.s32 %s13, 2
      // Predicated region
      $region65: #{rnn_model_forward.6} parent=63 // pred_check
        %p1567 = pneg %p157
      $region66: #{rnn_model_forward.6} parent=63 // pred_check_branch
        %1569 = sbr.rel (%p1567) target = $region68
      $region67: #{rnn_model_forward.6} parent=63 // pred_region
        %s1570 = smul.u32 8, %s25
        %p1571 = scmp.lt.s32.totalorder %s1570, 15
        %s1572 = scalar_select %p1571, %s1570, 15
        %p1573 = scmp.lt.s32.totalorder %s24, 0
        %s1574 = scalar_select %p1573, %s24, 0
        %s1575 = sadd.s32 %s1574, %s1572
        %s1576 = smul.addr %s1575, 8
        %s1577 = scalar_lea.vmem %s4, %s1576
      $region68: #{rnn_model_forward.6} parent=63 // pred_fallthru
        _
    $region64: #{rnn_model_forward.6} parent=5 // pred_fallthru
      _
  $region6: #{rnn_model_forward.6} parent=0 // loop_footer
    %s17 = sadd.s32 1, %s13
  $region7: #{rnn_model_forward.6} parent=0 // loop_footer_branch
    %12 = sbr.rel target = $region3
  $region8: #{rnn_model_forward.6} parent=0 // loop_exit
    _

// kernel: rnn_model_forward.9
$region0: #{rnn_model_forward.9}
  #allocation0 [shape = 'u32[]', space=smem, size = 0x4, offset = 0x4, fixed_abs, tag = 'smem constant byte address 0x4 - core index']
  #allocation1 [shape = 'u32[144,128]{1,0:T(1,128)}', space=vmem, size = 0x12000, scoped, tag = 'internal scratch']
  #allocation2 [shape = 'f32[128,256]{1,0:T(8,128)}', space=vmem, size = 0x20000, scoped, tag = 'scratch operand']
  %s0 = inlined_call_operand.vmem [shape: bf16[128,128], index: 0, kind: input, shape index: {}]
  %s1 = inlined_call_operand.vmem [shape: bf16[128,256], index: 1, kind: input, shape index: {}]
  %s2 = inlined_call_operand.vmem [shape: f32[1,256], index: 2, kind: input, shape index: {}]
  %s3 = inlined_call_operand.hbm [shape: f32[128,256], index: 3, kind: output, shape index: {}]
  %s4 = sld [smem:[#allocation0]]
  $region30: #{rnn_model_forward.9} parent=0
    _
  %s6 = ssub.s32 1, %s4
  %s7 = scalar_select 0, %s6, %s4
  $region1: #{rnn_model_forward.9} parent=0
    #allocation3 [shape = 'u8[131072]{0}', space=vmem, size = 0x20000, scoped, tag = 'output window, operand 0, single buffered']
    #allocation4 [shape = 's32[1]{0}', space=sflag, size = 0x4, scoped, tag = 'scoped memory for rnn_model_forward.9']
    %8 = vsyncpa [#allocation4], 0
    // Predicated region
    $region2: #{rnn_model_forward.9} parent=1 // pred_check
      _
    $region3: #{rnn_model_forward.9} parent=1 // pred_check_branch
      %10 = sbr.rel (0) target = $region5
    $region4: #{rnn_model_forward.9} parent=1 // pred_region
      _
    $region5: #{rnn_model_forward.9} parent=1 // pred_fallthru
      _
    // Predicated region
    $region6: #{rnn_model_forward.9} parent=1 // pred_check
      _
    $region7: #{rnn_model_forward.9} parent=1 // pred_check_branch
      %12 = sbr.rel (0) target = $region9
    $region8: #{rnn_model_forward.9} parent=1 // pred_region
      _
    $region9: #{rnn_model_forward.9} parent=1 // pred_fallthru
      _
    // Predicated region
    $region10: #{rnn_model_forward.9} parent=1 // pred_check
      _
    $region11: #{rnn_model_forward.9} parent=1 // pred_check_branch
      %14 = sbr.rel (0) target = $region13
    $region12: #{rnn_model_forward.9} parent=1 // pred_region
      _
    $region13: #{rnn_model_forward.9} parent=1 // pred_fallthru
      _
    %p16 = scmp.eq.s32.totalorder 0, 0
    // Predicated region
    $region14: #{rnn_model_forward.9} parent=1 // pred_check
      %p17 = pneg %p16
    $region15: #{rnn_model_forward.9} parent=1 // pred_check_branch
      %19 = sbr.rel (%p17) target = $region17
    $region16: #{rnn_model_forward.9} parent=1 // pred_region
      %20 = vst [vmem:[#allocation2] sm:$0xff] 0.0
      %21 = vst [vmem:[#allocation2 + $0x8] sm:$0xff] 0.0
      %22 = vst [vmem:[#allocation2 + $0x10] sm:$0xff] 0.0
      %23 = vst [vmem:[#allocation2 + $0x18] sm:$0xff] 0.0
      %24 = vst [vmem:[#allocation2 + $0x20] sm:$0xff] 0.0
      %25 = vst [vmem:[#allocation2 + $0x28] sm:$0xff] 0.0
      %26 = vst [vmem:[#allocation2 + $0x30] sm:$0xff] 0.0
      %27 = vst [vmem:[#allocation2 + $0x38] sm:$0xff] 0.0
      %28 = vst [vmem:[#allocation2 + $0x40] sm:$0xff] 0.0
      %29 = vst [vmem:[#allocation2 + $0x48] sm:$0xff] 0.0
      %30 = vst [vmem:[#allocation2 + $0x50] sm:$0xff] 0.0
      %31 = vst [vmem:[#allocation2 + $0x58] sm:$0xff] 0.0
      %32 = vst [vmem:[#allocation2 + $0x60] sm:$0xff] 0.0
      %33 = vst [vmem:[#allocation2 + $0x68] sm:$0xff] 0.0
      %34 = vst [vmem:[#allocation2 + $0x70] sm:$0xff] 0.0
      %35 = vst [vmem:[#allocation2 + $0x78] sm:$0xff] 0.0
      %36 = vst [vmem:[#allocation2 + $0x80] sm:$0xff] 0.0
      %37 = vst [vmem:[#allocation2 + $0x88] sm:$0xff] 0.0
      %38 = vst [vmem:[#allocation2 + $0x90] sm:$0xff] 0.0
      %39 = vst [vmem:[#allocation2 + $0x98] sm:$0xff] 0.0
      %40 = vst [vmem:[#allocation2 + $0xa0] sm:$0xff] 0.0
      %41 = vst [vmem:[#allocation2 + $0xa8] sm:$0xff] 0.0
      %42 = vst [vmem:[#allocation2 + $0xb0] sm:$0xff] 0.0
      %43 = vst [vmem:[#allocation2 + $0xb8] sm:$0xff] 0.0
      %44 = vst [vmem:[#allocation2 + $0xc0] sm:$0xff] 0.0
      %45 = vst [vmem:[#allocation2 + $0xc8] sm:$0xff] 0.0
      %46 = vst [vmem:[#allocation2 + $0xd0] sm:$0xff] 0.0
      %47 = vst [vmem:[#allocation2 + $0xd8] sm:$0xff] 0.0
      %48 = vst [vmem:[#allocation2 + $0xe0] sm:$0xff] 0.0
      %49 = vst [vmem:[#allocation2 + $0xe8] sm:$0xff] 0.0
      %50 = vst [vmem:[#allocation2 + $0xf0] sm:$0xff] 0.0
      %51 = vst [vmem:[#allocation2 + $0xf8] sm:$0xff] 0.0
    $region17: #{rnn_model_forward.9} parent=1 // pred_fallthru
      _
    %v52 = vld [vmem:[#allocation2] sm:$0xff]
    %v53 = vld [vmem:[#allocation2 + $0x8] sm:$0xff]
    %v54 = vld [vmem:[#allocation2 + $0x10] sm:$0xff]
    %v55 = vld [vmem:[#allocation2 + $0x18] sm:$0xff]
    %v56 = vld [vmem:[#allocation2 + $0x20] sm:$0xff]
    %v57 = vld [vmem:[#allocation2 + $0x28] sm:$0xff]
    %v58 = vld [vmem:[#allocation2 + $0x30] sm:$0xff]
    %v59 = vld [vmem:[#allocation2 + $0x38] sm:$0xff]
    %v60 = vld [vmem:[#allocation2 + $0x40] sm:$0xff]
    %v61 = vld [vmem:[#allocation2 + $0x48] sm:$0xff]
    %v62 = vld [vmem:[#allocation2 + $0x50] sm:$0xff]
    %v63 = vld [vmem:[#allocation2 + $0x58] sm:$0xff]
    %v64 = vld [vmem:[#allocation2 + $0x60] sm:$0xff]
    %v65 = vld [vmem:[#allocation2 + $0x68] sm:$0xff]
    %v66 = vld [vmem:[#allocation2 + $0x70] sm:$0xff]
    %v67 = vld [vmem:[#allocation2 + $0x78] sm:$0xff]
    %v68 = vld [vmem:[#allocation2 + $0x80] sm:$0xff]
    %v69 = vld [vmem:[#allocation2 + $0x88] sm:$0xff]
    %v70 = vld [vmem:[#allocation2 + $0x90] sm:$0xff]
    %v71 = vld [vmem:[#allocation2 + $0x98] sm:$0xff]
    %v72 = vld [vmem:[#allocation2 + $0xa0] sm:$0xff]
    %v73 = vld [vmem:[#allocation2 + $0xa8] sm:$0xff]
    %v74 = vld [vmem:[#allocation2 + $0xb0] sm:$0xff]
    %v75 = vld [vmem:[#allocation2 + $0xb8] sm:$0xff]
    %v76 = vld [vmem:[#allocation2 + $0xc0] sm:$0xff]
    %v77 = vld [vmem:[#allocation2 + $0xc8] sm:$0xff]
    %v78 = vld [vmem:[#allocation2 + $0xd0] sm:$0xff]
    %v79 = vld [vmem:[#allocation2 + $0xd8] sm:$0xff]
    %v80 = vld [vmem:[#allocation2 + $0xe0] sm:$0xff]
    %v81 = vld [vmem:[#allocation2 + $0xe8] sm:$0xff]
    %v82 = vld [vmem:[#allocation2 + $0xf0] sm:$0xff]
    %v83 = vld [vmem:[#allocation2 + $0xf8] sm:$0xff]
    %v84 = vld [vmem:[%s0] sm:$0xf]
    %v85 = vld [vmem:[%s0 + $0x4] sm:$0xf]
    %v86 = vld [vmem:[%s0 + $0x8] sm:$0xf]
    %v87 = vld [vmem:[%s0 + $0xc] sm:$0xf]
    %v88 = vld [vmem:[%s0 + $0x10] sm:$0xf]
    %v89 = vld [vmem:[%s0 + $0x14] sm:$0xf]
    %v90 = vld [vmem:[%s0 + $0x18] sm:$0xf]
    %v91 = vld [vmem:[%s0 + $0x1c] sm:$0xf]
    %v92 = vld [vmem:[%s0 + $0x20] sm:$0xf]
    %v93 = vld [vmem:[%s0 + $0x24] sm:$0xf]
    %v94 = vld [vmem:[%s0 + $0x28] sm:$0xf]
    %v95 = vld [vmem:[%s0 + $0x2c] sm:$0xf]
    %v96 = vld [vmem:[%s0 + $0x30] sm:$0xf]
    %v97 = vld [vmem:[%s0 + $0x34] sm:$0xf]
    %v98 = vld [vmem:[%s0 + $0x38] sm:$0xf]
    %v99 = vld [vmem:[%s0 + $0x3c] sm:$0xf]
    %v100 = vld [vmem:[%s1] sm:$0xff]
    %v101 = vld [vmem:[%s1 + $0x8] sm:$0xff]
    %v102 = vld [vmem:[%s1 + $0x10] sm:$0xff]
    %v103 = vld [vmem:[%s1 + $0x18] sm:$0xff]
    %v104 = vld [vmem:[%s1 + $0x20] sm:$0xff]
    %v105 = vld [vmem:[%s1 + $0x28] sm:$0xff]
    %v106 = vld [vmem:[%s1 + $0x30] sm:$0xff]
    %v107 = vld [vmem:[%s1 + $0x38] sm:$0xff]
    %v108 = vld [vmem:[%s1 + $0x40] sm:$0xff]
    %v109 = vld [vmem:[%s1 + $0x48] sm:$0xff]
    %v110 = vld [vmem:[%s1 + $0x50] sm:$0xff]
    %v111 = vld [vmem:[%s1 + $0x58] sm:$0xff]
    %v112 = vld [vmem:[%s1 + $0x60] sm:$0xff]
    %v113 = vld [vmem:[%s1 + $0x68] sm:$0xff]
    %v114 = vld [vmem:[%s1 + $0x70] sm:$0xff]
    %v115 = vld [vmem:[%s1 + $0x78] sm:$0xff]
    %v132 = vunpack.c.l.b16 %v84
    %v133 = vunpack.c.l.b16 %v85
    %v134 = vunpack.c.l.b16 %v86
    %v135 = vunpack.c.l.b16 %v87
    %v136 = vunpack.c.l.b16 %v88
    %v137 = vunpack.c.l.b16 %v89
    %v138 = vunpack.c.l.b16 %v90
    %v139 = vunpack.c.l.b16 %v91
    %v140 = vunpack.c.l.b16 %v92
    %v141 = vunpack.c.l.b16 %v93
    %v142 = vunpack.c.l.b16 %v94
    %v143 = vunpack.c.l.b16 %v95
    %v144 = vunpack.c.l.b16 %v96
    %v145 = vunpack.c.l.b16 %v97
    %v146 = vunpack.c.l.b16 %v98
    %v147 = vunpack.c.l.b16 %v99
    %v148 = vpack.c.b16 %v133, %v132
    %v149 = vpack.c.b16 %v135, %v134
    %v150 = vpack.c.b16 %v137, %v136
    %v151 = vpack.c.b16 %v139, %v138
    %v152 = vpack.c.b16 %v141, %v140
    %v153 = vpack.c.b16 %v143, %v142
    %v154 = vpack.c.b16 %v145, %v144
    %v155 = vpack.c.b16 %v147, %v146
    %v180 = vunpack.c.l.b16 %v100
    %v181 = vunpack.c.h.b16 %v100
    %v182 = vunpack.c.l.b16 %v101
    %v183 = vunpack.c.h.b16 %v101
    %v184 = vunpack.c.l.b16 %v102
    %v185 = vunpack.c.h.b16 %v102
    %v186 = vunpack.c.l.b16 %v103
    %v187 = vunpack.c.h.b16 %v103
    %v188 = vunpack.c.l.b16 %v104
    %v189 = vunpack.c.h.b16 %v104
    %v190 = vunpack.c.l.b16 %v105
    %v191 = vunpack.c.h.b16 %v105
    %v192 = vunpack.c.l.b16 %v106
    %v193 = vunpack.c.h.b16 %v106
    %v194 = vunpack.c.l.b16 %v107
    %v195 = vunpack.c.h.b16 %v107
    %v196 = vunpack.c.l.b16 %v108
    %v197 = vunpack.c.h.b16 %v108
    %v198 = vunpack.c.l.b16 %v109
    %v199 = vunpack.c.h.b16 %v109
    %v200 = vunpack.c.l.b16 %v110
    %v201 = vunpack.c.h.b16 %v110
    %v202 = vunpack.c.l.b16 %v111
    %v203 = vunpack.c.h.b16 %v111
    %v204 = vunpack.c.l.b16 %v112
    %v205 = vunpack.c.h.b16 %v112
    %v206 = vunpack.c.l.b16 %v113
    %v207 = vunpack.c.h.b16 %v113
    %v208 = vunpack.c.l.b16 %v114
    %v209 = vunpack.c.h.b16 %v114
    %v210 = vunpack.c.l.b16 %v115
    %v211 = vunpack.c.h.b16 %v115
    %v212 = vpack.c.b16 %v182, %v180
    %v213 = vpack.c.b16 %v183, %v181
    %v214 = vpack.c.b16 %v186, %v184
    %v215 = vpack.c.b16 %v187, %v185
    %v216 = vpack.c.b16 %v190, %v188
    %v217 = vpack.c.b16 %v191, %v189
    %v218 = vpack.c.b16 %v194, %v192
    %v219 = vpack.c.b16 %v195, %v193
    %v220 = vpack.c.b16 %v198, %v196
    %v221 = vpack.c.b16 %v199, %v197
    %v222 = vpack.c.b16 %v202, %v200
    %v223 = vpack.c.b16 %v203, %v201
    %v224 = vpack.c.b16 %v206, %v204
    %v225 = vpack.c.b16 %v207, %v205
    %v226 = vpack.c.b16 %v210, %v208
    %v227 = vpack.c.b16 %v211, %v209
    %244 = vmatprep.subr.bf16.mxu0 %v213
    %245 = vmatpush1.bf16.msra.mxu0 %v212
    %246 = vmatprep.subr.bf16.mxu0 %v215
    %247 = vmatpush1.bf16.msra.mxu0 %v214
    %248 = vmatprep.subr.bf16.mxu0 %v217
    %249 = vmatpush1.bf16.msra.mxu0 %v216
    %250 = vmatprep.subr.bf16.mxu0 %v219
    %251 = vmatpush1.bf16.msra.mxu0 %v218
    %252 = vmatprep.subr.bf16.mxu0 %v221
    %253 = vmatpush1.bf16.msra.mxu0 %v220
    %254 = vmatprep.subr.bf16.mxu0 %v223
    %255 = vmatpush1.bf16.msra.mxu0 %v222
    %256 = vmatprep.subr.bf16.mxu0 %v225
    %257 = vmatpush1.bf16.msra.mxu0 %v224
    %258 = vmatprep.subr.bf16.mxu0 %v227
    %259 = vmatpush1.bf16.msra.mxu0 %v226
    %260 = vmatprep.subr.bf16.mxu0 0
    %261 = vmatpush1.bf16.msra.mxu0 0
    %262 = vmatprep.subr.bf16.mxu0 0
    %263 = vmatpush1.bf16.msra.mxu0 0
    %264 = vmatprep.subr.bf16.mxu0 0
    %265 = vmatpush1.bf16.msra.mxu0 0
    %266 = vmatprep.subr.bf16.mxu0 0
    %267 = vmatpush1.bf16.msra.mxu0 0
    %268 = vmatprep.subr.bf16.mxu0 0
    %269 = vmatpush1.bf16.msra.mxu0 0
    %270 = vmatprep.subr.bf16.mxu0 0
    %271 = vmatpush1.bf16.msra.mxu0 0
    %272 = vmatprep.subr.bf16.mxu0 0
    %273 = vmatpush1.bf16.msra.mxu0 0
    %274 = vmatprep.subr.bf16.mxu0 0
    %275 = vmatpush1.bf16.msra.mxu0 0
    %276 = vmatprep.mubr.bf16.mxu0 0
    %277 = vmatmul.mubr.bf16.gmra.mrb[0].mxu0 %v148
    %v278 = vpop.f32.mrb[0].mxu0
    %v279 = vadd.f32 0.0, %v278
    %v280 = vpop.f32.mrb[0].mxu0
    %v281 = vadd.f32 0.0, %v280
    %v282 = vpop.f32.mrb[0].mxu0
    %v283 = vadd.f32 0.0, %v282
    %v284 = vpop.f32.mrb[0].mxu0
    %v285 = vadd.f32 0.0, %v284
    %286 = vmatprep.mubr.bf16.mxu0 0
    %287 = vmatmul.mubr.bf16.gmra.mrb[0].mxu0 %v149
    %v288 = vpop.f32.mrb[0].mxu0
    %v289 = vadd.f32 0.0, %v288
    %v290 = vpop.f32.mrb[0].mxu0
    %v291 = vadd.f32 0.0, %v290
    %v292 = vpop.f32.mrb[0].mxu0
    %v293 = vadd.f32 0.0, %v292
    %v294 = vpop.f32.mrb[0].mxu0
    %v295 = vadd.f32 0.0, %v294
    %296 = vmatprep.mubr.bf16.mxu0 0
    %297 = vmatmul.mubr.bf16.gmra.mrb[0].mxu0 %v150
    %v298 = vpop.f32.mrb[0].mxu0
    %v299 = vadd.f32 0.0, %v298
    %v300 = vpop.f32.mrb[0].mxu0
    %v301 = vadd.f32 0.0, %v300
    %v302 = vpop.f32.mrb[0].mxu0
    %v303 = vadd.f32 0.0, %v302
    %v304 = vpop.f32.mrb[0].mxu0
    %v305 = vadd.f32 0.0, %v304
    %306 = vmatprep.mubr.bf16.mxu0 0
    %307 = vmatmul.mubr.bf16.gmra.mrb[0].mxu0 %v151
    %v308 = vpop.f32.mrb[0].mxu0
    %v309 = vadd.f32 0.0, %v308
    %v310 = vpop.f32.mrb[0].mxu0
    %v311 = vadd.f32 0.0, %v310
    %v312 = vpop.f32.mrb[0].mxu0
    %v313 = vadd.f32 0.0, %v312
    %v314 = vpop.f32.mrb[0].mxu0
    %v315 = vadd.f32 0.0, %v314
    %316 = vmatprep.mubr.bf16.mxu0 0
    %317 = vmatmul.mubr.bf16.gmra.mrb[0].mxu0 %v152
    %v318 = vpop.f32.mrb[0].mxu0
    %v319 = vadd.f32 0.0, %v318
    %v320 = vpop.f32.mrb[0].mxu0
    %v321 = vadd.f32 0.0, %v320
    %v322 = vpop.f32.mrb[0].mxu0
    %v323 = vadd.f32 0.0, %v322
    %v324 = vpop.f32.mrb[0].mxu0
    %v325 = vadd.f32 0.0, %v324
    %326 = vmatprep.mubr.bf16.mxu0 0
    %327 = vmatmul.mubr.bf16.gmra.mrb[0].mxu0 %v153
    %v328 = vpop.f32.mrb[0].mxu0
    %v329 = vadd.f32 0.0, %v328
    %v330 = vpop.f32.mrb[0].mxu0
    %v331 = vadd.f32 0.0, %v330
    %v332 = vpop.f32.mrb[0].mxu0
    %v333 = vadd.f32 0.0, %v332
    %v334 = vpop.f32.mrb[0].mxu0
    %v335 = vadd.f32 0.0, %v334
    %336 = vmatprep.mubr.bf16.mxu0 0
    %337 = vmatmul.mubr.bf16.gmra.mrb[0].mxu0 %v154
    %v338 = vpop.f32.mrb[0].mxu0
    %v339 = vadd.f32 0.0, %v338
    %v340 = vpop.f32.mrb[0].mxu0
    %v341 = vadd.f32 0.0, %v340
    %v342 = vpop.f32.mrb[0].mxu0
    %v343 = vadd.f32 0.0, %v342
    %v344 = vpop.f32.mrb[0].mxu0
    %v345 = vadd.f32 0.0, %v344
    %346 = vmatprep.mubr.bf16.mxu0 0
    %347 = vmatmul.mubr.bf16.gmra.mrb[0].mxu0 %v155
    %v348 = vpop.f32.mrb[0].mxu0
    %v349 = vadd.f32 0.0, %v348
    %v350 = vpop.f32.mrb[0].mxu0
    %v351 = vadd.f32 0.0, %v350
    %v352 = vpop.f32.mrb[0].mxu0
    %v353 = vadd.f32 0.0, %v352
    %v354 = vpop.f32.mrb[0].mxu0
    %v355 = vadd.f32 0.0, %v354
    %356 = vdwg.mxu0
    %v357 = vadd.f32 %v52, %v279
    %v358 = vadd.f32 %v53, %v281
    %v359 = vadd.f32 %v54, %v283
    %v360 = vadd.f32 %v55, %v285
    %v361 = vadd.f32 %v56, %v289
    %v362 = vadd.f32 %v57, %v291
    %v363 = vadd.f32 %v58, %v293
    %v364 = vadd.f32 %v59, %v295
    %v365 = vadd.f32 %v60, %v299
    %v366 = vadd.f32 %v61, %v301
    %v367 = vadd.f32 %v62, %v303
    %v368 = vadd.f32 %v63, %v305
    %v369 = vadd.f32 %v64, %v309
    %v370 = vadd.f32 %v65, %v311
    %v371 = vadd.f32 %v66, %v313
    %v372 = vadd.f32 %v67, %v315
    %v373 = vadd.f32 %v68, %v319
    %v374 = vadd.f32 %v69, %v321
    %v375 = vadd.f32 %v70, %v323
    %v376 = vadd.f32 %v71, %v325
    %v377 = vadd.f32 %v72, %v329
    %v378 = vadd.f32 %v73, %v331
    %v379 = vadd.f32 %v74, %v333
    %v380 = vadd.f32 %v75, %v335
    %v381 = vadd.f32 %v76, %v339
    %v382 = vadd.f32 %v77, %v341
    %v383 = vadd.f32 %v78, %v343
    %v384 = vadd.f32 %v79, %v345
    %v385 = vadd.f32 %v80, %v349
    %v386 = vadd.f32 %v81, %v351
    %v387 = vadd.f32 %v82, %v353
    %v388 = vadd.f32 %v83, %v355
    %389 = vst [vmem:[#allocation2] sm:$0xff] %v357
    %390 = vst [vmem:[#allocation2 + $0x8] sm:$0xff] %v358
    %391 = vst [vmem:[#allocation2 + $0x10] sm:$0xff] %v359
    %392 = vst [vmem:[#allocation2 + $0x18] sm:$0xff] %v360
    %393 = vst [vmem:[#allocation2 + $0x20] sm:$0xff] %v361
    %394 = vst [vmem:[#allocation2 + $0x28] sm:$0xff] %v362
    %395 = vst [vmem:[#allocation2 + $0x30] sm:$0xff] %v363
    %396 = vst [vmem:[#allocation2 + $0x38] sm:$0xff] %v364
    %397 = vst [vmem:[#allocation2 + $0x40] sm:$0xff] %v365
    %398 = vst [vmem:[#allocation2 + $0x48] sm:$0xff] %v366
    %399 = vst [vmem:[#allocation2 + $0x50] sm:$0xff] %v367
    %400 = vst [vmem:[#allocation2 + $0x58] sm:$0xff] %v368
    %401 = vst [vmem:[#allocation2 + $0x60] sm:$0xff] %v369
    %402 = vst [vmem:[#allocation2 + $0x68] sm:$0xff] %v370
    %403 = vst [vmem:[#allocation2 + $0x70] sm:$0xff] %v371
    %404 = vst [vmem:[#allocation2 + $0x78] sm:$0xff] %v372
    %405 = vst [vmem:[#allocation2 + $0x80] sm:$0xff] %v373
    %406 = vst [vmem:[#allocation2 + $0x88] sm:$0xff] %v374
    %407 = vst [vmem:[#allocation2 + $0x90] sm:$0xff] %v375
    %408 = vst [vmem:[#allocation2 + $0x98] sm:$0xff] %v376
    %409 = vst [vmem:[#allocation2 + $0xa0] sm:$0xff] %v377
    %410 = vst [vmem:[#allocation2 + $0xa8] sm:$0xff] %v378
    %411 = vst [vmem:[#allocation2 + $0xb0] sm:$0xff] %v379
    %412 = vst [vmem:[#allocation2 + $0xb8] sm:$0xff] %v380
    %413 = vst [vmem:[#allocation2 + $0xc0] sm:$0xff] %v381
    %414 = vst [vmem:[#allocation2 + $0xc8] sm:$0xff] %v382
    %415 = vst [vmem:[#allocation2 + $0xd0] sm:$0xff] %v383
    %416 = vst [vmem:[#allocation2 + $0xd8] sm:$0xff] %v384
    %417 = vst [vmem:[#allocation2 + $0xe0] sm:$0xff] %v385
    %418 = vst [vmem:[#allocation2 + $0xe8] sm:$0xff] %v386
    %419 = vst [vmem:[#allocation2 + $0xf0] sm:$0xff] %v387
    %420 = vst [vmem:[#allocation2 + $0xf8] sm:$0xff] %v388
    // Predicated region
    $region18: #{rnn_model_forward.9} parent=1 // pred_check
      %p421 = pneg %p16
    $region19: #{rnn_model_forward.9} parent=1 // pred_check_branch
      %423 = sbr.rel (%p421) target = $region21
    $region20: #{rnn_model_forward.9} parent=1 // pred_region
      %v424 = vld [vmem:[#allocation2] sm:$0xff]
      %v425 = vld [vmem:[#allocation2 + $0x8] sm:$0xff]
      %v426 = vld [vmem:[#allocation2 + $0x10] sm:$0xff]
      %v427 = vld [vmem:[#allocation2 + $0x18] sm:$0xff]
      %v428 = vld [vmem:[#allocation2 + $0x20] sm:$0xff]
      %v429 = vld [vmem:[#allocation2 + $0x28] sm:$0xff]
      %v430 = vld [vmem:[#allocation2 + $0x30] sm:$0xff]
      %v431 = vld [vmem:[#allocation2 + $0x38] sm:$0xff]
      %v432 = vld [vmem:[#allocation2 + $0x40] sm:$0xff]
      %v433 = vld [vmem:[#allocation2 + $0x48] sm:$0xff]
      %v434 = vld [vmem:[#allocation2 + $0x50] sm:$0xff]
      %v435 = vld [vmem:[#allocation2 + $0x58] sm:$0xff]
      %v436 = vld [vmem:[#allocation2 + $0x60] sm:$0xff]
      %v437 = vld [vmem:[#allocation2 + $0x68] sm:$0xff]
      %v438 = vld [vmem:[#allocation2 + $0x70] sm:$0xff]
      %v439 = vld [vmem:[#allocation2 + $0x78] sm:$0xff]
      %v440 = vld [vmem:[#allocation2 + $0x80] sm:$0xff]
      %v441 = vld [vmem:[#allocation2 + $0x88] sm:$0xff]
      %v442 = vld [vmem:[#allocation2 + $0x90] sm:$0xff]
      %v443 = vld [vmem:[#allocation2 + $0x98] sm:$0xff]
      %v444 = vld [vmem:[#allocation2 + $0xa0] sm:$0xff]
      %v445 = vld [vmem:[#allocation2 + $0xa8] sm:$0xff]
      %v446 = vld [vmem:[#allocation2 + $0xb0] sm:$0xff]
      %v447 = vld [vmem:[#allocation2 + $0xb8] sm:$0xff]
      %v448 = vld [vmem:[#allocation2 + $0xc0] sm:$0xff]
      %v449 = vld [vmem:[#allocation2 + $0xc8] sm:$0xff]
      %v450 = vld [vmem:[#allocation2 + $0xd0] sm:$0xff]
      %v451 = vld [vmem:[#allocation2 + $0xd8] sm:$0xff]
      %v452 = vld [vmem:[#allocation2 + $0xe0] sm:$0xff]
      %v453 = vld [vmem:[#allocation2 + $0xe8] sm:$0xff]
      %v454 = vld [vmem:[#allocation2 + $0xf0] sm:$0xff]
      %v455 = vld [vmem:[#allocation2 + $0xf8] sm:$0xff]
      %v456 = vld [vmem:[%s2] sm:$0x3]
      %v458 = vlaneseq
      %v459 = vshrl.u32 %v458, 7
      %v460 = vsub.s32 0, %v459
      %v461 = vrot.slane %v456, %v460
      %v462 = vlaneseq
      %v463 = vshrl.u32 %v462, 7
      %v464 = vsub.s32 1, %v463
      %v465 = vrot.slane %v456, %v464
      %v468 = vadd.f32 %v424, %v461
      %v469 = vadd.f32 %v425, %v465
      %v470 = vadd.f32 %v426, %v461
      %v471 = vadd.f32 %v427, %v465
      %v472 = vadd.f32 %v428, %v461
      %v473 = vadd.f32 %v429, %v465
      %v474 = vadd.f32 %v430, %v461
      %v475 = vadd.f32 %v431, %v465
      %v476 = vadd.f32 %v432, %v461
      %v477 = vadd.f32 %v433, %v465
      %v478 = vadd.f32 %v434, %v461
      %v479 = vadd.f32 %v435, %v465
      %v480 = vadd.f32 %v436, %v461
      %v481 = vadd.f32 %v437, %v465
      %v482 = vadd.f32 %v438, %v461
      %v483 = vadd.f32 %v439, %v465
      %v484 = vadd.f32 %v440, %v461
      %v485 = vadd.f32 %v441, %v465
      %v486 = vadd.f32 %v442, %v461
      %v487 = vadd.f32 %v443, %v465
      %v488 = vadd.f32 %v444, %v461
      %v489 = vadd.f32 %v445, %v465
      %v490 = vadd.f32 %v446, %v461
      %v491 = vadd.f32 %v447, %v465
      %v492 = vadd.f32 %v448, %v461
      %v493 = vadd.f32 %v449, %v465
      %v494 = vadd.f32 %v450, %v461
      %v495 = vadd.f32 %v451, %v465
      %v496 = vadd.f32 %v452, %v461
      %v497 = vadd.f32 %v453, %v465
      %v498 = vadd.f32 %v454, %v461
      %v499 = vadd.f32 %v455, %v465
      %500 = vst [vmem:[#allocation3] sm:$0xff] %v468
      %501 = vst [vmem:[#allocation3 + $0x8] sm:$0xff] %v469
      %502 = vst [vmem:[#allocation3 + $0x10] sm:$0xff] %v470
      %503 = vst [vmem:[#allocation3 + $0x18] sm:$0xff] %v471
      %504 = vst [vmem:[#allocation3 + $0x20] sm:$0xff] %v472
      %505 = vst [vmem:[#allocation3 + $0x28] sm:$0xff] %v473
      %506 = vst [vmem:[#allocation3 + $0x30] sm:$0xff] %v474
      %507 = vst [vmem:[#allocation3 + $0x38] sm:$0xff] %v475
      %508 = vst [vmem:[#allocation3 + $0x40] sm:$0xff] %v476
      %509 = vst [vmem:[#allocation3 + $0x48] sm:$0xff] %v477
      %510 = vst [vmem:[#allocation3 + $0x50] sm:$0xff] %v478
      %511 = vst [vmem:[#allocation3 + $0x58] sm:$0xff] %v479
      %512 = vst [vmem:[#allocation3 + $0x60] sm:$0xff] %v480
      %513 = vst [vmem:[#allocation3 + $0x68] sm:$0xff] %v481
      %514 = vst [vmem:[#allocation3 + $0x70] sm:$0xff] %v482
      %515 = vst [vmem:[#allocation3 + $0x78] sm:$0xff] %v483
      %516 = vst [vmem:[#allocation3 + $0x80] sm:$0xff] %v484
      %517 = vst [vmem:[#allocation3 + $0x88] sm:$0xff] %v485
      %518 = vst [vmem:[#allocation3 + $0x90] sm:$0xff] %v486
      %519 = vst [vmem:[#allocation3 + $0x98] sm:$0xff] %v487
      %520 = vst [vmem:[#allocation3 + $0xa0] sm:$0xff] %v488
      %521 = vst [vmem:[#allocation3 + $0xa8] sm:$0xff] %v489
      %522 = vst [vmem:[#allocation3 + $0xb0] sm:$0xff] %v490
      %523 = vst [vmem:[#allocation3 + $0xb8] sm:$0xff] %v491
      %524 = vst [vmem:[#allocation3 + $0xc0] sm:$0xff] %v492
      %525 = vst [vmem:[#allocation3 + $0xc8] sm:$0xff] %v493
      %526 = vst [vmem:[#allocation3 + $0xd0] sm:$0xff] %v494
      %527 = vst [vmem:[#allocation3 + $0xd8] sm:$0xff] %v495
      %528 = vst [vmem:[#allocation3 + $0xe0] sm:$0xff] %v496
      %529 = vst [vmem:[#allocation3 + $0xe8] sm:$0xff] %v497
      %530 = vst [vmem:[#allocation3 + $0xf0] sm:$0xff] %v498
      %531 = vst [vmem:[#allocation3 + $0xf8] sm:$0xff] %v499
    $region21: #{rnn_model_forward.9} parent=1 // pred_fallthru
      _
    // Predicated region
    $region22: #{rnn_model_forward.9} parent=1 // pred_check
      _
    $region23: #{rnn_model_forward.9} parent=1 // pred_check_branch
      %533 = sbr.rel (0) target = $region25
    $region24: #{rnn_model_forward.9} parent=1 // pred_region
      %s535 = ssub.s32 4096, 4096
      %536 = vsyncadd [#allocation4], %s535
      %s537 = sshll.u32 [#allocation3], 4
      %s538 = int_to_ptr.vmem [resolvable:$true] %s537
      %543 = dma.vmem_to_hbm [thread:$0]  %s538, 4096, %s3, [#allocation4], 256, 256, 16
    $region25: #{rnn_model_forward.9} parent=1 // pred_fallthru
      _
    // Predicated region
    $region26: #{rnn_model_forward.9} parent=1 // pred_check
      _
    $region27: #{rnn_model_forward.9} parent=1 // pred_check_branch
      %545 = sbr.rel (0) target = $region29
    $region28: #{rnn_model_forward.9} parent=1 // pred_region
      %546 = dma.done [#allocation4], 4096
    $region29: #{rnn_model_forward.9} parent=1 // pred_fallthru
      _
    %547 = vsyncpa [#allocation4], 1

// kernel: rnn_model_forward.7
$region0: #{rnn_model_forward.7}
  #allocation0 [shape = 'u32[]', space=smem, size = 0x4, offset = 0x4, fixed_abs, tag = 'smem constant byte address 0x4 - core index']
  #allocation1 [shape = 'u32[144,128]{1,0:T(1,128)}', space=vmem, size = 0x12000, scoped, tag = 'internal scratch']
  #allocation2 [shape = 'f32[128,512]{1,0:T(8,128)}', space=vmem, size = 0x40000, scoped, tag = 'scratch operand']
  %s0 = inlined_call_operand.vmem [shape: bf16[128,128], index: 0, kind: input, shape index: {}]
  %s1 = inlined_call_operand.vmem [shape: bf16[128,512], index: 1, kind: input, shape index: {}]
  %s2 = inlined_call_operand.vmem [shape: f32[1,512], index: 2, kind: input, shape index: {}]
  %s3 = inlined_call_operand.vmem [shape: f32[128,512], index: 3, kind: output, shape index: {}]
  %s4 = sld [smem:[#allocation0]]
  $region30: #{rnn_model_forward.7} parent=0
    _
  %s6 = ssub.s32 1, %s4
  %s7 = scalar_select 0, %s6, %s4
  // Predicated region
  $region2: #{rnn_model_forward.7} parent=0 // pred_check
    _
  $region3: #{rnn_model_forward.7} parent=0 // pred_check_branch
    %9 = sbr.rel (0) target = $region5
  $region4: #{rnn_model_forward.7} parent=0 // pred_region
    _
  $region5: #{rnn_model_forward.7} parent=0 // pred_fallthru
    _
  // Predicated region
  $region6: #{rnn_model_forward.7} parent=0 // pred_check
    _
  $region7: #{rnn_model_forward.7} parent=0 // pred_check_branch
    %11 = sbr.rel (0) target = $region9
  $region8: #{rnn_model_forward.7} parent=0 // pred_region
    _
  $region9: #{rnn_model_forward.7} parent=0 // pred_fallthru
    _
  // Predicated region
  $region10: #{rnn_model_forward.7} parent=0 // pred_check
    _
  $region11: #{rnn_model_forward.7} parent=0 // pred_check_branch
    %13 = sbr.rel (0) target = $region13
  $region12: #{rnn_model_forward.7} parent=0 // pred_region
    _
  $region13: #{rnn_model_forward.7} parent=0 // pred_fallthru
    _
  %p15 = scmp.eq.s32.totalorder 0, 0
  // Predicated region
  $region14: #{rnn_model_forward.7} parent=0 // pred_check
    %p16 = pneg %p15
  $region15: #{rnn_model_forward.7} parent=0 // pred_check_branch
    %18 = sbr.rel (%p16) target = $region17
  $region16: #{rnn_model_forward.7} parent=0 // pred_region
    %19 = vst [vmem:[#allocation2] sm:$0xff] 0.0
    %20 = vst [vmem:[#allocation2 + $0x8] sm:$0xff] 0.0
    %21 = vst [vmem:[#allocation2 + $0x10] sm:$0xff] 0.0
    %22 = vst [vmem:[#allocation2 + $0x18] sm:$0xff] 0.0
    %23 = vst [vmem:[#allocation2 + $0x20] sm:$0xff] 0.0
    %24 = vst [vmem:[#allocation2 + $0x28] sm:$0xff] 0.0
    %25 = vst [vmem:[#allocation2 + $0x30] sm:$0xff] 0.0
    %26 = vst [vmem:[#allocation2 + $0x38] sm:$0xff] 0.0
    %27 = vst [vmem:[#allocation2 + $0x40] sm:$0xff] 0.0
    %28 = vst [vmem:[#allocation2 + $0x48] sm:$0xff] 0.0
    %29 = vst [vmem:[#allocation2 + $0x50] sm:$0xff] 0.0
    %30 = vst [vmem:[#allocation2 + $0x58] sm:$0xff] 0.0
    %31 = vst [vmem:[#allocation2 + $0x60] sm:$0xff] 0.0
    %32 = vst [vmem:[#allocation2 + $0x68] sm:$0xff] 0.0
    %33 = vst [vmem:[#allocation2 + $0x70] sm:$0xff] 0.0
    %34 = vst [vmem:[#allocation2 + $0x78] sm:$0xff] 0.0
    %35 = vst [vmem:[#allocation2 + $0x80] sm:$0xff] 0.0
    %36 = vst [vmem:[#allocation2 + $0x88] sm:$0xff] 0.0
    %37 = vst [vmem:[#allocation2 + $0x90] sm:$0xff] 0.0
    %38 = vst [vmem:[#allocation2 + $0x98] sm:$0xff] 0.0
    %39 = vst [vmem:[#allocation2 + $0xa0] sm:$0xff] 0.0
    %40 = vst [vmem:[#allocation2 + $0xa8] sm:$0xff] 0.0
    %41 = vst [vmem:[#allocation2 + $0xb0] sm:$0xff] 0.0
    %42 = vst [vmem:[#allocation2 + $0xb8] sm:$0xff] 0.0
    %43 = vst [vmem:[#allocation2 + $0xc0] sm:$0xff] 0.0
    %44 = vst [vmem:[#allocation2 + $0xc8] sm:$0xff] 0.0
    %45 = vst [vmem:[#allocation2 + $0xd0] sm:$0xff] 0.0
    %46 = vst [vmem:[#allocation2 + $0xd8] sm:$0xff] 0.0
    %47 = vst [vmem:[#allocation2 + $0xe0] sm:$0xff] 0.0
    %48 = vst [vmem:[#allocation2 + $0xe8] sm:$0xff] 0.0
    %49 = vst [vmem:[#allocation2 + $0xf0] sm:$0xff] 0.0
    %50 = vst [vmem:[#allocation2 + $0xf8] sm:$0xff] 0.0
    %51 = vst [vmem:[#allocation2 + $0x100] sm:$0xff] 0.0
    %52 = vst [vmem:[#allocation2 + $0x108] sm:$0xff] 0.0
    %53 = vst [vmem:[#allocation2 + $0x110] sm:$0xff] 0.0
    %54 = vst [vmem:[#allocation2 + $0x118] sm:$0xff] 0.0
    %55 = vst [vmem:[#allocation2 + $0x120] sm:$0xff] 0.0
    %56 = vst [vmem:[#allocation2 + $0x128] sm:$0xff] 0.0
    %57 = vst [vmem:[#allocation2 + $0x130] sm:$0xff] 0.0
    %58 = vst [vmem:[#allocation2 + $0x138] sm:$0xff] 0.0
    %59 = vst [vmem:[#allocation2 + $0x140] sm:$0xff] 0.0
    %60 = vst [vmem:[#allocation2 + $0x148] sm:$0xff] 0.0
    %61 = vst [vmem:[#allocation2 + $0x150] sm:$0xff] 0.0
    %62 = vst [vmem:[#allocation2 + $0x158] sm:$0xff] 0.0
    %63 = vst [vmem:[#allocation2 + $0x160] sm:$0xff] 0.0
    %64 = vst [vmem:[#allocation2 + $0x168] sm:$0xff] 0.0
    %65 = vst [vmem:[#allocation2 + $0x170] sm:$0xff] 0.0
    %66 = vst [vmem:[#allocation2 + $0x178] sm:$0xff] 0.0
    %67 = vst [vmem:[#allocation2 + $0x180] sm:$0xff] 0.0
    %68 = vst [vmem:[#allocation2 + $0x188] sm:$0xff] 0.0
    %69 = vst [vmem:[#allocation2 + $0x190] sm:$0xff] 0.0
    %70 = vst [vmem:[#allocation2 + $0x198] sm:$0xff] 0.0
    %71 = vst [vmem:[#allocation2 + $0x1a0] sm:$0xff] 0.0
    %72 = vst [vmem:[#allocation2 + $0x1a8] sm:$0xff] 0.0
    %73 = vst [vmem:[#allocation2 + $0x1b0] sm:$0xff] 0.0
    %74 = vst [vmem:[#allocation2 + $0x1b8] sm:$0xff] 0.0
    %75 = vst [vmem:[#allocation2 + $0x1c0] sm:$0xff] 0.0
    %76 = vst [vmem:[#allocation2 + $0x1c8] sm:$0xff] 0.0
    %77 = vst [vmem:[#allocation2 + $0x1d0] sm:$0xff] 0.0
    %78 = vst [vmem:[#allocation2 + $0x1d8] sm:$0xff] 0.0
    %79 = vst [vmem:[#allocation2 + $0x1e0] sm:$0xff] 0.0
    %80 = vst [vmem:[#allocation2 + $0x1e8] sm:$0xff] 0.0
    %81 = vst [vmem:[#allocation2 + $0x1f0] sm:$0xff] 0.0
    %82 = vst [vmem:[#allocation2 + $0x1f8] sm:$0xff] 0.0
  $region17: #{rnn_model_forward.7} parent=0 // pred_fallthru
    _
  %v83 = vld [vmem:[#allocation2] sm:$0xff]
  %v84 = vld [vmem:[#allocation2 + $0x8] sm:$0xff]
  %v85 = vld [vmem:[#allocation2 + $0x10] sm:$0xff]
  %v86 = vld [vmem:[#allocation2 + $0x18] sm:$0xff]
  %v87 = vld [vmem:[#allocation2 + $0x20] sm:$0xff]
  %v88 = vld [vmem:[#allocation2 + $0x28] sm:$0xff]
  %v89 = vld [vmem:[#allocation2 + $0x30] sm:$0xff]
  %v90 = vld [vmem:[#allocation2 + $0x38] sm:$0xff]
  %v91 = vld [vmem:[#allocation2 + $0x40] sm:$0xff]
  %v92 = vld [vmem:[#allocation2 + $0x48] sm:$0xff]
  %v93 = vld [vmem:[#allocation2 + $0x50] sm:$0xff]
  %v94 = vld [vmem:[#allocation2 + $0x58] sm:$0xff]
  %v95 = vld [vmem:[#allocation2 + $0x60] sm:$0xff]
  %v96 = vld [vmem:[#allocation2 + $0x68] sm:$0xff]
  %v97 = vld [vmem:[#allocation2 + $0x70] sm:$0xff]
  %v98 = vld [vmem:[#allocation2 + $0x78] sm:$0xff]
  %v99 = vld [vmem:[#allocation2 + $0x80] sm:$0xff]
  %v100 = vld [vmem:[#allocation2 + $0x88] sm:$0xff]
  %v101 = vld [vmem:[#allocation2 + $0x90] sm:$0xff]
  %v102 = vld [vmem:[#allocation2 + $0x98] sm:$0xff]
  %v103 = vld [vmem:[#allocation2 + $0xa0] sm:$0xff]
  %v104 = vld [vmem:[#allocation2 + $0xa8] sm:$0xff]
  %v105 = vld [vmem:[#allocation2 + $0xb0] sm:$0xff]
  %v106 = vld [vmem:[#allocation2 + $0xb8] sm:$0xff]
  %v107 = vld [vmem:[#allocation2 + $0xc0] sm:$0xff]
  %v108 = vld [vmem:[#allocation2 + $0xc8] sm:$0xff]
  %v109 = vld [vmem:[#allocation2 + $0xd0] sm:$0xff]
  %v110 = vld [vmem:[#allocation2 + $0xd8] sm:$0xff]
  %v111 = vld [vmem:[#allocation2 + $0xe0] sm:$0xff]
  %v112 = vld [vmem:[#allocation2 + $0xe8] sm:$0xff]
  %v113 = vld [vmem:[#allocation2 + $0xf0] sm:$0xff]
  %v114 = vld [vmem:[#allocation2 + $0xf8] sm:$0xff]
  %v115 = vld [vmem:[#allocation2 + $0x100] sm:$0xff]
  %v116 = vld [vmem:[#allocation2 + $0x108] sm:$0xff]
  %v117 = vld [vmem:[#allocation2 + $0x110] sm:$0xff]
  %v118 = vld [vmem:[#allocation2 + $0x118] sm:$0xff]
  %v119 = vld [vmem:[#allocation2 + $0x120] sm:$0xff]
  %v120 = vld [vmem:[#allocation2 + $0x128] sm:$0xff]
  %v121 = vld [vmem:[#allocation2 + $0x130] sm:$0xff]
  %v122 = vld [vmem:[#allocation2 + $0x138] sm:$0xff]
  %v123 = vld [vmem:[#allocation2 + $0x140] sm:$0xff]
  %v124 = vld [vmem:[#allocation2 + $0x148] sm:$0xff]
  %v125 = vld [vmem:[#allocation2 + $0x150] sm:$0xff]
  %v126 = vld [vmem:[#allocation2 + $0x158] sm:$0xff]
  %v127 = vld [vmem:[#allocation2 + $0x160] sm:$0xff]
  %v128 = vld [vmem:[#allocation2 + $0x168] sm:$0xff]
  %v129 = vld [vmem:[#allocation2 + $0x170] sm:$0xff]
  %v130 = vld [vmem:[#allocation2 + $0x178] sm:$0xff]
  %v131 = vld [vmem:[#allocation2 + $0x180] sm:$0xff]
  %v132 = vld [vmem:[#allocation2 + $0x188] sm:$0xff]
  %v133 = vld [vmem:[#allocation2 + $0x190] sm:$0xff]
  %v134 = vld [vmem:[#allocation2 + $0x198] sm:$0xff]
  %v135 = vld [vmem:[#allocation2 + $0x1a0] sm:$0xff]
  %v136 = vld [vmem:[#allocation2 + $0x1a8] sm:$0xff]
  %v137 = vld [vmem:[#allocation2 + $0x1b0] sm:$0xff]
  %v138 = vld [vmem:[#allocation2 + $0x1b8] sm:$0xff]
  %v139 = vld [vmem:[#allocation2 + $0x1c0] sm:$0xff]
  %v140 = vld [vmem:[#allocation2 + $0x1c8] sm:$0xff]
  %v141 = vld [vmem:[#allocation2 + $0x1d0] sm:$0xff]
  %v142 = vld [vmem:[#allocation2 + $0x1d8] sm:$0xff]
  %v143 = vld [vmem:[#allocation2 + $0x1e0] sm:$0xff]
  %v144 = vld [vmem:[#allocation2 + $0x1e8] sm:$0xff]
  %v145 = vld [vmem:[#allocation2 + $0x1f0] sm:$0xff]
  %v146 = vld [vmem:[#allocation2 + $0x1f8] sm:$0xff]
  %v147 = vld [vmem:[%s0] sm:$0xf]
  %v148 = vld [vmem:[%s0 + $0x4] sm:$0xf]
  %v149 = vld [vmem:[%s0 + $0x8] sm:$0xf]
  %v150 = vld [vmem:[%s0 + $0xc] sm:$0xf]
  %v151 = vld [vmem:[%s0 + $0x10] sm:$0xf]
  %v152 = vld [vmem:[%s0 + $0x14] sm:$0xf]
  %v153 = vld [vmem:[%s0 + $0x18] sm:$0xf]
  %v154 = vld [vmem:[%s0 + $0x1c] sm:$0xf]
  %v155 = vld [vmem:[%s0 + $0x20] sm:$0xf]
  %v156 = vld [vmem:[%s0 + $0x24] sm:$0xf]
  %v157 = vld [vmem:[%s0 + $0x28] sm:$0xf]
  %v158 = vld [vmem:[%s0 + $0x2c] sm:$0xf]
  %v159 = vld [vmem:[%s0 + $0x30] sm:$0xf]
  %v160 = vld [vmem:[%s0 + $0x34] sm:$0xf]
  %v161 = vld [vmem:[%s0 + $0x38] sm:$0xf]
  %v162 = vld [vmem:[%s0 + $0x3c] sm:$0xf]
  %v163 = vld [vmem:[%s1] sm:$0xff]
  %v164 = vld [vmem:[%s1 + $0x8] sm:$0xff]
  %v165 = vld [vmem:[%s1 + $0x10] sm:$0xff]
  %v166 = vld [vmem:[%s1 + $0x18] sm:$0xff]
  %v167 = vld [vmem:[%s1 + $0x20] sm:$0xff]
  %v168 = vld [vmem:[%s1 + $0x28] sm:$0xff]
  %v169 = vld [vmem:[%s1 + $0x30] sm:$0xff]
  %v170 = vld [vmem:[%s1 + $0x38] sm:$0xff]
  %v171 = vld [vmem:[%s1 + $0x40] sm:$0xff]
  %v172 = vld [vmem:[%s1 + $0x48] sm:$0xff]
  %v173 = vld [vmem:[%s1 + $0x50] sm:$0xff]
  %v174 = vld [vmem:[%s1 + $0x58] sm:$0xff]
  %v175 = vld [vmem:[%s1 + $0x60] sm:$0xff]
  %v176 = vld [vmem:[%s1 + $0x68] sm:$0xff]
  %v177 = vld [vmem:[%s1 + $0x70] sm:$0xff]
  %v178 = vld [vmem:[%s1 + $0x78] sm:$0xff]
  %v179 = vld [vmem:[%s1 + $0x80] sm:$0xff]
  %v180 = vld [vmem:[%s1 + $0x88] sm:$0xff]
  %v181 = vld [vmem:[%s1 + $0x90] sm:$0xff]
  %v182 = vld [vmem:[%s1 + $0x98] sm:$0xff]
  %v183 = vld [vmem:[%s1 + $0xa0] sm:$0xff]
  %v184 = vld [vmem:[%s1 + $0xa8] sm:$0xff]
  %v185 = vld [vmem:[%s1 + $0xb0] sm:$0xff]
  %v186 = vld [vmem:[%s1 + $0xb8] sm:$0xff]
  %v187 = vld [vmem:[%s1 + $0xc0] sm:$0xff]
  %v188 = vld [vmem:[%s1 + $0xc8] sm:$0xff]
  %v189 = vld [vmem:[%s1 + $0xd0] sm:$0xff]
  %v190 = vld [vmem:[%s1 + $0xd8] sm:$0xff]
  %v191 = vld [vmem:[%s1 + $0xe0] sm:$0xff]
  %v192 = vld [vmem:[%s1 + $0xe8] sm:$0xff]
  %v193 = vld [vmem:[%s1 + $0xf0] sm:$0xff]
  %v194 = vld [vmem:[%s1 + $0xf8] sm:$0xff]
  %v211 = vunpack.c.l.b16 %v147
  %v212 = vunpack.c.l.b16 %v148
  %v213 = vunpack.c.l.b16 %v149
  %v214 = vunpack.c.l.b16 %v150
  %v215 = vunpack.c.l.b16 %v151
  %v216 = vunpack.c.l.b16 %v152
  %v217 = vunpack.c.l.b16 %v153
  %v218 = vunpack.c.l.b16 %v154
  %v219 = vunpack.c.l.b16 %v155
  %v220 = vunpack.c.l.b16 %v156
  %v221 = vunpack.c.l.b16 %v157
  %v222 = vunpack.c.l.b16 %v158
  %v223 = vunpack.c.l.b16 %v159
  %v224 = vunpack.c.l.b16 %v160
  %v225 = vunpack.c.l.b16 %v161
  %v226 = vunpack.c.l.b16 %v162
  %v227 = vpack.c.b16 %v212, %v211
  %v228 = vpack.c.b16 %v214, %v213
  %v229 = vpack.c.b16 %v216, %v215
  %v230 = vpack.c.b16 %v218, %v217
  %v231 = vpack.c.b16 %v220, %v219
  %v232 = vpack.c.b16 %v222, %v221
  %v233 = vpack.c.b16 %v224, %v223
  %v234 = vpack.c.b16 %v226, %v225
  %v275 = vunpack.c.l.b16 %v163
  %v276 = vunpack.c.h.b16 %v163
  %v277 = vunpack.c.l.b16 %v164
  %v278 = vunpack.c.h.b16 %v164
  %v279 = vunpack.c.l.b16 %v165
  %v280 = vunpack.c.h.b16 %v165
  %v281 = vunpack.c.l.b16 %v166
  %v282 = vunpack.c.h.b16 %v166
  %v283 = vunpack.c.l.b16 %v167
  %v284 = vunpack.c.h.b16 %v167
  %v285 = vunpack.c.l.b16 %v168
  %v286 = vunpack.c.h.b16 %v168
  %v287 = vunpack.c.l.b16 %v169
  %v288 = vunpack.c.h.b16 %v169
  %v289 = vunpack.c.l.b16 %v170
  %v290 = vunpack.c.h.b16 %v170
  %v291 = vunpack.c.l.b16 %v171
  %v292 = vunpack.c.h.b16 %v171
  %v293 = vunpack.c.l.b16 %v172
  %v294 = vunpack.c.h.b16 %v172
  %v295 = vunpack.c.l.b16 %v173
  %v296 = vunpack.c.h.b16 %v173
  %v297 = vunpack.c.l.b16 %v174
  %v298 = vunpack.c.h.b16 %v174
  %v299 = vunpack.c.l.b16 %v175
  %v300 = vunpack.c.h.b16 %v175
  %v301 = vunpack.c.l.b16 %v176
  %v302 = vunpack.c.h.b16 %v176
  %v303 = vunpack.c.l.b16 %v177
  %v304 = vunpack.c.h.b16 %v177
  %v305 = vunpack.c.l.b16 %v178
  %v306 = vunpack.c.h.b16 %v178
  %v307 = vunpack.c.l.b16 %v179
  %v308 = vunpack.c.h.b16 %v179
  %v309 = vunpack.c.l.b16 %v180
  %v310 = vunpack.c.h.b16 %v180
  %v311 = vunpack.c.l.b16 %v181
  %v312 = vunpack.c.h.b16 %v181
  %v313 = vunpack.c.l.b16 %v182
  %v314 = vunpack.c.h.b16 %v182
  %v315 = vunpack.c.l.b16 %v183
  %v316 = vunpack.c.h.b16 %v183
  %v317 = vunpack.c.l.b16 %v184
  %v318 = vunpack.c.h.b16 %v184
  %v319 = vunpack.c.l.b16 %v185
  %v320 = vunpack.c.h.b16 %v185
  %v321 = vunpack.c.l.b16 %v186
  %v322 = vunpack.c.h.b16 %v186
  %v323 = vunpack.c.l.b16 %v187
  %v324 = vunpack.c.h.b16 %v187
  %v325 = vunpack.c.l.b16 %v188
  %v326 = vunpack.c.h.b16 %v188
  %v327 = vunpack.c.l.b16 %v189
  %v328 = vunpack.c.h.b16 %v189
  %v329 = vunpack.c.l.b16 %v190
  %v330 = vunpack.c.h.b16 %v190
  %v331 = vunpack.c.l.b16 %v191
  %v332 = vunpack.c.h.b16 %v191
  %v333 = vunpack.c.l.b16 %v192
  %v334 = vunpack.c.h.b16 %v192
  %v335 = vunpack.c.l.b16 %v193
  %v336 = vunpack.c.h.b16 %v193
  %v337 = vunpack.c.l.b16 %v194
  %v338 = vunpack.c.h.b16 %v194
  %v339 = vpack.c.b16 %v279, %v275
  %v340 = vpack.c.b16 %v280, %v276
  %v341 = vpack.c.b16 %v281, %v277
  %v342 = vpack.c.b16 %v282, %v278
  %v343 = vpack.c.b16 %v287, %v283
  %v344 = vpack.c.b16 %v288, %v284
  %v345 = vpack.c.b16 %v289, %v285
  %v346 = vpack.c.b16 %v290, %v286
  %v347 = vpack.c.b16 %v295, %v291
  %v348 = vpack.c.b16 %v296, %v292
  %v349 = vpack.c.b16 %v297, %v293
  %v350 = vpack.c.b16 %v298, %v294
  %v351 = vpack.c.b16 %v303, %v299
  %v352 = vpack.c.b16 %v304, %v300
  %v353 = vpack.c.b16 %v305, %v301
  %v354 = vpack.c.b16 %v306, %v302
  %v355 = vpack.c.b16 %v311, %v307
  %v356 = vpack.c.b16 %v312, %v308
  %v357 = vpack.c.b16 %v313, %v309
  %v358 = vpack.c.b16 %v314, %v310
  %v359 = vpack.c.b16 %v319, %v315
  %v360 = vpack.c.b16 %v320, %v316
  %v361 = vpack.c.b16 %v321, %v317
  %v362 = vpack.c.b16 %v322, %v318
  %v363 = vpack.c.b16 %v327, %v323
  %v364 = vpack.c.b16 %v328, %v324
  %v365 = vpack.c.b16 %v329, %v325
  %v366 = vpack.c.b16 %v330, %v326
  %v367 = vpack.c.b16 %v335, %v331
  %v368 = vpack.c.b16 %v336, %v332
  %v369 = vpack.c.b16 %v337, %v333
  %v370 = vpack.c.b16 %v338, %v334
  %403 = vmatprep.subr.bf16.mxu0 %v340
  %404 = vmatpush1.bf16.msra.mxu0 %v339
  %405 = vmatprep.subr.bf16.mxu0 %v344
  %406 = vmatpush1.bf16.msra.mxu0 %v343
  %407 = vmatprep.subr.bf16.mxu0 %v348
  %408 = vmatpush1.bf16.msra.mxu0 %v347
  %409 = vmatprep.subr.bf16.mxu0 %v352
  %410 = vmatpush1.bf16.msra.mxu0 %v351
  %411 = vmatprep.subr.bf16.mxu0 %v356
  %412 = vmatpush1.bf16.msra.mxu0 %v355
  %413 = vmatprep.subr.bf16.mxu0 %v360
  %414 = vmatpush1.bf16.msra.mxu0 %v359
  %415 = vmatprep.subr.bf16.mxu0 %v364
  %416 = vmatpush1.bf16.msra.mxu0 %v363
  %417 = vmatprep.subr.bf16.mxu0 %v368
  %418 = vmatpush1.bf16.msra.mxu0 %v367
  %419 = vmatprep.subr.bf16.mxu0 0
  %420 = vmatpush1.bf16.msra.mxu0 0
  %421 = vmatprep.subr.bf16.mxu0 0
  %422 = vmatpush1.bf16.msra.mxu0 0
  %423 = vmatprep.subr.bf16.mxu0 0
  %424 = vmatpush1.bf16.msra.mxu0 0
  %425 = vmatprep.subr.bf16.mxu0 0
  %426 = vmatpush1.bf16.msra.mxu0 0
  %427 = vmatprep.subr.bf16.mxu0 0
  %428 = vmatpush1.bf16.msra.mxu0 0
  %429 = vmatprep.subr.bf16.mxu0 0
  %430 = vmatpush1.bf16.msra.mxu0 0
  %431 = vmatprep.subr.bf16.mxu0 0
  %432 = vmatpush1.bf16.msra.mxu0 0
  %433 = vmatprep.subr.bf16.mxu0 0
  %434 = vmatpush1.bf16.msra.mxu0 0
  %435 = vmatprep.mubr.bf16.mxu0 0
  %436 = vmatmul.mubr.bf16.gmra.mrb[0].mxu0 %v227
  %v437 = vpop.f32.mrb[0].mxu0
  %v438 = vadd.f32 0.0, %v437
  %v439 = vpop.f32.mrb[0].mxu0
  %v440 = vadd.f32 0.0, %v439
  %v441 = vpop.f32.mrb[0].mxu0
  %v442 = vadd.f32 0.0, %v441
  %v443 = vpop.f32.mrb[0].mxu0
  %v444 = vadd.f32 0.0, %v443
  %445 = vmatprep.mubr.bf16.mxu0 0
  %446 = vmatmul.mubr.bf16.gmra.mrb[0].mxu0 %v228
  %v447 = vpop.f32.mrb[0].mxu0
  %v448 = vadd.f32 0.0, %v447
  %v449 = vpop.f32.mrb[0].mxu0
  %v450 = vadd.f32 0.0, %v449
  %v451 = vpop.f32.mrb[0].mxu0
  %v452 = vadd.f32 0.0, %v451
  %v453 = vpop.f32.mrb[0].mxu0
  %v454 = vadd.f32 0.0, %v453
  %455 = vmatprep.mubr.bf16.mxu0 0
  %456 = vmatmul.mubr.bf16.gmra.mrb[0].mxu0 %v229
  %v457 = vpop.f32.mrb[0].mxu0
  %v458 = vadd.f32 0.0, %v457
  %v459 = vpop.f32.mrb[0].mxu0
  %v460 = vadd.f32 0.0, %v459
  %v461 = vpop.f32.mrb[0].mxu0
  %v462 = vadd.f32 0.0, %v461
  %v463 = vpop.f32.mrb[0].mxu0
  %v464 = vadd.f32 0.0, %v463
  %465 = vmatprep.mubr.bf16.mxu0 0
  %466 = vmatmul.mubr.bf16.gmra.mrb[0].mxu0 %v230
  %v467 = vpop.f32.mrb[0].mxu0
  %v468 = vadd.f32 0.0, %v467
  %v469 = vpop.f32.mrb[0].mxu0
  %v470 = vadd.f32 0.0, %v469
  %v471 = vpop.f32.mrb[0].mxu0
  %v472 = vadd.f32 0.0, %v471
  %v473 = vpop.f32.mrb[0].mxu0
  %v474 = vadd.f32 0.0, %v473
  %475 = vmatprep.mubr.bf16.mxu0 0
  %476 = vmatmul.mubr.bf16.gmra.mrb[0].mxu0 %v231
  %v477 = vpop.f32.mrb[0].mxu0
  %v478 = vadd.f32 0.0, %v477
  %v479 = vpop.f32.mrb[0].mxu0
  %v480 = vadd.f32 0.0, %v479
  %v481 = vpop.f32.mrb[0].mxu0
  %v482 = vadd.f32 0.0, %v481
  %v483 = vpop.f32.mrb[0].mxu0
  %v484 = vadd.f32 0.0, %v483
  %485 = vmatprep.mubr.bf16.mxu0 0
  %486 = vmatmul.mubr.bf16.gmra.mrb[0].mxu0 %v232
  %v487 = vpop.f32.mrb[0].mxu0
  %v488 = vadd.f32 0.0, %v487
  %v489 = vpop.f32.mrb[0].mxu0
  %v490 = vadd.f32 0.0, %v489
  %v491 = vpop.f32.mrb[0].mxu0
  %v492 = vadd.f32 0.0, %v491
  %v493 = vpop.f32.mrb[0].mxu0
  %v494 = vadd.f32 0.0, %v493
  %495 = vmatprep.mubr.bf16.mxu0 0
  %496 = vmatmul.mubr.bf16.gmra.mrb[0].mxu0 %v233
  %v497 = vpop.f32.mrb[0].mxu0
  %v498 = vadd.f32 0.0, %v497
  %v499 = vpop.f32.mrb[0].mxu0
  %v500 = vadd.f32 0.0, %v499
  %v501 = vpop.f32.mrb[0].mxu0
  %v502 = vadd.f32 0.0, %v501
  %v503 = vpop.f32.mrb[0].mxu0
  %v504 = vadd.f32 0.0, %v503
  %505 = vmatprep.mubr.bf16.mxu0 0
  %506 = vmatmul.mubr.bf16.gmra.mrb[0].mxu0 %v234
  %v507 = vpop.f32.mrb[0].mxu0
  %v508 = vadd.f32 0.0, %v507
  %v509 = vpop.f32.mrb[0].mxu0
  %v510 = vadd.f32 0.0, %v509
  %v511 = vpop.f32.mrb[0].mxu0
  %v512 = vadd.f32 0.0, %v511
  %v513 = vpop.f32.mrb[0].mxu0
  %v514 = vadd.f32 0.0, %v513
  %515 = vdwg.mxu0
  %516 = vmatprep.subr.bf16.mxu0 %v342
  %517 = vmatpush1.bf16.msra.mxu0 %v341
  %518 = vmatprep.subr.bf16.mxu0 %v346
  %519 = vmatpush1.bf16.msra.mxu0 %v345
  %520 = vmatprep.subr.bf16.mxu0 %v350
  %521 = vmatpush1.bf16.msra.mxu0 %v349
  %522 = vmatprep.subr.bf16.mxu0 %v354
  %523 = vmatpush1.bf16.msra.mxu0 %v353
  %524 = vmatprep.subr.bf16.mxu0 %v358
  %525 = vmatpush1.bf16.msra.mxu0 %v357
  %526 = vmatprep.subr.bf16.mxu0 %v362
  %527 = vmatpush1.bf16.msra.mxu0 %v361
  %528 = vmatprep.subr.bf16.mxu0 %v366
  %529 = vmatpush1.bf16.msra.mxu0 %v365
  %530 = vmatprep.subr.bf16.mxu0 %v370
  %531 = vmatpush1.bf16.msra.mxu0 %v369
  %532 = vmatprep.subr.bf16.mxu0 0
  %533 = vmatpush1.bf16.msra.mxu0 0
  %534 = vmatprep.subr.bf16.mxu0 0
  %535 = vmatpush1.bf16.msra.mxu0 0
  %536 = vmatprep.subr.bf16.mxu0 0
  %537 = vmatpush1.bf16.msra.mxu0 0
  %538 = vmatprep.subr.bf16.mxu0 0
  %539 = vmatpush1.bf16.msra.mxu0 0
  %540 = vmatprep.subr.bf16.mxu0 0
  %541 = vmatpush1.bf16.msra.mxu0 0
  %542 = vmatprep.subr.bf16.mxu0 0
  %543 = vmatpush1.bf16.msra.mxu0 0
  %544 = vmatprep.subr.bf16.mxu0 0
  %545 = vmatpush1.bf16.msra.mxu0 0
  %546 = vmatprep.subr.bf16.mxu0 0
  %547 = vmatpush1.bf16.msra.mxu0 0
  %548 = vmatprep.mubr.bf16.mxu0 0
  %549 = vmatmul.mubr.bf16.gmra.mrb[0].mxu0 %v227
  %v550 = vpop.f32.mrb[0].mxu0
  %v551 = vadd.f32 0.0, %v550
  %v552 = vpop.f32.mrb[0].mxu0
  %v553 = vadd.f32 0.0, %v552
  %v554 = vpop.f32.mrb[0].mxu0
  %v555 = vadd.f32 0.0, %v554
  %v556 = vpop.f32.mrb[0].mxu0
  %v557 = vadd.f32 0.0, %v556
  %558 = vmatprep.mubr.bf16.mxu0 0
  %559 = vmatmul.mubr.bf16.gmra.mrb[0].mxu0 %v228
  %v560 = vpop.f32.mrb[0].mxu0
  %v561 = vadd.f32 0.0, %v560
  %v562 = vpop.f32.mrb[0].mxu0
  %v563 = vadd.f32 0.0, %v562
  %v564 = vpop.f32.mrb[0].mxu0
  %v565 = vadd.f32 0.0, %v564
  %v566 = vpop.f32.mrb[0].mxu0
  %v567 = vadd.f32 0.0, %v566
  %568 = vmatprep.mubr.bf16.mxu0 0
  %569 = vmatmul.mubr.bf16.gmra.mrb[0].mxu0 %v229
  %v570 = vpop.f32.mrb[0].mxu0
  %v571 = vadd.f32 0.0, %v570
  %v572 = vpop.f32.mrb[0].mxu0
  %v573 = vadd.f32 0.0, %v572
  %v574 = vpop.f32.mrb[0].mxu0
  %v575 = vadd.f32 0.0, %v574
  %v576 = vpop.f32.mrb[0].mxu0
  %v577 = vadd.f32 0.0, %v576
  %578 = vmatprep.mubr.bf16.mxu0 0
  %579 = vmatmul.mubr.bf16.gmra.mrb[0].mxu0 %v230
  %v580 = vpop.f32.mrb[0].mxu0
  %v581 = vadd.f32 0.0, %v580
  %v582 = vpop.f32.mrb[0].mxu0
  %v583 = vadd.f32 0.0, %v582
  %v584 = vpop.f32.mrb[0].mxu0
  %v585 = vadd.f32 0.0, %v584
  %v586 = vpop.f32.mrb[0].mxu0
  %v587 = vadd.f32 0.0, %v586
  %588 = vmatprep.mubr.bf16.mxu0 0
  %589 = vmatmul.mubr.bf16.gmra.mrb[0].mxu0 %v231
  %v590 = vpop.f32.mrb[0].mxu0
  %v591 = vadd.f32 0.0, %v590
  %v592 = vpop.f32.mrb[0].mxu0
  %v593 = vadd.f32 0.0, %v592
  %v594 = vpop.f32.mrb[0].mxu0
  %v595 = vadd.f32 0.0, %v594
  %v596 = vpop.f32.mrb[0].mxu0
  %v597 = vadd.f32 0.0, %v596
  %598 = vmatprep.mubr.bf16.mxu0 0
  %599 = vmatmul.mubr.bf16.gmra.mrb[0].mxu0 %v232
  %v600 = vpop.f32.mrb[0].mxu0
  %v601 = vadd.f32 0.0, %v600
  %v602 = vpop.f32.mrb[0].mxu0
  %v603 = vadd.f32 0.0, %v602
  %v604 = vpop.f32.mrb[0].mxu0
  %v605 = vadd.f32 0.0, %v604
  %v606 = vpop.f32.mrb[0].mxu0
  %v607 = vadd.f32 0.0, %v606
  %608 = vmatprep.mubr.bf16.mxu0 0
  %609 = vmatmul.mubr.bf16.gmra.mrb[0].mxu0 %v233
  %v610 = vpop.f32.mrb[0].mxu0
  %v611 = vadd.f32 0.0, %v610
  %v612 = vpop.f32.mrb[0].mxu0
  %v613 = vadd.f32 0.0, %v612
  %v614 = vpop.f32.mrb[0].mxu0
  %v615 = vadd.f32 0.0, %v614
  %v616 = vpop.f32.mrb[0].mxu0
  %v617 = vadd.f32 0.0, %v616
  %618 = vmatprep.mubr.bf16.mxu0 0
  %619 = vmatmul.mubr.bf16.gmra.mrb[0].mxu0 %v234
  %v620 = vpop.f32.mrb[0].mxu0
  %v621 = vadd.f32 0.0, %v620
  %v622 = vpop.f32.mrb[0].mxu0
  %v623 = vadd.f32 0.0, %v622
  %v624 = vpop.f32.mrb[0].mxu0
  %v625 = vadd.f32 0.0, %v624
  %v626 = vpop.f32.mrb[0].mxu0
  %v627 = vadd.f32 0.0, %v626
  %628 = vdwg.mxu0
  %v629 = vadd.f32 %v83, %v438
  %v630 = vadd.f32 %v84, %v440
  %v631 = vadd.f32 %v85, %v551
  %v632 = vadd.f32 %v86, %v553
  %v633 = vadd.f32 %v87, %v442
  %v634 = vadd.f32 %v88, %v444
  %v635 = vadd.f32 %v89, %v555
  %v636 = vadd.f32 %v90, %v557
  %v637 = vadd.f32 %v91, %v448
  %v638 = vadd.f32 %v92, %v450
  %v639 = vadd.f32 %v93, %v561
  %v640 = vadd.f32 %v94, %v563
  %v641 = vadd.f32 %v95, %v452
  %v642 = vadd.f32 %v96, %v454
  %v643 = vadd.f32 %v97, %v565
  %v644 = vadd.f32 %v98, %v567
  %v645 = vadd.f32 %v99, %v458
  %v646 = vadd.f32 %v100, %v460
  %v647 = vadd.f32 %v101, %v571
  %v648 = vadd.f32 %v102, %v573
  %v649 = vadd.f32 %v103, %v462
  %v650 = vadd.f32 %v104, %v464
  %v651 = vadd.f32 %v105, %v575
  %v652 = vadd.f32 %v106, %v577
  %v653 = vadd.f32 %v107, %v468
  %v654 = vadd.f32 %v108, %v470
  %v655 = vadd.f32 %v109, %v581
  %v656 = vadd.f32 %v110, %v583
  %v657 = vadd.f32 %v111, %v472
  %v658 = vadd.f32 %v112, %v474
  %v659 = vadd.f32 %v113, %v585
  %v660 = vadd.f32 %v114, %v587
  %v661 = vadd.f32 %v115, %v478
  %v662 = vadd.f32 %v116, %v480
  %v663 = vadd.f32 %v117, %v591
  %v664 = vadd.f32 %v118, %v593
  %v665 = vadd.f32 %v119, %v482
  %v666 = vadd.f32 %v120, %v484
  %v667 = vadd.f32 %v121, %v595
  %v668 = vadd.f32 %v122, %v597
  %v669 = vadd.f32 %v123, %v488
  %v670 = vadd.f32 %v124, %v490
  %v671 = vadd.f32 %v125, %v601
  %v672 = vadd.f32 %v126, %v603
  %v673 = vadd.f32 %v127, %v492
  %v674 = vadd.f32 %v128, %v494
  %v675 = vadd.f32 %v129, %v605
  %v676 = vadd.f32 %v130, %v607
  %v677 = vadd.f32 %v131, %v498
  %v678 = vadd.f32 %v132, %v500
  %v679 = vadd.f32 %v133, %v611
  %v680 = vadd.f32 %v134, %v613
  %v681 = vadd.f32 %v135, %v502
  %v682 = vadd.f32 %v136, %v504
  %v683 = vadd.f32 %v137, %v615
  %v684 = vadd.f32 %v138, %v617
  %v685 = vadd.f32 %v139, %v508
  %v686 = vadd.f32 %v140, %v510
  %v687 = vadd.f32 %v141, %v621
  %v688 = vadd.f32 %v142, %v623
  %v689 = vadd.f32 %v143, %v512
  %v690 = vadd.f32 %v144, %v514
  %v691 = vadd.f32 %v145, %v625
  %v692 = vadd.f32 %v146, %v627
  %693 = vst [vmem:[#allocation2] sm:$0xff] %v629
  %694 = vst [vmem:[#allocation2 + $0x8] sm:$0xff] %v630
  %695 = vst [vmem:[#allocation2 + $0x10] sm:$0xff] %v631
  %696 = vst [vmem:[#allocation2 + $0x18] sm:$0xff] %v632
  %697 = vst [vmem:[#allocation2 + $0x20] sm:$0xff] %v633
  %698 = vst [vmem:[#allocation2 + $0x28] sm:$0xff] %v634
  %699 = vst [vmem:[#allocation2 + $0x30] sm:$0xff] %v635
  %700 = vst [vmem:[#allocation2 + $0x38] sm:$0xff] %v636
  %701 = vst [vmem:[#allocation2 + $0x40] sm:$0xff] %v637
  %702 = vst [vmem:[#allocation2 + $0x48] sm:$0xff] %v638
  %703 = vst [vmem:[#allocation2 + $0x50] sm:$0xff] %v639
  %704 = vst [vmem:[#allocation2 + $0x58] sm:$0xff] %v640
  %705 = vst [vmem:[#allocation2 + $0x60] sm:$0xff] %v641
  %706 = vst [vmem:[#allocation2 + $0x68] sm:$0xff] %v642
  %707 = vst [vmem:[#allocation2 + $0x70] sm:$0xff] %v643
  %708 = vst [vmem:[#allocation2 + $0x78] sm:$0xff] %v644
  %709 = vst [vmem:[#allocation2 + $0x80] sm:$0xff] %v645
  %710 = vst [vmem:[#allocation2 + $0x88] sm:$0xff] %v646
  %711 = vst [vmem:[#allocation2 + $0x90] sm:$0xff] %v647
  %712 = vst [vmem:[#allocation2 + $0x98] sm:$0xff] %v648
  %713 = vst [vmem:[#allocation2 + $0xa0] sm:$0xff] %v649
  %714 = vst [vmem:[#allocation2 + $0xa8] sm:$0xff] %v650
  %715 = vst [vmem:[#allocation2 + $0xb0] sm:$0xff] %v651
  %716 = vst [vmem:[#allocation2 + $0xb8] sm:$0xff] %v652
  %717 = vst [vmem:[#allocation2 + $0xc0] sm:$0xff] %v653
  %718 = vst [vmem:[#allocation2 + $0xc8] sm:$0xff] %v654
  %719 = vst [vmem:[#allocation2 + $0xd0] sm:$0xff] %v655
  %720 = vst [vmem:[#allocation2 + $0xd8] sm:$0xff] %v656
  %721 = vst [vmem:[#allocation2 + $0xe0] sm:$0xff] %v657
  %722 = vst [vmem:[#allocation2 + $0xe8] sm:$0xff] %v658
  %723 = vst [vmem:[#allocation2 + $0xf0] sm:$0xff] %v659
  %724 = vst [vmem:[#allocation2 + $0xf8] sm:$0xff] %v660
  %725 = vst [vmem:[#allocation2 + $0x100] sm:$0xff] %v661
  %726 = vst [vmem:[#allocation2 + $0x108] sm:$0xff] %v662
  %727 = vst [vmem:[#allocation2 + $0x110] sm:$0xff] %v663
  %728 = vst [vmem:[#allocation2 + $0x118] sm:$0xff] %v664
  %729 = vst [vmem:[#allocation2 + $0x120] sm:$0xff] %v665
  %730 = vst [vmem:[#allocation2 + $0x128] sm:$0xff] %v666
  %731 = vst [vmem:[#allocation2 + $0x130] sm:$0xff] %v667
  %732 = vst [vmem:[#allocation2 + $0x138] sm:$0xff] %v668
  %733 = vst [vmem:[#allocation2 + $0x140] sm:$0xff] %v669
  %734 = vst [vmem:[#allocation2 + $0x148] sm:$0xff] %v670
  %735 = vst [vmem:[#allocation2 + $0x150] sm:$0xff] %v671
  %736 = vst [vmem:[#allocation2 + $0x158] sm:$0xff] %v672
  %737 = vst [vmem:[#allocation2 + $0x160] sm:$0xff] %v673
  %738 = vst [vmem:[#allocation2 + $0x168] sm:$0xff] %v674
  %739 = vst [vmem:[#allocation2 + $0x170] sm:$0xff] %v675
  %740 = vst [vmem:[#allocation2 + $0x178] sm:$0xff] %v676
  %741 = vst [vmem:[#allocation2 + $0x180] sm:$0xff] %v677
  %742 = vst [vmem:[#allocation2 + $0x188] sm:$0xff] %v678
  %743 = vst [vmem:[#allocation2 + $0x190] sm:$0xff] %v679
  %744 = vst [vmem:[#allocation2 + $0x198] sm:$0xff] %v680
  %745 = vst [vmem:[#allocation2 + $0x1a0] sm:$0xff] %v681
  %746 = vst [vmem:[#allocation2 + $0x1a8] sm:$0xff] %v682
  %747 = vst [vmem:[#allocation2 + $0x1b0] sm:$0xff] %v683
  %748 = vst [vmem:[#allocation2 + $0x1b8] sm:$0xff] %v684
  %749 = vst [vmem:[#allocation2 + $0x1c0] sm:$0xff] %v685
  %750 = vst [vmem:[#allocation2 + $0x1c8] sm:$0xff] %v686
  %751 = vst [vmem:[#allocation2 + $0x1d0] sm:$0xff] %v687
  %752 = vst [vmem:[#allocation2 + $0x1d8] sm:$0xff] %v688
  %753 = vst [vmem:[#allocation2 + $0x1e0] sm:$0xff] %v689
  %754 = vst [vmem:[#allocation2 + $0x1e8] sm:$0xff] %v690
  %755 = vst [vmem:[#allocation2 + $0x1f0] sm:$0xff] %v691
  %756 = vst [vmem:[#allocation2 + $0x1f8] sm:$0xff] %v692
  // Predicated region
  $region18: #{rnn_model_forward.7} parent=0 // pred_check
    %p757 = pneg %p15
  $region19: #{rnn_model_forward.7} parent=0 // pred_check_branch
    %759 = sbr.rel (%p757) target = $region21
  $region20: #{rnn_model_forward.7} parent=0 // pred_region
    %v760 = vld [vmem:[#allocation2] sm:$0xff]
    %v761 = vld [vmem:[#allocation2 + $0x8] sm:$0xff]
    %v762 = vld [vmem:[#allocation2 + $0x10] sm:$0xff]
    %v763 = vld [vmem:[#allocation2 + $0x18] sm:$0xff]
    %v764 = vld [vmem:[#allocation2 + $0x20] sm:$0xff]
    %v765 = vld [vmem:[#allocation2 + $0x28] sm:$0xff]
    %v766 = vld [vmem:[#allocation2 + $0x30] sm:$0xff]
    %v767 = vld [vmem:[#allocation2 + $0x38] sm:$0xff]
    %v768 = vld [vmem:[#allocation2 + $0x40] sm:$0xff]
    %v769 = vld [vmem:[#allocation2 + $0x48] sm:$0xff]
    %v770 = vld [vmem:[#allocation2 + $0x50] sm:$0xff]
    %v771 = vld [vmem:[#allocation2 + $0x58] sm:$0xff]
    %v772 = vld [vmem:[#allocation2 + $0x60] sm:$0xff]
    %v773 = vld [vmem:[#allocation2 + $0x68] sm:$0xff]
    %v774 = vld [vmem:[#allocation2 + $0x70] sm:$0xff]
    %v775 = vld [vmem:[#allocation2 + $0x78] sm:$0xff]
    %v776 = vld [vmem:[#allocation2 + $0x80] sm:$0xff]
    %v777 = vld [vmem:[#allocation2 + $0x88] sm:$0xff]
    %v778 = vld [vmem:[#allocation2 + $0x90] sm:$0xff]
    %v779 = vld [vmem:[#allocation2 + $0x98] sm:$0xff]
    %v780 = vld [vmem:[#allocation2 + $0xa0] sm:$0xff]
    %v781 = vld [vmem:[#allocation2 + $0xa8] sm:$0xff]
    %v782 = vld [vmem:[#allocation2 + $0xb0] sm:$0xff]
    %v783 = vld [vmem:[#allocation2 + $0xb8] sm:$0xff]
    %v784 = vld [vmem:[#allocation2 + $0xc0] sm:$0xff]
    %v785 = vld [vmem:[#allocation2 + $0xc8] sm:$0xff]
    %v786 = vld [vmem:[#allocation2 + $0xd0] sm:$0xff]
    %v787 = vld [vmem:[#allocation2 + $0xd8] sm:$0xff]
    %v788 = vld [vmem:[#allocation2 + $0xe0] sm:$0xff]
    %v789 = vld [vmem:[#allocation2 + $0xe8] sm:$0xff]
    %v790 = vld [vmem:[#allocation2 + $0xf0] sm:$0xff]
    %v791 = vld [vmem:[#allocation2 + $0xf8] sm:$0xff]
    %v792 = vld [vmem:[#allocation2 + $0x100] sm:$0xff]
    %v793 = vld [vmem:[#allocation2 + $0x108] sm:$0xff]
    %v794 = vld [vmem:[#allocation2 + $0x110] sm:$0xff]
    %v795 = vld [vmem:[#allocation2 + $0x118] sm:$0xff]
    %v796 = vld [vmem:[#allocation2 + $0x120] sm:$0xff]
    %v797 = vld [vmem:[#allocation2 + $0x128] sm:$0xff]
    %v798 = vld [vmem:[#allocation2 + $0x130] sm:$0xff]
    %v799 = vld [vmem:[#allocation2 + $0x138] sm:$0xff]
    %v800 = vld [vmem:[#allocation2 + $0x140] sm:$0xff]
    %v801 = vld [vmem:[#allocation2 + $0x148] sm:$0xff]
    %v802 = vld [vmem:[#allocation2 + $0x150] sm:$0xff]
    %v803 = vld [vmem:[#allocation2 + $0x158] sm:$0xff]
    %v804 = vld [vmem:[#allocation2 + $0x160] sm:$0xff]
    %v805 = vld [vmem:[#allocation2 + $0x168] sm:$0xff]
    %v806 = vld [vmem:[#allocation2 + $0x170] sm:$0xff]
    %v807 = vld [vmem:[#allocation2 + $0x178] sm:$0xff]
    %v808 = vld [vmem:[#allocation2 + $0x180] sm:$0xff]
    %v809 = vld [vmem:[#allocation2 + $0x188] sm:$0xff]
    %v810 = vld [vmem:[#allocation2 + $0x190] sm:$0xff]
    %v811 = vld [vmem:[#allocation2 + $0x198] sm:$0xff]
    %v812 = vld [vmem:[#allocation2 + $0x1a0] sm:$0xff]
    %v813 = vld [vmem:[#allocation2 + $0x1a8] sm:$0xff]
    %v814 = vld [vmem:[#allocation2 + $0x1b0] sm:$0xff]
    %v815 = vld [vmem:[#allocation2 + $0x1b8] sm:$0xff]
    %v816 = vld [vmem:[#allocation2 + $0x1c0] sm:$0xff]
    %v817 = vld [vmem:[#allocation2 + $0x1c8] sm:$0xff]
    %v818 = vld [vmem:[#allocation2 + $0x1d0] sm:$0xff]
    %v819 = vld [vmem:[#allocation2 + $0x1d8] sm:$0xff]
    %v820 = vld [vmem:[#allocation2 + $0x1e0] sm:$0xff]
    %v821 = vld [vmem:[#allocation2 + $0x1e8] sm:$0xff]
    %v822 = vld [vmem:[#allocation2 + $0x1f0] sm:$0xff]
    %v823 = vld [vmem:[#allocation2 + $0x1f8] sm:$0xff]
    %v824 = vld [vmem:[%s2] sm:$0xf]
    %v826 = vlaneseq
    %v827 = vshrl.u32 %v826, 7
    %v828 = vsub.s32 0, %v827
    %v829 = vrot.slane %v824, %v828
    %v830 = vlaneseq
    %v831 = vshrl.u32 %v830, 7
    %v832 = vsub.s32 1, %v831
    %v833 = vrot.slane %v824, %v832
    %v834 = vlaneseq
    %v835 = vshrl.u32 %v834, 7
    %v836 = vsub.s32 2, %v835
    %v837 = vrot.slane %v824, %v836
    %v838 = vlaneseq
    %v839 = vshrl.u32 %v838, 7
    %v840 = vsub.s32 3, %v839
    %v841 = vrot.slane %v824, %v840
    %v846 = vadd.f32 %v760, %v829
    %v847 = vadd.f32 %v761, %v833
    %v848 = vadd.f32 %v762, %v837
    %v849 = vadd.f32 %v763, %v841
    %v850 = vadd.f32 %v764, %v829
    %v851 = vadd.f32 %v765, %v833
    %v852 = vadd.f32 %v766, %v837
    %v853 = vadd.f32 %v767, %v841
    %v854 = vadd.f32 %v768, %v829
    %v855 = vadd.f32 %v769, %v833
    %v856 = vadd.f32 %v770, %v837
    %v857 = vadd.f32 %v771, %v841
    %v858 = vadd.f32 %v772, %v829
    %v859 = vadd.f32 %v773, %v833
    %v860 = vadd.f32 %v774, %v837
    %v861 = vadd.f32 %v775, %v841
    %v862 = vadd.f32 %v776, %v829
    %v863 = vadd.f32 %v777, %v833
    %v864 = vadd.f32 %v778, %v837
    %v865 = vadd.f32 %v779, %v841
    %v866 = vadd.f32 %v780, %v829
    %v867 = vadd.f32 %v781, %v833
    %v868 = vadd.f32 %v782, %v837
    %v869 = vadd.f32 %v783, %v841
    %v870 = vadd.f32 %v784, %v829
    %v871 = vadd.f32 %v785, %v833
    %v872 = vadd.f32 %v786, %v837
    %v873 = vadd.f32 %v787, %v841
    %v874 = vadd.f32 %v788, %v829
    %v875 = vadd.f32 %v789, %v833
    %v876 = vadd.f32 %v790, %v837
    %v877 = vadd.f32 %v791, %v841
    %v878 = vadd.f32 %v792, %v829
    %v879 = vadd.f32 %v793, %v833
    %v880 = vadd.f32 %v794, %v837
    %v881 = vadd.f32 %v795, %v841
    %v882 = vadd.f32 %v796, %v829
    %v883 = vadd.f32 %v797, %v833
    %v884 = vadd.f32 %v798, %v837
    %v885 = vadd.f32 %v799, %v841
    %v886 = vadd.f32 %v800, %v829
    %v887 = vadd.f32 %v801, %v833
    %v888 = vadd.f32 %v802, %v837
    %v889 = vadd.f32 %v803, %v841
    %v890 = vadd.f32 %v804, %v829
    %v891 = vadd.f32 %v805, %v833
    %v892 = vadd.f32 %v806, %v837
    %v893 = vadd.f32 %v807, %v841
    %v894 = vadd.f32 %v808, %v829
    %v895 = vadd.f32 %v809, %v833
    %v896 = vadd.f32 %v810, %v837
    %v897 = vadd.f32 %v811, %v841
    %v898 = vadd.f32 %v812, %v829
    %v899 = vadd.f32 %v813, %v833
    %v900 = vadd.f32 %v814, %v837
    %v901 = vadd.f32 %v815, %v841
    %v902 = vadd.f32 %v816, %v829
    %v903 = vadd.f32 %v817, %v833
    %v904 = vadd.f32 %v818, %v837
    %v905 = vadd.f32 %v819, %v841
    %v906 = vadd.f32 %v820, %v829
    %v907 = vadd.f32 %v821, %v833
    %v908 = vadd.f32 %v822, %v837
    %v909 = vadd.f32 %v823, %v841
    %910 = vst [vmem:[%s3] sm:$0xff] %v846
    %911 = vst [vmem:[%s3 + $0x8] sm:$0xff] %v847
    %912 = vst [vmem:[%s3 + $0x10] sm:$0xff] %v848
    %913 = vst [vmem:[%s3 + $0x18] sm:$0xff] %v849
    %914 = vst [vmem:[%s3 + $0x20] sm:$0xff] %v850
    %915 = vst [vmem:[%s3 + $0x28] sm:$0xff] %v851
    %916 = vst [vmem:[%s3 + $0x30] sm:$0xff] %v852
    %917 = vst [vmem:[%s3 + $0x38] sm:$0xff] %v853
    %918 = vst [vmem:[%s3 + $0x40] sm:$0xff] %v854
    %919 = vst [vmem:[%s3 + $0x48] sm:$0xff] %v855
    %920 = vst [vmem:[%s3 + $0x50] sm:$0xff] %v856
    %921 = vst [vmem:[%s3 + $0x58] sm:$0xff] %v857
    %922 = vst [vmem:[%s3 + $0x60] sm:$0xff] %v858
    %923 = vst [vmem:[%s3 + $0x68] sm:$0xff] %v859
    %924 = vst [vmem:[%s3 + $0x70] sm:$0xff] %v860
    %925 = vst [vmem:[%s3 + $0x78] sm:$0xff] %v861
    %926 = vst [vmem:[%s3 + $0x80] sm:$0xff] %v862
    %927 = vst [vmem:[%s3 + $0x88] sm:$0xff] %v863
    %928 = vst [vmem:[%s3 + $0x90] sm:$0xff] %v864
    %929 = vst [vmem:[%s3 + $0x98] sm:$0xff] %v865
    %930 = vst [vmem:[%s3 + $0xa0] sm:$0xff] %v866
    %931 = vst [vmem:[%s3 + $0xa8] sm:$0xff] %v867
    %932 = vst [vmem:[%s3 + $0xb0] sm:$0xff] %v868
    %933 = vst [vmem:[%s3 + $0xb8] sm:$0xff] %v869
    %934 = vst [vmem:[%s3 + $0xc0] sm:$0xff] %v870
    %935 = vst [vmem:[%s3 + $0xc8] sm:$0xff] %v871
    %936 = vst [vmem:[%s3 + $0xd0] sm:$0xff] %v872
    %937 = vst [vmem:[%s3 + $0xd8] sm:$0xff] %v873
    %938 = vst [vmem:[%s3 + $0xe0] sm:$0xff] %v874
    %939 = vst [vmem:[%s3 + $0xe8] sm:$0xff] %v875
    %940 = vst [vmem:[%s3 + $0xf0] sm:$0xff] %v876
    %941 = vst [vmem:[%s3 + $0xf8] sm:$0xff] %v877
    %942 = vst [vmem:[%s3 + $0x100] sm:$0xff] %v878
    %943 = vst [vmem:[%s3 + $0x108] sm:$0xff] %v879
    %944 = vst [vmem:[%s3 + $0x110] sm:$0xff] %v880
    %945 = vst [vmem:[%s3 + $0x118] sm:$0xff] %v881
    %946 = vst [vmem:[%s3 + $0x120] sm:$0xff] %v882
    %947 = vst [vmem:[%s3 + $0x128] sm:$0xff] %v883
    %948 = vst [vmem:[%s3 + $0x130] sm:$0xff] %v884
    %949 = vst [vmem:[%s3 + $0x138] sm:$0xff] %v885
    %950 = vst [vmem:[%s3 + $0x140] sm:$0xff] %v886
    %951 = vst [vmem:[%s3 + $0x148] sm:$0xff] %v887
    %952 = vst [vmem:[%s3 + $0x150] sm:$0xff] %v888
    %953 = vst [vmem:[%s3 + $0x158] sm:$0xff] %v889
    %954 = vst [vmem:[%s3 + $0x160] sm:$0xff] %v890
    %955 = vst [vmem:[%s3 + $0x168] sm:$0xff] %v891
    %956 = vst [vmem:[%s3 + $0x170] sm:$0xff] %v892
    %957 = vst [vmem:[%s3 + $0x178] sm:$0xff] %v893
    %958 = vst [vmem:[%s3 + $0x180] sm:$0xff] %v894
    %959 = vst [vmem:[%s3 + $0x188] sm:$0xff] %v895
    %960 = vst [vmem:[%s3 + $0x190] sm:$0xff] %v896
    %961 = vst [vmem:[%s3 + $0x198] sm:$0xff] %v897
    %962 = vst [vmem:[%s3 + $0x1a0] sm:$0xff] %v898
    %963 = vst [vmem:[%s3 + $0x1a8] sm:$0xff] %v899
    %964 = vst [vmem:[%s3 + $0x1b0] sm:$0xff] %v900
    %965 = vst [vmem:[%s3 + $0x1b8] sm:$0xff] %v901
    %966 = vst [vmem:[%s3 + $0x1c0] sm:$0xff] %v902
    %967 = vst [vmem:[%s3 + $0x1c8] sm:$0xff] %v903
    %968 = vst [vmem:[%s3 + $0x1d0] sm:$0xff] %v904
    %969 = vst [vmem:[%s3 + $0x1d8] sm:$0xff] %v905
    %970 = vst [vmem:[%s3 + $0x1e0] sm:$0xff] %v906
    %971 = vst [vmem:[%s3 + $0x1e8] sm:$0xff] %v907
    %972 = vst [vmem:[%s3 + $0x1f0] sm:$0xff] %v908
    %973 = vst [vmem:[%s3 + $0x1f8] sm:$0xff] %v909
  $region21: #{rnn_model_forward.7} parent=0 // pred_fallthru
    _
  // Predicated region
  $region22: #{rnn_model_forward.7} parent=0 // pred_check
    _
  $region23: #{rnn_model_forward.7} parent=0 // pred_check_branch
    %975 = sbr.rel (0) target = $region25
  $region24: #{rnn_model_forward.7} parent=0 // pred_region
    _
  $region25: #{rnn_model_forward.7} parent=0 // pred_fallthru
    _
  // Predicated region
  $region26: #{rnn_model_forward.7} parent=0 // pred_check
    _
  $region27: #{rnn_model_forward.7} parent=0 // pred_check_branch
    %977 = sbr.rel (0) target = $region29
  $region28: #{rnn_model_forward.7} parent=0 // pred_region
    _
  $region29: #{rnn_model_forward.7} parent=0 // pred_fallthru
    _

// kernel: rnn_model_forward.5
$region0: #{rnn_model_forward.5}
  #allocation0 [shape = 'u32[]', space=smem, size = 0x4, offset = 0x4, fixed_abs, tag = 'smem constant byte address 0x4 - core index']
  #allocation1 [shape = 'u32[144,128]{1,0:T(1,128)}', space=vmem, size = 0x12000, scoped, tag = 'internal scratch']
  #allocation2 [shape = 'f32[128,512]{1,0:T(8,128)}', space=vmem, size = 0x40000, scoped, tag = 'scratch operand']
  %s0 = inlined_call_operand.vmem [shape: bf16[128,64], index: 0, kind: input, shape index: {}]
  %s1 = inlined_call_operand.vmem [shape: bf16[64,512], index: 1, kind: input, shape index: {}]
  %s2 = inlined_call_operand.vmem [shape: f32[1,512], index: 2, kind: input, shape index: {}]
  %s3 = inlined_call_operand.vmem [shape: f32[128,512], index: 3, kind: output, shape index: {}]
  %s4 = sld [smem:[#allocation0]]
  $region30: #{rnn_model_forward.5} parent=0
    _
  %s6 = ssub.s32 1, %s4
  %s7 = scalar_select 0, %s6, %s4
  // Predicated region
  $region2: #{rnn_model_forward.5} parent=0 // pred_check
    _
  $region3: #{rnn_model_forward.5} parent=0 // pred_check_branch
    %9 = sbr.rel (0) target = $region5
  $region4: #{rnn_model_forward.5} parent=0 // pred_region
    _
  $region5: #{rnn_model_forward.5} parent=0 // pred_fallthru
    _
  // Predicated region
  $region6: #{rnn_model_forward.5} parent=0 // pred_check
    _
  $region7: #{rnn_model_forward.5} parent=0 // pred_check_branch
    %11 = sbr.rel (0) target = $region9
  $region8: #{rnn_model_forward.5} parent=0 // pred_region
    _
  $region9: #{rnn_model_forward.5} parent=0 // pred_fallthru
    _
  // Predicated region
  $region10: #{rnn_model_forward.5} parent=0 // pred_check
    _
  $region11: #{rnn_model_forward.5} parent=0 // pred_check_branch
    %13 = sbr.rel (0) target = $region13
  $region12: #{rnn_model_forward.5} parent=0 // pred_region
    _
  $region13: #{rnn_model_forward.5} parent=0 // pred_fallthru
    _
  %p15 = scmp.eq.s32.totalorder 0, 0
  // Predicated region
  $region14: #{rnn_model_forward.5} parent=0 // pred_check
    %p16 = pneg %p15
  $region15: #{rnn_model_forward.5} parent=0 // pred_check_branch
    %18 = sbr.rel (%p16) target = $region17
  $region16: #{rnn_model_forward.5} parent=0 // pred_region
    %19 = vst [vmem:[#allocation2] sm:$0xff] 0.0
    %20 = vst [vmem:[#allocation2 + $0x8] sm:$0xff] 0.0
    %21 = vst [vmem:[#allocation2 + $0x10] sm:$0xff] 0.0
    %22 = vst [vmem:[#allocation2 + $0x18] sm:$0xff] 0.0
    %23 = vst [vmem:[#allocation2 + $0x20] sm:$0xff] 0.0
    %24 = vst [vmem:[#allocation2 + $0x28] sm:$0xff] 0.0
    %25 = vst [vmem:[#allocation2 + $0x30] sm:$0xff] 0.0
    %26 = vst [vmem:[#allocation2 + $0x38] sm:$0xff] 0.0
    %27 = vst [vmem:[#allocation2 + $0x40] sm:$0xff] 0.0
    %28 = vst [vmem:[#allocation2 + $0x48] sm:$0xff] 0.0
    %29 = vst [vmem:[#allocation2 + $0x50] sm:$0xff] 0.0
    %30 = vst [vmem:[#allocation2 + $0x58] sm:$0xff] 0.0
    %31 = vst [vmem:[#allocation2 + $0x60] sm:$0xff] 0.0
    %32 = vst [vmem:[#allocation2 + $0x68] sm:$0xff] 0.0
    %33 = vst [vmem:[#allocation2 + $0x70] sm:$0xff] 0.0
    %34 = vst [vmem:[#allocation2 + $0x78] sm:$0xff] 0.0
    %35 = vst [vmem:[#allocation2 + $0x80] sm:$0xff] 0.0
    %36 = vst [vmem:[#allocation2 + $0x88] sm:$0xff] 0.0
    %37 = vst [vmem:[#allocation2 + $0x90] sm:$0xff] 0.0
    %38 = vst [vmem:[#allocation2 + $0x98] sm:$0xff] 0.0
    %39 = vst [vmem:[#allocation2 + $0xa0] sm:$0xff] 0.0
    %40 = vst [vmem:[#allocation2 + $0xa8] sm:$0xff] 0.0
    %41 = vst [vmem:[#allocation2 + $0xb0] sm:$0xff] 0.0
    %42 = vst [vmem:[#allocation2 + $0xb8] sm:$0xff] 0.0
    %43 = vst [vmem:[#allocation2 + $0xc0] sm:$0xff] 0.0
    %44 = vst [vmem:[#allocation2 + $0xc8] sm:$0xff] 0.0
    %45 = vst [vmem:[#allocation2 + $0xd0] sm:$0xff] 0.0
    %46 = vst [vmem:[#allocation2 + $0xd8] sm:$0xff] 0.0
    %47 = vst [vmem:[#allocation2 + $0xe0] sm:$0xff] 0.0
    %48 = vst [vmem:[#allocation2 + $0xe8] sm:$0xff] 0.0
    %49 = vst [vmem:[#allocation2 + $0xf0] sm:$0xff] 0.0
    %50 = vst [vmem:[#allocation2 + $0xf8] sm:$0xff] 0.0
    %51 = vst [vmem:[#allocation2 + $0x100] sm:$0xff] 0.0
    %52 = vst [vmem:[#allocation2 + $0x108] sm:$0xff] 0.0
    %53 = vst [vmem:[#allocation2 + $0x110] sm:$0xff] 0.0
    %54 = vst [vmem:[#allocation2 + $0x118] sm:$0xff] 0.0
    %55 = vst [vmem:[#allocation2 + $0x120] sm:$0xff] 0.0
    %56 = vst [vmem:[#allocation2 + $0x128] sm:$0xff] 0.0
    %57 = vst [vmem:[#allocation2 + $0x130] sm:$0xff] 0.0
    %58 = vst [vmem:[#allocation2 + $0x138] sm:$0xff] 0.0
    %59 = vst [vmem:[#allocation2 + $0x140] sm:$0xff] 0.0
    %60 = vst [vmem:[#allocation2 + $0x148] sm:$0xff] 0.0
    %61 = vst [vmem:[#allocation2 + $0x150] sm:$0xff] 0.0
    %62 = vst [vmem:[#allocation2 + $0x158] sm:$0xff] 0.0
    %63 = vst [vmem:[#allocation2 + $0x160] sm:$0xff] 0.0
    %64 = vst [vmem:[#allocation2 + $0x168] sm:$0xff] 0.0
    %65 = vst [vmem:[#allocation2 + $0x170] sm:$0xff] 0.0
    %66 = vst [vmem:[#allocation2 + $0x178] sm:$0xff] 0.0
    %67 = vst [vmem:[#allocation2 + $0x180] sm:$0xff] 0.0
    %68 = vst [vmem:[#allocation2 + $0x188] sm:$0xff] 0.0
    %69 = vst [vmem:[#allocation2 + $0x190] sm:$0xff] 0.0
    %70 = vst [vmem:[#allocation2 + $0x198] sm:$0xff] 0.0
    %71 = vst [vmem:[#allocation2 + $0x1a0] sm:$0xff] 0.0
    %72 = vst [vmem:[#allocation2 + $0x1a8] sm:$0xff] 0.0
    %73 = vst [vmem:[#allocation2 + $0x1b0] sm:$0xff] 0.0
    %74 = vst [vmem:[#allocation2 + $0x1b8] sm:$0xff] 0.0
    %75 = vst [vmem:[#allocation2 + $0x1c0] sm:$0xff] 0.0
    %76 = vst [vmem:[#allocation2 + $0x1c8] sm:$0xff] 0.0
    %77 = vst [vmem:[#allocation2 + $0x1d0] sm:$0xff] 0.0
    %78 = vst [vmem:[#allocation2 + $0x1d8] sm:$0xff] 0.0
    %79 = vst [vmem:[#allocation2 + $0x1e0] sm:$0xff] 0.0
    %80 = vst [vmem:[#allocation2 + $0x1e8] sm:$0xff] 0.0
    %81 = vst [vmem:[#allocation2 + $0x1f0] sm:$0xff] 0.0
    %82 = vst [vmem:[#allocation2 + $0x1f8] sm:$0xff] 0.0
  $region17: #{rnn_model_forward.5} parent=0 // pred_fallthru
    _
  %v83 = vld [vmem:[#allocation2] sm:$0xff]
  %v84 = vld [vmem:[#allocation2 + $0x8] sm:$0xff]
  %v85 = vld [vmem:[#allocation2 + $0x10] sm:$0xff]
  %v86 = vld [vmem:[#allocation2 + $0x18] sm:$0xff]
  %v87 = vld [vmem:[#allocation2 + $0x20] sm:$0xff]
  %v88 = vld [vmem:[#allocation2 + $0x28] sm:$0xff]
  %v89 = vld [vmem:[#allocation2 + $0x30] sm:$0xff]
  %v90 = vld [vmem:[#allocation2 + $0x38] sm:$0xff]
  %v91 = vld [vmem:[#allocation2 + $0x40] sm:$0xff]
  %v92 = vld [vmem:[#allocation2 + $0x48] sm:$0xff]
  %v93 = vld [vmem:[#allocation2 + $0x50] sm:$0xff]
  %v94 = vld [vmem:[#allocation2 + $0x58] sm:$0xff]
  %v95 = vld [vmem:[#allocation2 + $0x60] sm:$0xff]
  %v96 = vld [vmem:[#allocation2 + $0x68] sm:$0xff]
  %v97 = vld [vmem:[#allocation2 + $0x70] sm:$0xff]
  %v98 = vld [vmem:[#allocation2 + $0x78] sm:$0xff]
  %v99 = vld [vmem:[#allocation2 + $0x80] sm:$0xff]
  %v100 = vld [vmem:[#allocation2 + $0x88] sm:$0xff]
  %v101 = vld [vmem:[#allocation2 + $0x90] sm:$0xff]
  %v102 = vld [vmem:[#allocation2 + $0x98] sm:$0xff]
  %v103 = vld [vmem:[#allocation2 + $0xa0] sm:$0xff]
  %v104 = vld [vmem:[#allocation2 + $0xa8] sm:$0xff]
  %v105 = vld [vmem:[#allocation2 + $0xb0] sm:$0xff]
  %v106 = vld [vmem:[#allocation2 + $0xb8] sm:$0xff]
  %v107 = vld [vmem:[#allocation2 + $0xc0] sm:$0xff]
  %v108 = vld [vmem:[#allocation2 + $0xc8] sm:$0xff]
  %v109 = vld [vmem:[#allocation2 + $0xd0] sm:$0xff]
  %v110 = vld [vmem:[#allocation2 + $0xd8] sm:$0xff]
  %v111 = vld [vmem:[#allocation2 + $0xe0] sm:$0xff]
  %v112 = vld [vmem:[#allocation2 + $0xe8] sm:$0xff]
  %v113 = vld [vmem:[#allocation2 + $0xf0] sm:$0xff]
  %v114 = vld [vmem:[#allocation2 + $0xf8] sm:$0xff]
  %v115 = vld [vmem:[#allocation2 + $0x100] sm:$0xff]
  %v116 = vld [vmem:[#allocation2 + $0x108] sm:$0xff]
  %v117 = vld [vmem:[#allocation2 + $0x110] sm:$0xff]
  %v118 = vld [vmem:[#allocation2 + $0x118] sm:$0xff]
  %v119 = vld [vmem:[#allocation2 + $0x120] sm:$0xff]
  %v120 = vld [vmem:[#allocation2 + $0x128] sm:$0xff]
  %v121 = vld [vmem:[#allocation2 + $0x130] sm:$0xff]
  %v122 = vld [vmem:[#allocation2 + $0x138] sm:$0xff]
  %v123 = vld [vmem:[#allocation2 + $0x140] sm:$0xff]
  %v124 = vld [vmem:[#allocation2 + $0x148] sm:$0xff]
  %v125 = vld [vmem:[#allocation2 + $0x150] sm:$0xff]
  %v126 = vld [vmem:[#allocation2 + $0x158] sm:$0xff]
  %v127 = vld [vmem:[#allocation2 + $0x160] sm:$0xff]
  %v128 = vld [vmem:[#allocation2 + $0x168] sm:$0xff]
  %v129 = vld [vmem:[#allocation2 + $0x170] sm:$0xff]
  %v130 = vld [vmem:[#allocation2 + $0x178] sm:$0xff]
  %v131 = vld [vmem:[#allocation2 + $0x180] sm:$0xff]
  %v132 = vld [vmem:[#allocation2 + $0x188] sm:$0xff]
  %v133 = vld [vmem:[#allocation2 + $0x190] sm:$0xff]
  %v134 = vld [vmem:[#allocation2 + $0x198] sm:$0xff]
  %v135 = vld [vmem:[#allocation2 + $0x1a0] sm:$0xff]
  %v136 = vld [vmem:[#allocation2 + $0x1a8] sm:$0xff]
  %v137 = vld [vmem:[#allocation2 + $0x1b0] sm:$0xff]
  %v138 = vld [vmem:[#allocation2 + $0x1b8] sm:$0xff]
  %v139 = vld [vmem:[#allocation2 + $0x1c0] sm:$0xff]
  %v140 = vld [vmem:[#allocation2 + $0x1c8] sm:$0xff]
  %v141 = vld [vmem:[#allocation2 + $0x1d0] sm:$0xff]
  %v142 = vld [vmem:[#allocation2 + $0x1d8] sm:$0xff]
  %v143 = vld [vmem:[#allocation2 + $0x1e0] sm:$0xff]
  %v144 = vld [vmem:[#allocation2 + $0x1e8] sm:$0xff]
  %v145 = vld [vmem:[#allocation2 + $0x1f0] sm:$0xff]
  %v146 = vld [vmem:[#allocation2 + $0x1f8] sm:$0xff]
  %v147 = vld [vmem:[%s0] sm:$0xf]
  %v148 = vld [vmem:[%s0 + $0x4] sm:$0xf]
  %v149 = vld [vmem:[%s0 + $0x8] sm:$0xf]
  %v150 = vld [vmem:[%s0 + $0xc] sm:$0xf]
  %v151 = vld [vmem:[%s0 + $0x10] sm:$0xf]
  %v152 = vld [vmem:[%s0 + $0x14] sm:$0xf]
  %v153 = vld [vmem:[%s0 + $0x18] sm:$0xf]
  %v154 = vld [vmem:[%s0 + $0x1c] sm:$0xf]
  %v155 = vld [vmem:[%s0 + $0x20] sm:$0xf]
  %v156 = vld [vmem:[%s0 + $0x24] sm:$0xf]
  %v157 = vld [vmem:[%s0 + $0x28] sm:$0xf]
  %v158 = vld [vmem:[%s0 + $0x2c] sm:$0xf]
  %v159 = vld [vmem:[%s0 + $0x30] sm:$0xf]
  %v160 = vld [vmem:[%s0 + $0x34] sm:$0xf]
  %v161 = vld [vmem:[%s0 + $0x38] sm:$0xf]
  %v162 = vld [vmem:[%s0 + $0x3c] sm:$0xf]
  %v163 = vld [vmem:[%s1] sm:$0xff]
  %v164 = vld [vmem:[%s1 + $0x8] sm:$0xff]
  %v165 = vld [vmem:[%s1 + $0x10] sm:$0xff]
  %v166 = vld [vmem:[%s1 + $0x18] sm:$0xff]
  %v167 = vld [vmem:[%s1 + $0x20] sm:$0xff]
  %v168 = vld [vmem:[%s1 + $0x28] sm:$0xff]
  %v169 = vld [vmem:[%s1 + $0x30] sm:$0xff]
  %v170 = vld [vmem:[%s1 + $0x38] sm:$0xff]
  %v171 = vld [vmem:[%s1 + $0x40] sm:$0xff]
  %v172 = vld [vmem:[%s1 + $0x48] sm:$0xff]
  %v173 = vld [vmem:[%s1 + $0x50] sm:$0xff]
  %v174 = vld [vmem:[%s1 + $0x58] sm:$0xff]
  %v175 = vld [vmem:[%s1 + $0x60] sm:$0xff]
  %v176 = vld [vmem:[%s1 + $0x68] sm:$0xff]
  %v177 = vld [vmem:[%s1 + $0x70] sm:$0xff]
  %v178 = vld [vmem:[%s1 + $0x78] sm:$0xff]
  %v195 = vunpack.c.l.b16 %v147
  %v196 = vunpack.c.l.b16 %v148
  %v197 = vunpack.c.l.b16 %v149
  %v198 = vunpack.c.l.b16 %v150
  %v199 = vunpack.c.l.b16 %v151
  %v200 = vunpack.c.l.b16 %v152
  %v201 = vunpack.c.l.b16 %v153
  %v202 = vunpack.c.l.b16 %v154
  %v203 = vunpack.c.l.b16 %v155
  %v204 = vunpack.c.l.b16 %v156
  %v205 = vunpack.c.l.b16 %v157
  %v206 = vunpack.c.l.b16 %v158
  %v207 = vunpack.c.l.b16 %v159
  %v208 = vunpack.c.l.b16 %v160
  %v209 = vunpack.c.l.b16 %v161
  %v210 = vunpack.c.l.b16 %v162
  %v211 = vpack.c.b16 %v196, %v195
  %v212 = vpack.c.b16 %v198, %v197
  %v213 = vpack.c.b16 %v200, %v199
  %v214 = vpack.c.b16 %v202, %v201
  %v215 = vpack.c.b16 %v204, %v203
  %v216 = vpack.c.b16 %v206, %v205
  %v217 = vpack.c.b16 %v208, %v207
  %v218 = vpack.c.b16 %v210, %v209
  %v235 = vunpack.c.l.b16 %v163
  %v236 = vunpack.c.h.b16 %v163
  %v237 = vunpack.c.l.b16 %v164
  %v238 = vunpack.c.h.b16 %v164
  %v239 = vunpack.c.l.b16 %v165
  %v240 = vunpack.c.h.b16 %v165
  %v241 = vunpack.c.l.b16 %v166
  %v242 = vunpack.c.h.b16 %v166
  %v243 = vunpack.c.l.b16 %v167
  %v244 = vunpack.c.h.b16 %v167
  %v245 = vunpack.c.l.b16 %v168
  %v246 = vunpack.c.h.b16 %v168
  %v247 = vunpack.c.l.b16 %v169
  %v248 = vunpack.c.h.b16 %v169
  %v249 = vunpack.c.l.b16 %v170
  %v250 = vunpack.c.h.b16 %v170
  %v251 = vunpack.c.l.b16 %v171
  %v252 = vunpack.c.h.b16 %v171
  %v253 = vunpack.c.l.b16 %v172
  %v254 = vunpack.c.h.b16 %v172
  %v255 = vunpack.c.l.b16 %v173
  %v256 = vunpack.c.h.b16 %v173
  %v257 = vunpack.c.l.b16 %v174
  %v258 = vunpack.c.h.b16 %v174
  %v259 = vunpack.c.l.b16 %v175
  %v260 = vunpack.c.h.b16 %v175
  %v261 = vunpack.c.l.b16 %v176
  %v262 = vunpack.c.h.b16 %v176
  %v263 = vunpack.c.l.b16 %v177
  %v264 = vunpack.c.h.b16 %v177
  %v265 = vunpack.c.l.b16 %v178
  %v266 = vunpack.c.h.b16 %v178
  %v267 = vpack.c.b16 %v239, %v235
  %v268 = vpack.c.b16 %v240, %v236
  %v269 = vpack.c.b16 %v241, %v237
  %v270 = vpack.c.b16 %v242, %v238
  %v271 = vpack.c.b16 %v247, %v243
  %v272 = vpack.c.b16 %v248, %v244
  %v273 = vpack.c.b16 %v249, %v245
  %v274 = vpack.c.b16 %v250, %v246
  %v275 = vpack.c.b16 %v255, %v251
  %v276 = vpack.c.b16 %v256, %v252
  %v277 = vpack.c.b16 %v257, %v253
  %v278 = vpack.c.b16 %v258, %v254
  %v279 = vpack.c.b16 %v263, %v259
  %v280 = vpack.c.b16 %v264, %v260
  %v281 = vpack.c.b16 %v265, %v261
  %v282 = vpack.c.b16 %v266, %v262
  %vm299 = vcmask 523264
  %v301 = vsel %vm299, %v211, 0
  %v304 = vsel %vm299, %v212, 0
  %v307 = vsel %vm299, %v213, 0
  %v310 = vsel %vm299, %v214, 0
  %v313 = vsel %vm299, %v215, 0
  %v316 = vsel %vm299, %v216, 0
  %v319 = vsel %vm299, %v217, 0
  %v322 = vsel %vm299, %v218, 0
  %324 = vmatprep.subr.bf16.mxu0 %v268
  %325 = vmatpush1.bf16.msra.mxu0 %v267
  %326 = vmatprep.subr.bf16.mxu0 %v272
  %327 = vmatpush1.bf16.msra.mxu0 %v271
  %328 = vmatprep.subr.bf16.mxu0 %v276
  %329 = vmatpush1.bf16.msra.mxu0 %v275
  %330 = vmatprep.subr.bf16.mxu0 %v280
  %331 = vmatpush1.bf16.msra.mxu0 %v279
  %332 = vmatprep.subr.bf16.mxu0 0
  %333 = vmatpush1.bf16.msra.mxu0 0
  %334 = vmatprep.subr.bf16.mxu0 0
  %335 = vmatpush1.bf16.msra.mxu0 0
  %336 = vmatprep.subr.bf16.mxu0 0
  %337 = vmatpush1.bf16.msra.mxu0 0
  %338 = vmatprep.subr.bf16.mxu0 0
  %339 = vmatpush1.bf16.msra.mxu0 0
  %340 = vmatprep.subr.bf16.mxu0 0
  %341 = vmatpush1.bf16.msra.mxu0 0
  %342 = vmatprep.subr.bf16.mxu0 0
  %343 = vmatpush1.bf16.msra.mxu0 0
  %344 = vmatprep.subr.bf16.mxu0 0
  %345 = vmatpush1.bf16.msra.mxu0 0
  %346 = vmatprep.subr.bf16.mxu0 0
  %347 = vmatpush1.bf16.msra.mxu0 0
  %348 = vmatprep.subr.bf16.mxu0 0
  %349 = vmatpush1.bf16.msra.mxu0 0
  %350 = vmatprep.subr.bf16.mxu0 0
  %351 = vmatpush1.bf16.msra.mxu0 0
  %352 = vmatprep.subr.bf16.mxu0 0
  %353 = vmatpush1.bf16.msra.mxu0 0
  %354 = vmatprep.subr.bf16.mxu0 0
  %355 = vmatpush1.bf16.msra.mxu0 0
  %356 = vmatprep.mubr.bf16.mxu0 0
  %357 = vmatmul.mubr.bf16.gmra.mrb[0].mxu0 %v301
  %v358 = vpop.f32.mrb[0].mxu0
  %v359 = vadd.f32 0.0, %v358
  %v360 = vpop.f32.mrb[0].mxu0
  %v361 = vadd.f32 0.0, %v360
  %v362 = vpop.f32.mrb[0].mxu0
  %v363 = vadd.f32 0.0, %v362
  %v364 = vpop.f32.mrb[0].mxu0
  %v365 = vadd.f32 0.0, %v364
  %366 = vmatprep.mubr.bf16.mxu0 0
  %367 = vmatmul.mubr.bf16.gmra.mrb[0].mxu0 %v304
  %v368 = vpop.f32.mrb[0].mxu0
  %v369 = vadd.f32 0.0, %v368
  %v370 = vpop.f32.mrb[0].mxu0
  %v371 = vadd.f32 0.0, %v370
  %v372 = vpop.f32.mrb[0].mxu0
  %v373 = vadd.f32 0.0, %v372
  %v374 = vpop.f32.mrb[0].mxu0
  %v375 = vadd.f32 0.0, %v374
  %376 = vmatprep.mubr.bf16.mxu0 0
  %377 = vmatmul.mubr.bf16.gmra.mrb[0].mxu0 %v307
  %v378 = vpop.f32.mrb[0].mxu0
  %v379 = vadd.f32 0.0, %v378
  %v380 = vpop.f32.mrb[0].mxu0
  %v381 = vadd.f32 0.0, %v380
  %v382 = vpop.f32.mrb[0].mxu0
  %v383 = vadd.f32 0.0, %v382
  %v384 = vpop.f32.mrb[0].mxu0
  %v385 = vadd.f32 0.0, %v384
  %386 = vmatprep.mubr.bf16.mxu0 0
  %387 = vmatmul.mubr.bf16.gmra.mrb[0].mxu0 %v310
  %v388 = vpop.f32.mrb[0].mxu0
  %v389 = vadd.f32 0.0, %v388
  %v390 = vpop.f32.mrb[0].mxu0
  %v391 = vadd.f32 0.0, %v390
  %v392 = vpop.f32.mrb[0].mxu0
  %v393 = vadd.f32 0.0, %v392
  %v394 = vpop.f32.mrb[0].mxu0
  %v395 = vadd.f32 0.0, %v394
  %396 = vmatprep.mubr.bf16.mxu0 0
  %397 = vmatmul.mubr.bf16.gmra.mrb[0].mxu0 %v313
  %v398 = vpop.f32.mrb[0].mxu0
  %v399 = vadd.f32 0.0, %v398
  %v400 = vpop.f32.mrb[0].mxu0
  %v401 = vadd.f32 0.0, %v400
  %v402 = vpop.f32.mrb[0].mxu0
  %v403 = vadd.f32 0.0, %v402
  %v404 = vpop.f32.mrb[0].mxu0
  %v405 = vadd.f32 0.0, %v404
  %406 = vmatprep.mubr.bf16.mxu0 0
  %407 = vmatmul.mubr.bf16.gmra.mrb[0].mxu0 %v316
  %v408 = vpop.f32.mrb[0].mxu0
  %v409 = vadd.f32 0.0, %v408
  %v410 = vpop.f32.mrb[0].mxu0
  %v411 = vadd.f32 0.0, %v410
  %v412 = vpop.f32.mrb[0].mxu0
  %v413 = vadd.f32 0.0, %v412
  %v414 = vpop.f32.mrb[0].mxu0
  %v415 = vadd.f32 0.0, %v414
  %416 = vmatprep.mubr.bf16.mxu0 0
  %417 = vmatmul.mubr.bf16.gmra.mrb[0].mxu0 %v319
  %v418 = vpop.f32.mrb[0].mxu0
  %v419 = vadd.f32 0.0, %v418
  %v420 = vpop.f32.mrb[0].mxu0
  %v421 = vadd.f32 0.0, %v420
  %v422 = vpop.f32.mrb[0].mxu0
  %v423 = vadd.f32 0.0, %v422
  %v424 = vpop.f32.mrb[0].mxu0
  %v425 = vadd.f32 0.0, %v424
  %426 = vmatprep.mubr.bf16.mxu0 0
  %427 = vmatmul.mubr.bf16.gmra.mrb[0].mxu0 %v322
  %v428 = vpop.f32.mrb[0].mxu0
  %v429 = vadd.f32 0.0, %v428
  %v430 = vpop.f32.mrb[0].mxu0
  %v431 = vadd.f32 0.0, %v430
  %v432 = vpop.f32.mrb[0].mxu0
  %v433 = vadd.f32 0.0, %v432
  %v434 = vpop.f32.mrb[0].mxu0
  %v435 = vadd.f32 0.0, %v434
  %436 = vdwg.mxu0
  %437 = vmatprep.subr.bf16.mxu0 %v270
  %438 = vmatpush1.bf16.msra.mxu0 %v269
  %439 = vmatprep.subr.bf16.mxu0 %v274
  %440 = vmatpush1.bf16.msra.mxu0 %v273
  %441 = vmatprep.subr.bf16.mxu0 %v278
  %442 = vmatpush1.bf16.msra.mxu0 %v277
  %443 = vmatprep.subr.bf16.mxu0 %v282
  %444 = vmatpush1.bf16.msra.mxu0 %v281
  %445 = vmatprep.subr.bf16.mxu0 0
  %446 = vmatpush1.bf16.msra.mxu0 0
  %447 = vmatprep.subr.bf16.mxu0 0
  %448 = vmatpush1.bf16.msra.mxu0 0
  %449 = vmatprep.subr.bf16.mxu0 0
  %450 = vmatpush1.bf16.msra.mxu0 0
  %451 = vmatprep.subr.bf16.mxu0 0
  %452 = vmatpush1.bf16.msra.mxu0 0
  %453 = vmatprep.subr.bf16.mxu0 0
  %454 = vmatpush1.bf16.msra.mxu0 0
  %455 = vmatprep.subr.bf16.mxu0 0
  %456 = vmatpush1.bf16.msra.mxu0 0
  %457 = vmatprep.subr.bf16.mxu0 0
  %458 = vmatpush1.bf16.msra.mxu0 0
  %459 = vmatprep.subr.bf16.mxu0 0
  %460 = vmatpush1.bf16.msra.mxu0 0
  %461 = vmatprep.subr.bf16.mxu0 0
  %462 = vmatpush1.bf16.msra.mxu0 0
  %463 = vmatprep.subr.bf16.mxu0 0
  %464 = vmatpush1.bf16.msra.mxu0 0
  %465 = vmatprep.subr.bf16.mxu0 0
  %466 = vmatpush1.bf16.msra.mxu0 0
  %467 = vmatprep.subr.bf16.mxu0 0
  %468 = vmatpush1.bf16.msra.mxu0 0
  %469 = vmatprep.mubr.bf16.mxu0 0
  %470 = vmatmul.mubr.bf16.gmra.mrb[0].mxu0 %v301
  %v471 = vpop.f32.mrb[0].mxu0
  %v472 = vadd.f32 0.0, %v471
  %v473 = vpop.f32.mrb[0].mxu0
  %v474 = vadd.f32 0.0, %v473
  %v475 = vpop.f32.mrb[0].mxu0
  %v476 = vadd.f32 0.0, %v475
  %v477 = vpop.f32.mrb[0].mxu0
  %v478 = vadd.f32 0.0, %v477
  %479 = vmatprep.mubr.bf16.mxu0 0
  %480 = vmatmul.mubr.bf16.gmra.mrb[0].mxu0 %v304
  %v481 = vpop.f32.mrb[0].mxu0
  %v482 = vadd.f32 0.0, %v481
  %v483 = vpop.f32.mrb[0].mxu0
  %v484 = vadd.f32 0.0, %v483
  %v485 = vpop.f32.mrb[0].mxu0
  %v486 = vadd.f32 0.0, %v485
  %v487 = vpop.f32.mrb[0].mxu0
  %v488 = vadd.f32 0.0, %v487
  %489 = vmatprep.mubr.bf16.mxu0 0
  %490 = vmatmul.mubr.bf16.gmra.mrb[0].mxu0 %v307
  %v491 = vpop.f32.mrb[0].mxu0
  %v492 = vadd.f32 0.0, %v491
  %v493 = vpop.f32.mrb[0].mxu0
  %v494 = vadd.f32 0.0, %v493
  %v495 = vpop.f32.mrb[0].mxu0
  %v496 = vadd.f32 0.0, %v495
  %v497 = vpop.f32.mrb[0].mxu0
  %v498 = vadd.f32 0.0, %v497
  %499 = vmatprep.mubr.bf16.mxu0 0
  %500 = vmatmul.mubr.bf16.gmra.mrb[0].mxu0 %v310
  %v501 = vpop.f32.mrb[0].mxu0
  %v502 = vadd.f32 0.0, %v501
  %v503 = vpop.f32.mrb[0].mxu0
  %v504 = vadd.f32 0.0, %v503
  %v505 = vpop.f32.mrb[0].mxu0
  %v506 = vadd.f32 0.0, %v505
  %v507 = vpop.f32.mrb[0].mxu0
  %v508 = vadd.f32 0.0, %v507
  %509 = vmatprep.mubr.bf16.mxu0 0
  %510 = vmatmul.mubr.bf16.gmra.mrb[0].mxu0 %v313
  %v511 = vpop.f32.mrb[0].mxu0
  %v512 = vadd.f32 0.0, %v511
  %v513 = vpop.f32.mrb[0].mxu0
  %v514 = vadd.f32 0.0, %v513
  %v515 = vpop.f32.mrb[0].mxu0
  %v516 = vadd.f32 0.0, %v515
  %v517 = vpop.f32.mrb[0].mxu0
  %v518 = vadd.f32 0.0, %v517
  %519 = vmatprep.mubr.bf16.mxu0 0
  %520 = vmatmul.mubr.bf16.gmra.mrb[0].mxu0 %v316
  %v521 = vpop.f32.mrb[0].mxu0
  %v522 = vadd.f32 0.0, %v521
  %v523 = vpop.f32.mrb[0].mxu0
  %v524 = vadd.f32 0.0, %v523
  %v525 = vpop.f32.mrb[0].mxu0
  %v526 = vadd.f32 0.0, %v525
  %v527 = vpop.f32.mrb[0].mxu0
  %v528 = vadd.f32 0.0, %v527
  %529 = vmatprep.mubr.bf16.mxu0 0
  %530 = vmatmul.mubr.bf16.gmra.mrb[0].mxu0 %v319
  %v531 = vpop.f32.mrb[0].mxu0
  %v532 = vadd.f32 0.0, %v531
  %v533 = vpop.f32.mrb[0].mxu0
  %v534 = vadd.f32 0.0, %v533
  %v535 = vpop.f32.mrb[0].mxu0
  %v536 = vadd.f32 0.0, %v535
  %v537 = vpop.f32.mrb[0].mxu0
  %v538 = vadd.f32 0.0, %v537
  %539 = vmatprep.mubr.bf16.mxu0 0
  %540 = vmatmul.mubr.bf16.gmra.mrb[0].mxu0 %v322
  %v541 = vpop.f32.mrb[0].mxu0
  %v542 = vadd.f32 0.0, %v541
  %v543 = vpop.f32.mrb[0].mxu0
  %v544 = vadd.f32 0.0, %v543
  %v545 = vpop.f32.mrb[0].mxu0
  %v546 = vadd.f32 0.0, %v545
  %v547 = vpop.f32.mrb[0].mxu0
  %v548 = vadd.f32 0.0, %v547
  %549 = vdwg.mxu0
  %v550 = vadd.f32 %v83, %v359
  %v551 = vadd.f32 %v84, %v361
  %v552 = vadd.f32 %v85, %v472
  %v553 = vadd.f32 %v86, %v474
  %v554 = vadd.f32 %v87, %v363
  %v555 = vadd.f32 %v88, %v365
  %v556 = vadd.f32 %v89, %v476
  %v557 = vadd.f32 %v90, %v478
  %v558 = vadd.f32 %v91, %v369
  %v559 = vadd.f32 %v92, %v371
  %v560 = vadd.f32 %v93, %v482
  %v561 = vadd.f32 %v94, %v484
  %v562 = vadd.f32 %v95, %v373
  %v563 = vadd.f32 %v96, %v375
  %v564 = vadd.f32 %v97, %v486
  %v565 = vadd.f32 %v98, %v488
  %v566 = vadd.f32 %v99, %v379
  %v567 = vadd.f32 %v100, %v381
  %v568 = vadd.f32 %v101, %v492
  %v569 = vadd.f32 %v102, %v494
  %v570 = vadd.f32 %v103, %v383
  %v571 = vadd.f32 %v104, %v385
  %v572 = vadd.f32 %v105, %v496
  %v573 = vadd.f32 %v106, %v498
  %v574 = vadd.f32 %v107, %v389
  %v575 = vadd.f32 %v108, %v391
  %v576 = vadd.f32 %v109, %v502
  %v577 = vadd.f32 %v110, %v504
  %v578 = vadd.f32 %v111, %v393
  %v579 = vadd.f32 %v112, %v395
  %v580 = vadd.f32 %v113, %v506
  %v581 = vadd.f32 %v114, %v508
  %v582 = vadd.f32 %v115, %v399
  %v583 = vadd.f32 %v116, %v401
  %v584 = vadd.f32 %v117, %v512
  %v585 = vadd.f32 %v118, %v514
  %v586 = vadd.f32 %v119, %v403
  %v587 = vadd.f32 %v120, %v405
  %v588 = vadd.f32 %v121, %v516
  %v589 = vadd.f32 %v122, %v518
  %v590 = vadd.f32 %v123, %v409
  %v591 = vadd.f32 %v124, %v411
  %v592 = vadd.f32 %v125, %v522
  %v593 = vadd.f32 %v126, %v524
  %v594 = vadd.f32 %v127, %v413
  %v595 = vadd.f32 %v128, %v415
  %v596 = vadd.f32 %v129, %v526
  %v597 = vadd.f32 %v130, %v528
  %v598 = vadd.f32 %v131, %v419
  %v599 = vadd.f32 %v132, %v421
  %v600 = vadd.f32 %v133, %v532
  %v601 = vadd.f32 %v134, %v534
  %v602 = vadd.f32 %v135, %v423
  %v603 = vadd.f32 %v136, %v425
  %v604 = vadd.f32 %v137, %v536
  %v605 = vadd.f32 %v138, %v538
  %v606 = vadd.f32 %v139, %v429
  %v607 = vadd.f32 %v140, %v431
  %v608 = vadd.f32 %v141, %v542
  %v609 = vadd.f32 %v142, %v544
  %v610 = vadd.f32 %v143, %v433
  %v611 = vadd.f32 %v144, %v435
  %v612 = vadd.f32 %v145, %v546
  %v613 = vadd.f32 %v146, %v548
  %614 = vst [vmem:[#allocation2] sm:$0xff] %v550
  %615 = vst [vmem:[#allocation2 + $0x8] sm:$0xff] %v551
  %616 = vst [vmem:[#allocation2 + $0x10] sm:$0xff] %v552
  %617 = vst [vmem:[#allocation2 + $0x18] sm:$0xff] %v553
  %618 = vst [vmem:[#allocation2 + $0x20] sm:$0xff] %v554
  %619 = vst [vmem:[#allocation2 + $0x28] sm:$0xff] %v555
  %620 = vst [vmem:[#allocation2 + $0x30] sm:$0xff] %v556
  %621 = vst [vmem:[#allocation2 + $0x38] sm:$0xff] %v557
  %622 = vst [vmem:[#allocation2 + $0x40] sm:$0xff] %v558
  %623 = vst [vmem:[#allocation2 + $0x48] sm:$0xff] %v559
  %624 = vst [vmem:[#allocation2 + $0x50] sm:$0xff] %v560
  %625 = vst [vmem:[#allocation2 + $0x58] sm:$0xff] %v561
  %626 = vst [vmem:[#allocation2 + $0x60] sm:$0xff] %v562
  %627 = vst [vmem:[#allocation2 + $0x68] sm:$0xff] %v563
  %628 = vst [vmem:[#allocation2 + $0x70] sm:$0xff] %v564
  %629 = vst [vmem:[#allocation2 + $0x78] sm:$0xff] %v565
  %630 = vst [vmem:[#allocation2 + $0x80] sm:$0xff] %v566
  %631 = vst [vmem:[#allocation2 + $0x88] sm:$0xff] %v567
  %632 = vst [vmem:[#allocation2 + $0x90] sm:$0xff] %v568
  %633 = vst [vmem:[#allocation2 + $0x98] sm:$0xff] %v569
  %634 = vst [vmem:[#allocation2 + $0xa0] sm:$0xff] %v570
  %635 = vst [vmem:[#allocation2 + $0xa8] sm:$0xff] %v571
  %636 = vst [vmem:[#allocation2 + $0xb0] sm:$0xff] %v572
  %637 = vst [vmem:[#allocation2 + $0xb8] sm:$0xff] %v573
  %638 = vst [vmem:[#allocation2 + $0xc0] sm:$0xff] %v574
  %639 = vst [vmem:[#allocation2 + $0xc8] sm:$0xff] %v575
  %640 = vst [vmem:[#allocation2 + $0xd0] sm:$0xff] %v576
  %641 = vst [vmem:[#allocation2 + $0xd8] sm:$0xff] %v577
  %642 = vst [vmem:[#allocation2 + $0xe0] sm:$0xff] %v578
  %643 = vst [vmem:[#allocation2 + $0xe8] sm:$0xff] %v579
  %644 = vst [vmem:[#allocation2 + $0xf0] sm:$0xff] %v580
  %645 = vst [vmem:[#allocation2 + $0xf8] sm:$0xff] %v581
  %646 = vst [vmem:[#allocation2 + $0x100] sm:$0xff] %v582
  %647 = vst [vmem:[#allocation2 + $0x108] sm:$0xff] %v583
  %648 = vst [vmem:[#allocation2 + $0x110] sm:$0xff] %v584
  %649 = vst [vmem:[#allocation2 + $0x118] sm:$0xff] %v585
  %650 = vst [vmem:[#allocation2 + $0x120] sm:$0xff] %v586
  %651 = vst [vmem:[#allocation2 + $0x128] sm:$0xff] %v587
  %652 = vst [vmem:[#allocation2 + $0x130] sm:$0xff] %v588
  %653 = vst [vmem:[#allocation2 + $0x138] sm:$0xff] %v589
  %654 = vst [vmem:[#allocation2 + $0x140] sm:$0xff] %v590
  %655 = vst [vmem:[#allocation2 + $0x148] sm:$0xff] %v591
  %656 = vst [vmem:[#allocation2 + $0x150] sm:$0xff] %v592
  %657 = vst [vmem:[#allocation2 + $0x158] sm:$0xff] %v593
  %658 = vst [vmem:[#allocation2 + $0x160] sm:$0xff] %v594
  %659 = vst [vmem:[#allocation2 + $0x168] sm:$0xff] %v595
  %660 = vst [vmem:[#allocation2 + $0x170] sm:$0xff] %v596
  %661 = vst [vmem:[#allocation2 + $0x178] sm:$0xff] %v597
  %662 = vst [vmem:[#allocation2 + $0x180] sm:$0xff] %v598
  %663 = vst [vmem:[#allocation2 + $0x188] sm:$0xff] %v599
  %664 = vst [vmem:[#allocation2 + $0x190] sm:$0xff] %v600
  %665 = vst [vmem:[#allocation2 + $0x198] sm:$0xff] %v601
  %666 = vst [vmem:[#allocation2 + $0x1a0] sm:$0xff] %v602
  %667 = vst [vmem:[#allocation2 + $0x1a8] sm:$0xff] %v603
  %668 = vst [vmem:[#allocation2 + $0x1b0] sm:$0xff] %v604
  %669 = vst [vmem:[#allocation2 + $0x1b8] sm:$0xff] %v605
  %670 = vst [vmem:[#allocation2 + $0x1c0] sm:$0xff] %v606
  %671 = vst [vmem:[#allocation2 + $0x1c8] sm:$0xff] %v607
  %672 = vst [vmem:[#allocation2 + $0x1d0] sm:$0xff] %v608
  %673 = vst [vmem:[#allocation2 + $0x1d8] sm:$0xff] %v609
  %674 = vst [vmem:[#allocation2 + $0x1e0] sm:$0xff] %v610
  %675 = vst [vmem:[#allocation2 + $0x1e8] sm:$0xff] %v611
  %676 = vst [vmem:[#allocation2 + $0x1f0] sm:$0xff] %v612
  %677 = vst [vmem:[#allocation2 + $0x1f8] sm:$0xff] %v613
  // Predicated region
  $region18: #{rnn_model_forward.5} parent=0 // pred_check
    %p678 = pneg %p15
  $region19: #{rnn_model_forward.5} parent=0 // pred_check_branch
    %680 = sbr.rel (%p678) target = $region21
  $region20: #{rnn_model_forward.5} parent=0 // pred_region
    %v681 = vld [vmem:[#allocation2] sm:$0xff]
    %v682 = vld [vmem:[#allocation2 + $0x8] sm:$0xff]
    %v683 = vld [vmem:[#allocation2 + $0x10] sm:$0xff]
    %v684 = vld [vmem:[#allocation2 + $0x18] sm:$0xff]
    %v685 = vld [vmem:[#allocation2 + $0x20] sm:$0xff]
    %v686 = vld [vmem:[#allocation2 + $0x28] sm:$0xff]
    %v687 = vld [vmem:[#allocation2 + $0x30] sm:$0xff]
    %v688 = vld [vmem:[#allocation2 + $0x38] sm:$0xff]
    %v689 = vld [vmem:[#allocation2 + $0x40] sm:$0xff]
    %v690 = vld [vmem:[#allocation2 + $0x48] sm:$0xff]
    %v691 = vld [vmem:[#allocation2 + $0x50] sm:$0xff]
    %v692 = vld [vmem:[#allocation2 + $0x58] sm:$0xff]
    %v693 = vld [vmem:[#allocation2 + $0x60] sm:$0xff]
    %v694 = vld [vmem:[#allocation2 + $0x68] sm:$0xff]
    %v695 = vld [vmem:[#allocation2 + $0x70] sm:$0xff]
    %v696 = vld [vmem:[#allocation2 + $0x78] sm:$0xff]
    %v697 = vld [vmem:[#allocation2 + $0x80] sm:$0xff]
    %v698 = vld [vmem:[#allocation2 + $0x88] sm:$0xff]
    %v699 = vld [vmem:[#allocation2 + $0x90] sm:$0xff]
    %v700 = vld [vmem:[#allocation2 + $0x98] sm:$0xff]
    %v701 = vld [vmem:[#allocation2 + $0xa0] sm:$0xff]
    %v702 = vld [vmem:[#allocation2 + $0xa8] sm:$0xff]
    %v703 = vld [vmem:[#allocation2 + $0xb0] sm:$0xff]
    %v704 = vld [vmem:[#allocation2 + $0xb8] sm:$0xff]
    %v705 = vld [vmem:[#allocation2 + $0xc0] sm:$0xff]
    %v706 = vld [vmem:[#allocation2 + $0xc8] sm:$0xff]
    %v707 = vld [vmem:[#allocation2 + $0xd0] sm:$0xff]
    %v708 = vld [vmem:[#allocation2 + $0xd8] sm:$0xff]
    %v709 = vld [vmem:[#allocation2 + $0xe0] sm:$0xff]
    %v710 = vld [vmem:[#allocation2 + $0xe8] sm:$0xff]
    %v711 = vld [vmem:[#allocation2 + $0xf0] sm:$0xff]
    %v712 = vld [vmem:[#allocation2 + $0xf8] sm:$0xff]
    %v713 = vld [vmem:[#allocation2 + $0x100] sm:$0xff]
    %v714 = vld [vmem:[#allocation2 + $0x108] sm:$0xff]
    %v715 = vld [vmem:[#allocation2 + $0x110] sm:$0xff]
    %v716 = vld [vmem:[#allocation2 + $0x118] sm:$0xff]
    %v717 = vld [vmem:[#allocation2 + $0x120] sm:$0xff]
    %v718 = vld [vmem:[#allocation2 + $0x128] sm:$0xff]
    %v719 = vld [vmem:[#allocation2 + $0x130] sm:$0xff]
    %v720 = vld [vmem:[#allocation2 + $0x138] sm:$0xff]
    %v721 = vld [vmem:[#allocation2 + $0x140] sm:$0xff]
    %v722 = vld [vmem:[#allocation2 + $0x148] sm:$0xff]
    %v723 = vld [vmem:[#allocation2 + $0x150] sm:$0xff]
    %v724 = vld [vmem:[#allocation2 + $0x158] sm:$0xff]
    %v725 = vld [vmem:[#allocation2 + $0x160] sm:$0xff]
    %v726 = vld [vmem:[#allocation2 + $0x168] sm:$0xff]
    %v727 = vld [vmem:[#allocation2 + $0x170] sm:$0xff]
    %v728 = vld [vmem:[#allocation2 + $0x178] sm:$0xff]
    %v729 = vld [vmem:[#allocation2 + $0x180] sm:$0xff]
    %v730 = vld [vmem:[#allocation2 + $0x188] sm:$0xff]
    %v731 = vld [vmem:[#allocation2 + $0x190] sm:$0xff]
    %v732 = vld [vmem:[#allocation2 + $0x198] sm:$0xff]
    %v733 = vld [vmem:[#allocation2 + $0x1a0] sm:$0xff]
    %v734 = vld [vmem:[#allocation2 + $0x1a8] sm:$0xff]
    %v735 = vld [vmem:[#allocation2 + $0x1b0] sm:$0xff]
    %v736 = vld [vmem:[#allocation2 + $0x1b8] sm:$0xff]
    %v737 = vld [vmem:[#allocation2 + $0x1c0] sm:$0xff]
    %v738 = vld [vmem:[#allocation2 + $0x1c8] sm:$0xff]
    %v739 = vld [vmem:[#allocation2 + $0x1d0] sm:$0xff]
    %v740 = vld [vmem:[#allocation2 + $0x1d8] sm:$0xff]
    %v741 = vld [vmem:[#allocation2 + $0x1e0] sm:$0xff]
    %v742 = vld [vmem:[#allocation2 + $0x1e8] sm:$0xff]
    %v743 = vld [vmem:[#allocation2 + $0x1f0] sm:$0xff]
    %v744 = vld [vmem:[#allocation2 + $0x1f8] sm:$0xff]
    %v745 = vld [vmem:[%s2] sm:$0xf]
    %v747 = vlaneseq
    %v748 = vshrl.u32 %v747, 7
    %v749 = vsub.s32 0, %v748
    %v750 = vrot.slane %v745, %v749
    %v751 = vlaneseq
    %v752 = vshrl.u32 %v751, 7
    %v753 = vsub.s32 1, %v752
    %v754 = vrot.slane %v745, %v753
    %v755 = vlaneseq
    %v756 = vshrl.u32 %v755, 7
    %v757 = vsub.s32 2, %v756
    %v758 = vrot.slane %v745, %v757
    %v759 = vlaneseq
    %v760 = vshrl.u32 %v759, 7
    %v761 = vsub.s32 3, %v760
    %v762 = vrot.slane %v745, %v761
    %v767 = vadd.f32 %v681, %v750
    %v768 = vadd.f32 %v682, %v754
    %v769 = vadd.f32 %v683, %v758
    %v770 = vadd.f32 %v684, %v762
    %v771 = vadd.f32 %v685, %v750
    %v772 = vadd.f32 %v686, %v754
    %v773 = vadd.f32 %v687, %v758
    %v774 = vadd.f32 %v688, %v762
    %v775 = vadd.f32 %v689, %v750
    %v776 = vadd.f32 %v690, %v754
    %v777 = vadd.f32 %v691, %v758
    %v778 = vadd.f32 %v692, %v762
    %v779 = vadd.f32 %v693, %v750
    %v780 = vadd.f32 %v694, %v754
    %v781 = vadd.f32 %v695, %v758
    %v782 = vadd.f32 %v696, %v762
    %v783 = vadd.f32 %v697, %v750
    %v784 = vadd.f32 %v698, %v754
    %v785 = vadd.f32 %v699, %v758
    %v786 = vadd.f32 %v700, %v762
    %v787 = vadd.f32 %v701, %v750
    %v788 = vadd.f32 %v702, %v754
    %v789 = vadd.f32 %v703, %v758
    %v790 = vadd.f32 %v704, %v762
    %v791 = vadd.f32 %v705, %v750
    %v792 = vadd.f32 %v706, %v754
    %v793 = vadd.f32 %v707, %v758
    %v794 = vadd.f32 %v708, %v762
    %v795 = vadd.f32 %v709, %v750
    %v796 = vadd.f32 %v710, %v754
    %v797 = vadd.f32 %v711, %v758
    %v798 = vadd.f32 %v712, %v762
    %v799 = vadd.f32 %v713, %v750
    %v800 = vadd.f32 %v714, %v754
    %v801 = vadd.f32 %v715, %v758
    %v802 = vadd.f32 %v716, %v762
    %v803 = vadd.f32 %v717, %v750
    %v804 = vadd.f32 %v718, %v754
    %v805 = vadd.f32 %v719, %v758
    %v806 = vadd.f32 %v720, %v762
    %v807 = vadd.f32 %v721, %v750
    %v808 = vadd.f32 %v722, %v754
    %v809 = vadd.f32 %v723, %v758
    %v810 = vadd.f32 %v724, %v762
    %v811 = vadd.f32 %v725, %v750
    %v812 = vadd.f32 %v726, %v754
    %v813 = vadd.f32 %v727, %v758
    %v814 = vadd.f32 %v728, %v762
    %v815 = vadd.f32 %v729, %v750
    %v816 = vadd.f32 %v730, %v754
    %v817 = vadd.f32 %v731, %v758
    %v818 = vadd.f32 %v732, %v762
    %v819 = vadd.f32 %v733, %v750
    %v820 = vadd.f32 %v734, %v754
    %v821 = vadd.f32 %v735, %v758
    %v822 = vadd.f32 %v736, %v762
    %v823 = vadd.f32 %v737, %v750
    %v824 = vadd.f32 %v738, %v754
    %v825 = vadd.f32 %v739, %v758
    %v826 = vadd.f32 %v740, %v762
    %v827 = vadd.f32 %v741, %v750
    %v828 = vadd.f32 %v742, %v754
    %v829 = vadd.f32 %v743, %v758
    %v830 = vadd.f32 %v744, %v762
    %831 = vst [vmem:[%s3] sm:$0xff] %v767
    %832 = vst [vmem:[%s3 + $0x8] sm:$0xff] %v768
    %833 = vst [vmem:[%s3 + $0x10] sm:$0xff] %v769
    %834 = vst [vmem:[%s3 + $0x18] sm:$0xff] %v770
    %835 = vst [vmem:[%s3 + $0x20] sm:$0xff] %v771
    %836 = vst [vmem:[%s3 + $0x28] sm:$0xff] %v772
    %837 = vst [vmem:[%s3 + $0x30] sm:$0xff] %v773
    %838 = vst [vmem:[%s3 + $0x38] sm:$0xff] %v774
    %839 = vst [vmem:[%s3 + $0x40] sm:$0xff] %v775
    %840 = vst [vmem:[%s3 + $0x48] sm:$0xff] %v776
    %841 = vst [vmem:[%s3 + $0x50] sm:$0xff] %v777
    %842 = vst [vmem:[%s3 + $0x58] sm:$0xff] %v778
    %843 = vst [vmem:[%s3 + $0x60] sm:$0xff] %v779
    %844 = vst [vmem:[%s3 + $0x68] sm:$0xff] %v780
    %845 = vst [vmem:[%s3 + $0x70] sm:$0xff] %v781
    %846 = vst [vmem:[%s3 + $0x78] sm:$0xff] %v782
    %847 = vst [vmem:[%s3 + $0x80] sm:$0xff] %v783
    %848 = vst [vmem:[%s3 + $0x88] sm:$0xff] %v784
    %849 = vst [vmem:[%s3 + $0x90] sm:$0xff] %v785
    %850 = vst [vmem:[%s3 + $0x98] sm:$0xff] %v786
    %851 = vst [vmem:[%s3 + $0xa0] sm:$0xff] %v787
    %852 = vst [vmem:[%s3 + $0xa8] sm:$0xff] %v788
    %853 = vst [vmem:[%s3 + $0xb0] sm:$0xff] %v789
    %854 = vst [vmem:[%s3 + $0xb8] sm:$0xff] %v790
    %855 = vst [vmem:[%s3 + $0xc0] sm:$0xff] %v791
    %856 = vst [vmem:[%s3 + $0xc8] sm:$0xff] %v792
    %857 = vst [vmem:[%s3 + $0xd0] sm:$0xff] %v793
    %858 = vst [vmem:[%s3 + $0xd8] sm:$0xff] %v794
    %859 = vst [vmem:[%s3 + $0xe0] sm:$0xff] %v795
    %860 = vst [vmem:[%s3 + $0xe8] sm:$0xff] %v796
    %861 = vst [vmem:[%s3 + $0xf0] sm:$0xff] %v797
    %862 = vst [vmem:[%s3 + $0xf8] sm:$0xff] %v798
    %863 = vst [vmem:[%s3 + $0x100] sm:$0xff] %v799
    %864 = vst [vmem:[%s3 + $0x108] sm:$0xff] %v800
    %865 = vst [vmem:[%s3 + $0x110] sm:$0xff] %v801
    %866 = vst [vmem:[%s3 + $0x118] sm:$0xff] %v802
    %867 = vst [vmem:[%s3 + $0x120] sm:$0xff] %v803
    %868 = vst [vmem:[%s3 + $0x128] sm:$0xff] %v804
    %869 = vst [vmem:[%s3 + $0x130] sm:$0xff] %v805
    %870 = vst [vmem:[%s3 + $0x138] sm:$0xff] %v806
    %871 = vst [vmem:[%s3 + $0x140] sm:$0xff] %v807
    %872 = vst [vmem:[%s3 + $0x148] sm:$0xff] %v808
    %873 = vst [vmem:[%s3 + $0x150] sm:$0xff] %v809
    %874 = vst [vmem:[%s3 + $0x158] sm:$0xff] %v810
    %875 = vst [vmem:[%s3 + $0x160] sm:$0xff] %v811
    %876 = vst [vmem:[%s3 + $0x168] sm:$0xff] %v812
    %877 = vst [vmem:[%s3 + $0x170] sm:$0xff] %v813
    %878 = vst [vmem:[%s3 + $0x178] sm:$0xff] %v814
    %879 = vst [vmem:[%s3 + $0x180] sm:$0xff] %v815
    %880 = vst [vmem:[%s3 + $0x188] sm:$0xff] %v816
    %881 = vst [vmem:[%s3 + $0x190] sm:$0xff] %v817
    %882 = vst [vmem:[%s3 + $0x198] sm:$0xff] %v818
    %883 = vst [vmem:[%s3 + $0x1a0] sm:$0xff] %v819
    %884 = vst [vmem:[%s3 + $0x1a8] sm:$0xff] %v820
    %885 = vst [vmem:[%s3 + $0x1b0] sm:$0xff] %v821
    %886 = vst [vmem:[%s3 + $0x1b8] sm:$0xff] %v822
    %887 = vst [vmem:[%s3 + $0x1c0] sm:$0xff] %v823
    %888 = vst [vmem:[%s3 + $0x1c8] sm:$0xff] %v824
    %889 = vst [vmem:[%s3 + $0x1d0] sm:$0xff] %v825
    %890 = vst [vmem:[%s3 + $0x1d8] sm:$0xff] %v826
    %891 = vst [vmem:[%s3 + $0x1e0] sm:$0xff] %v827
    %892 = vst [vmem:[%s3 + $0x1e8] sm:$0xff] %v828
    %893 = vst [vmem:[%s3 + $0x1f0] sm:$0xff] %v829
    %894 = vst [vmem:[%s3 + $0x1f8] sm:$0xff] %v830
  $region21: #{rnn_model_forward.5} parent=0 // pred_fallthru
    _
  // Predicated region
  $region22: #{rnn_model_forward.5} parent=0 // pred_check
    _
  $region23: #{rnn_model_forward.5} parent=0 // pred_check_branch
    %896 = sbr.rel (0) target = $region25
  $region24: #{rnn_model_forward.5} parent=0 // pred_region
    _
  $region25: #{rnn_model_forward.5} parent=0 // pred_fallthru
    _
  // Predicated region
  $region26: #{rnn_model_forward.5} parent=0 // pred_check
    _
  $region27: #{rnn_model_forward.5} parent=0 // pred_check_branch
    %898 = sbr.rel (0) target = $region29
  $region28: #{rnn_model_forward.5} parent=0 // pred_region
    _
  $region29: #{rnn_model_forward.5} parent=0 // pred_fallthru
    _

</llo_original>
